<compile_context>
chip_gen: v6e
topology: v6e:2x2x1
jax: 0.10.0
libtpu: 0.0.40
codegen_flags: <defaults>
</compile_context>

<pallas_src>
import functools
import random

import jax
import jax.numpy as jnp
from jax import lax
from jax.experimental import pallas as pl
from jax.experimental.pallas import tpu as pltpu

H = 28             # height (einsum index l / m)
W = 28             # width  (einsum index m / n)
HW = H * W         # 784 flattened spatial
CIN = 32           # input channels per group
CPROJ = 9          # projected channels
KH = 7             # conv taps along height
COUT = 128         # output channels per group
NB = 128           # batch
NG = 2             # groups
PAD = 3            # unfold padding along height
BLK_B = 16         # (batch, group) slices per grid step  -> grid = 256 / 16 = 16
SLICES_PER_ITER = 2  # slices per fori_loop iteration (double-buffered operand scratch)
KFUSED = KH * CIN  # 224 = fused contraction depth


def _roll_last(x, shift):
    """jnp.roll semantics along the last (lane) axis with a static shift."""
    n = x.shape[-1]
    s = shift % n
    if s == 0:
        return x
    return jnp.concatenate([x[..., n - s:], x[..., :n - s]], axis=-1)


def _kernel(x_ref, w_ref, out_ref, stacked_ref, *, shift):
    # x_ref:       (BLK_B, 32, 784)  f32   input slices
    # w_ref:       (128, 224)        bf16  fused weights (resident across the grid)
    # out_ref:     (BLK_B, 128, 784) f32   output slices
    # stacked_ref: (2, 224, 784)     bf16  double-buffered conv-operand scratch
    wv = w_ref[...]                                                   # (128, 224) bf16, hoisted

    # Hoisted once per grid step: wrap-column mask of the flattened (h*28 + w) axis.
    col = jax.lax.broadcasted_iota(jnp.int32, (CIN, HW), 1) % W
    if shift == 1:
        boundary = col == 0           # width-wrap column
        roll_edge, roll_main = 1, 29  # 29 = 28 (height roll) + 1 (width roll)
    else:  # shift == -1
        boundary = col == W - 1
        roll_edge, roll_main = -1, -29

    def one_slice(b, slot):
        # Early bf16 cast: the roll and the boundary select are exact (pure data movement),
        # and bf16 halves the vreg traffic of the lane shuffles below.
        xb = x_ref[b].astype(jnp.bfloat16)                            # (32, 784) bf16

        # Combined height+width roll applied to the 32-channel input (both rolls commute with
        # the channel projection and the height-only conv).
        xr = jnp.where(boundary, _roll_last(xb, roll_edge), _roll_last(xb, roll_main))

        # Assemble the (224, 784) stacked conv operand directly in VMEM scratch: row block
        # k*32 .. k*32+32 holds the input shifted by (k-3) height rows, zero-filled at the
        # edges (== torch unfold with kernel (7,1), padding (3,0)).  Each tap is stored once
        # at a sublane-aligned offset; no (224, 784) value is ever materialized in registers.
        for k in range(KH):
            d = k - PAD
            if d < 0:
                z = jnp.zeros((CIN, -d * W), dtype=jnp.bfloat16)
                win = jnp.concatenate([z, xr[:, : (H + d) * W]], axis=-1)
            elif d == 0:
                win = xr
            else:
                z = jnp.zeros((CIN, d * W), dtype=jnp.bfloat16)
                win = jnp.concatenate([xr[:, d * W:], z], axis=-1)
            stacked_ref[slot, pl.ds(k * CIN, CIN), :] = win

        # Single near-full-depth MXU matmul, f32 accumulation.
        out_ref[b] = jnp.dot(wv, stacked_ref[slot],
                             preferred_element_type=jnp.float32)      # (128, 784) f32

    # fori_loop keeps live ranges bounded at BLK_B=16 (VMEM-safe on v7x); two slices per
    # iteration alternate scratch slots so slice j+1's operand build can overlap slice j's
    # matmul within the iteration.
    def body(i, carry):
        for j in range(SLICES_PER_ITER):
            one_slice(i * SLICES_PER_ITER + j, j)
        return carry

    lax.fori_loop(0, BLK_B // SLICES_PER_ITER, body, 0)


@functools.partial(jax.jit, static_argnames=("shift",))
def kernel_generated_4_forward(x, w1, w2, *, shift):
    assert shift in (1, -1)
    nbg = NB * NG
    x2 = x.reshape(nbg, CIN, HW).astype(jnp.float32)                  # (256, 32, 784)

    # Fuse W2 into W1 offline: W[i, k*32 + c] = sum_j W1[i,k,j] * W2[c,j]   (tiny, done once)
    w_fused = jnp.einsum('ikj,cj->ikc',
                         w1.astype(jnp.float32), w2.astype(jnp.float32),
                         precision=jax.lax.Precision.HIGHEST)         # (128, 7, 32)
    w_fused = w_fused.reshape(COUT, KFUSED).astype(jnp.bfloat16)      # (128, 224) bf16

    cost = pl.CostEstimate(
        flops=2 * nbg * COUT * KFUSED * HW,
        transcendentals=0,
        bytes_accessed=nbg * CIN * HW * 4 + nbg * COUT * HW * 4 + COUT * KFUSED * 2)

    out = pl.pallas_call(
        functools.partial(_kernel, shift=shift),
        out_shape=jax.ShapeDtypeStruct((nbg, COUT, HW), jnp.float32),
        grid_spec=pltpu.PrefetchScalarGridSpec(
            num_scalar_prefetch=0,
            grid=(nbg // BLK_B,),                                     # 16 steps
            in_specs=[
                pl.BlockSpec((BLK_B, CIN, HW), lambda i: (i, 0, 0)),
                pl.BlockSpec((COUT, KFUSED), lambda i: (0, 0)),
            ],
            out_specs=pl.BlockSpec((BLK_B, COUT, HW), lambda i: (i, 0, 0)),
            scratch_shapes=[pltpu.VMEM((SLICES_PER_ITER, KFUSED, HW), jnp.bfloat16)],
        ),
        compiler_params=pltpu.CompilerParams(
            dimension_semantics=("parallel",),
            vmem_limit_bytes=48 * 1024 * 1024),
        cost_estimate=cost,
    )(x2, w_fused)

    # (256, 128, 784) -> (128, 2*128, 28, 28); channel = o*128 + i (matches torch reshape)
    return out.reshape(NB, NG * COUT, H, W)


def reference(x, w1, w2, shift):
    """Pure-JAX mirror of the PyTorch forward (for validation)."""
    t3 = x.reshape(NB, NG, CIN, H, W)
    t4 = jnp.einsum('knjlm,ji->knlmi', t3, w2,
                    precision=jax.lax.Precision.HIGHEST)              # (128, 2, 28, 28, 9)
    t5 = jnp.roll(t4, shift, axis=2)
    t5p = jnp.pad(t5, ((0, 0), (0, 0), (PAD, PAD), (0, 0), (0, 0)))
    t5u = jnp.stack([t5p[:, :, kk:kk + H, :, :] for kk in range(KH)], axis=2)
    t6 = jnp.einsum('lokmnj,ikj->loimn', t5u, w1,
                    precision=jax.lax.Precision.HIGHEST)              # (128, 2, 128, 28, 28)
    t7 = t6.reshape(NB, NG * COUT, H, W)
    return jnp.roll(t7, shift, axis=3)


if __name__ == "__main__":
    # deterministic shift_direction, mirroring the module's __init__ logic
    random.seed(0)
    shift = int((random.random() > 0.5) * 2 - 1)

    key = jax.random.PRNGKey(0)
    kx, k1, k2 = jax.random.split(key, 3)
    # NCHW input; the module hard-codes the reshape to (128, 2, 32, 28, 28), so the input must
    # carry exactly 128*64*28*28 elements.
    x = jax.random.normal(kx, (NB, NG * CIN, H, W), dtype=jnp.float32)
    w1 = jax.random.normal(k1, (COUT, KH, CPROJ), dtype=jnp.float32)   # weights[0]
    w2 = jax.random.normal(k2, (CIN, CPROJ), dtype=jnp.float32)        # weights[1]

    y = jax.block_until_ready(kernel_generated_4_forward(x, w1, w2, shift=shift))
    assert y.shape == (NB, 256, H, W), y.shape

    y_ref = jax.block_until_ready(reference(x, w1, w2, shift))
    rel_err = float(jnp.max(jnp.abs(y - y_ref)) / (jnp.max(jnp.abs(y_ref)) + 1e-6))
    assert rel_err < 2e-2, f"mismatch vs reference: rel err {rel_err}"

    print("KERNEL_OK")
</pallas_src>

<mosaic_0001>
module attributes {stable_mosaic.version = 11 : i64} {
  func.func @_kernel(%arg0: i32, %arg1: memref<16x32x784xf32, #tpu.memory_space<vmem>>, %arg2: memref<128x224xbf16, #tpu.memory_space<vmem>>, %arg3: memref<16x128x784xf32, #tpu.memory_space<vmem>>, %arg4: memref<2x224x784xbf16, #tpu.memory_space<vmem>>) attributes {dimension_semantics = [#tpu.dimension_semantics<parallel>], iteration_bounds = array<i64: 16>, scalar_prefetch = 0 : i64, scratch_operands = 1 : i64, tpu.core_type = #tpu.core_type<tc>, window_params = [{transform_indices = @transform_0, window_bounds = array<i64: 16, 32, 784>}, {pipeline_mode = #tpu.pipeline_mode<synchronous>, transform_indices = @transform_1, window_bounds = array<i64: 128, 224>}, {transform_indices = @transform_2, window_bounds = array<i64: 16, 128, 784>}]} {
    %c0 = arith.constant 0 : index
    %c0_0 = arith.constant 0 : index
    %0 = vector.load %arg2[%c0, %c0_0] : memref<128x224xbf16, #tpu.memory_space<vmem>>, vector<128x224xbf16>
    %1 = tpu.iota {dimensions = array<i32: 1>} : vector<32x784xi32>
    %c28_i32 = arith.constant 28 : i32
    %c0_i32 = arith.constant 0 : i32
    %2 = arith.cmpi eq, %c28_i32, %c0_i32 : i32
    %c1_i32 = arith.constant 1 : i32
    %3 = arith.select %2, %c1_i32, %c28_i32 : i32
    %4 = vector.broadcast %3 : i32 to vector<32x784xi32>
    %5 = arith.remsi %1, %4 : vector<32x784xi32>
    %c0_i32_1 = arith.constant 0 : i32
    %6 = vector.broadcast %c0_i32_1 : i32 to vector<32x784xi32>
    %7 = arith.cmpi ne, %5, %6 : vector<32x784xi32>
    %c0_i32_2 = arith.constant 0 : i32
    %8 = vector.broadcast %c0_i32_2 : i32 to vector<32x784xi32>
    %9 = arith.cmpi slt, %5, %8 : vector<32x784xi32>
    %c0_i32_3 = arith.constant 0 : i32
    %10 = arith.cmpi slt, %3, %c0_i32_3 : i32
    %11 = vector.broadcast %10 : i1 to vector<32x784xi1>
    %12 = vector.broadcast %11 : vector<32x784xi1> to vector<32x784xi1>
    %13 = arith.xori %9, %12 : vector<32x784xi1>
    %14 = arith.andi %13, %7 : vector<32x784xi1>
    %15 = vector.broadcast %3 : i32 to vector<32x784xi32>
    %16 = arith.addi %5, %15 : vector<32x784xi32>
    %17 = arith.select %14, %16, %5 : vector<32x784xi1>, vector<32x784xi32>
    %c0_i32_4 = arith.constant 0 : i32
    %18 = vector.broadcast %c0_i32_4 : i32 to vector<32x784xi32>
    %19 = arith.cmpi eq, %17, %18 : vector<32x784xi32>
    %c0_i32_5 = arith.constant 0 : i32
    %c8_i32 = arith.constant 8 : i32
    %20 = arith.addi %c0_i32_5, %c8_i32 : i32
    %c1_i32_6 = arith.constant 1 : i32
    scf.for %arg5 = %c0_i32_5 to %20 step %c1_i32_6  : i32 {
      %c2_i32 = arith.constant 2 : i32
      %21 = arith.muli %arg5, %c2_i32 : i32
      %c0_i32_8 = arith.constant 0 : i32
      %22 = arith.addi %21, %c0_i32_8 : i32
      %23 = arith.index_cast %22 : i32 to index
      %c0_9 = arith.constant 0 : index
      %c0_10 = arith.constant 0 : index
      %24 = vector.load %arg1[%23, %c0_9, %c0_10] : memref<16x32x784xf32, #tpu.memory_space<vmem>>, vector<1x32x784xf32>
      %25 = vector.shape_cast %24 : vector<1x32x784xf32> to vector<32x784xf32>
      %26 = arith.truncf %25 : vector<32x784xf32> to vector<32x784xbf16>
      %27 = vector.extract_strided_slice %26 {offsets = [0, 783], sizes = [32, 1], strides = [1, 1]} : vector<32x784xbf16> to vector<32x1xbf16>
      %28 = vector.extract_strided_slice %26 {offsets = [0, 0], sizes = [32, 783], strides = [1, 1]} : vector<32x784xbf16> to vector<32x783xbf16>
      %29 = tpu.concatenate %27, %28 in 1 : vector<32x1xbf16>, vector<32x783xbf16> -> vector<32x784xbf16>
      %30 = vector.extract_strided_slice %26 {offsets = [0, 755], sizes = [32, 29], strides = [1, 1]} : vector<32x784xbf16> to vector<32x29xbf16>
      %31 = vector.extract_strided_slice %26 {offsets = [0, 0], sizes = [32, 755], strides = [1, 1]} : vector<32x784xbf16> to vector<32x755xbf16>
      %32 = tpu.concatenate %30, %31 in 1 : vector<32x29xbf16>, vector<32x755xbf16> -> vector<32x784xbf16>
      %33 = arith.select %19, %29, %32 : vector<32x784xi1>, vector<32x784xbf16>
      %cst = arith.constant 0.000000e+00 : bf16
      %34 = vector.broadcast %cst : bf16 to vector<32x84xbf16>
      %35 = vector.extract_strided_slice %33 {offsets = [0, 0], sizes = [32, 700], strides = [1, 1]} : vector<32x784xbf16> to vector<32x700xbf16>
      %36 = tpu.concatenate %34, %35 in 1 : vector<32x84xbf16>, vector<32x700xbf16> -> vector<32x784xbf16>
      %c0_11 = arith.constant 0 : index
      %c0_12 = arith.constant 0 : index
      %c0_13 = arith.constant 0 : index
      %37 = vector.load %arg4[%c0_11, %c0_12, %c0_13] : memref<2x224x784xbf16, #tpu.memory_space<vmem>>, vector<1x32x784xbf16>
      %38 = vector.shape_cast %37 : vector<1x32x784xbf16> to vector<32x784xbf16>
      %39 = vector.shape_cast %36 : vector<32x784xbf16> to vector<1x32x784xbf16>
      tpu.vector_store %arg4[%c0_11, %c0_12, %c0_13], %39 {strides = array<i32>} : memref<2x224x784xbf16, #tpu.memory_space<vmem>>, vector<1x32x784xbf16>,
      %cst_14 = arith.constant 0.000000e+00 : bf16
      %40 = vector.broadcast %cst_14 : bf16 to vector<32x56xbf16>
      %41 = vector.extract_strided_slice %33 {offsets = [0, 0], sizes = [32, 728], strides = [1, 1]} : vector<32x784xbf16> to vector<32x728xbf16>
      %42 = tpu.concatenate %40, %41 in 1 : vector<32x56xbf16>, vector<32x728xbf16> -> vector<32x784xbf16>
      %c0_15 = arith.constant 0 : index
      %c32 = arith.constant 32 : index
      %c0_16 = arith.constant 0 : index
      %43 = vector.load %arg4[%c0_15, %c32, %c0_16] : memref<2x224x784xbf16, #tpu.memory_space<vmem>>, vector<1x32x784xbf16>
      %44 = vector.shape_cast %43 : vector<1x32x784xbf16> to vector<32x784xbf16>
      %45 = vector.shape_cast %42 : vector<32x784xbf16> to vector<1x32x784xbf16>
      tpu.vector_store %arg4[%c0_15, %c32, %c0_16], %45 {strides = array<i32>} : memref<2x224x784xbf16, #tpu.memory_space<vmem>>, vector<1x32x784xbf16>,
      %cst_17 = arith.constant 0.000000e+00 : bf16
      %46 = vector.broadcast %cst_17 : bf16 to vector<32x28xbf16>
      %47 = vector.extract_strided_slice %33 {offsets = [0, 0], sizes = [32, 756], strides = [1, 1]} : vector<32x784xbf16> to vector<32x756xbf16>
      %48 = tpu.concatenate %46, %47 in 1 : vector<32x28xbf16>, vector<32x756xbf16> -> vector<32x784xbf16>
      %c0_18 = arith.constant 0 : index
      %c64 = arith.constant 64 : index
      %c0_19 = arith.constant 0 : index
      %49 = vector.load %arg4[%c0_18, %c64, %c0_19] : memref<2x224x784xbf16, #tpu.memory_space<vmem>>, vector<1x32x784xbf16>
      %50 = vector.shape_cast %49 : vector<1x32x784xbf16> to vector<32x784xbf16>
      %51 = vector.shape_cast %48 : vector<32x784xbf16> to vector<1x32x784xbf16>
      tpu.vector_store %arg4[%c0_18, %c64, %c0_19], %51 {strides = array<i32>} : memref<2x224x784xbf16, #tpu.memory_space<vmem>>, vector<1x32x784xbf16>,
      %c0_20 = arith.constant 0 : index
      %c96 = arith.constant 96 : index
      %c0_21 = arith.constant 0 : index
      %52 = vector.load %arg4[%c0_20, %c96, %c0_21] : memref<2x224x784xbf16, #tpu.memory_space<vmem>>, vector<1x32x784xbf16>
      %53 = vector.shape_cast %52 : vector<1x32x784xbf16> to vector<32x784xbf16>
      %54 = vector.shape_cast %33 : vector<32x784xbf16> to vector<1x32x784xbf16>
      tpu.vector_store %arg4[%c0_20, %c96, %c0_21], %54 {strides = array<i32>} : memref<2x224x784xbf16, #tpu.memory_space<vmem>>, vector<1x32x784xbf16>,
      %cst_22 = arith.constant 0.000000e+00 : bf16
      %55 = vector.broadcast %cst_22 : bf16 to vector<32x28xbf16>
      %56 = vector.extract_strided_slice %33 {offsets = [0, 28], sizes = [32, 756], strides = [1, 1]} : vector<32x784xbf16> to vector<32x756xbf16>
      %57 = tpu.concatenate %56, %55 in 1 : vector<32x756xbf16>, vector<32x28xbf16> -> vector<32x784xbf16>
      %c0_23 = arith.constant 0 : index
      %c128 = arith.constant 128 : index
      %c0_24 = arith.constant 0 : index
      %58 = vector.load %arg4[%c0_23, %c128, %c0_24] : memref<2x224x784xbf16, #tpu.memory_space<vmem>>, vector<1x32x784xbf16>
      %59 = vector.shape_cast %58 : vector<1x32x784xbf16> to vector<32x784xbf16>
      %60 = vector.shape_cast %57 : vector<32x784xbf16> to vector<1x32x784xbf16>
      tpu.vector_store %arg4[%c0_23, %c128, %c0_24], %60 {strides = array<i32>} : memref<2x224x784xbf16, #tpu.memory_space<vmem>>, vector<1x32x784xbf16>,
      %cst_25 = arith.constant 0.000000e+00 : bf16
      %61 = vector.broadcast %cst_25 : bf16 to vector<32x56xbf16>
      %62 = vector.extract_strided_slice %33 {offsets = [0, 56], sizes = [32, 728], strides = [1, 1]} : vector<32x784xbf16> to vector<32x728xbf16>
      %63 = tpu.concatenate %62, %61 in 1 : vector<32x728xbf16>, vector<32x56xbf16> -> vector<32x784xbf16>
      %c0_26 = arith.constant 0 : index
      %c160 = arith.constant 160 : index
      %c0_27 = arith.constant 0 : index
      %64 = vector.load %arg4[%c0_26, %c160, %c0_27] : memref<2x224x784xbf16, #tpu.memory_space<vmem>>, vector<1x32x784xbf16>
      %65 = vector.shape_cast %64 : vector<1x32x784xbf16> to vector<32x784xbf16>
      %66 = vector.shape_cast %63 : vector<32x784xbf16> to vector<1x32x784xbf16>
      tpu.vector_store %arg4[%c0_26, %c160, %c0_27], %66 {strides = array<i32>} : memref<2x224x784xbf16, #tpu.memory_space<vmem>>, vector<1x32x784xbf16>,
      %cst_28 = arith.constant 0.000000e+00 : bf16
      %67 = vector.broadcast %cst_28 : bf16 to vector<32x84xbf16>
      %68 = vector.extract_strided_slice %33 {offsets = [0, 84], sizes = [32, 700], strides = [1, 1]} : vector<32x784xbf16> to vector<32x700xbf16>
      %69 = tpu.concatenate %68, %67 in 1 : vector<32x700xbf16>, vector<32x84xbf16> -> vector<32x784xbf16>
      %c0_29 = arith.constant 0 : index
      %c192 = arith.constant 192 : index
      %c0_30 = arith.constant 0 : index
      %70 = vector.load %arg4[%c0_29, %c192, %c0_30] : memref<2x224x784xbf16, #tpu.memory_space<vmem>>, vector<1x32x784xbf16>
      %71 = vector.shape_cast %70 : vector<1x32x784xbf16> to vector<32x784xbf16>
      %72 = vector.shape_cast %69 : vector<32x784xbf16> to vector<1x32x784xbf16>
      tpu.vector_store %arg4[%c0_29, %c192, %c0_30], %72 {strides = array<i32>} : memref<2x224x784xbf16, #tpu.memory_space<vmem>>, vector<1x32x784xbf16>,
      %c0_31 = arith.constant 0 : index
      %c0_32 = arith.constant 0 : index
      %c0_33 = arith.constant 0 : index
      %73 = vector.load %arg4[%c0_31, %c0_32, %c0_33] : memref<2x224x784xbf16, #tpu.memory_space<vmem>>, vector<1x224x784xbf16>
      %74 = vector.shape_cast %73 : vector<1x224x784xbf16> to vector<224x784xbf16>
      %cst_34 = arith.constant dense<0.000000e+00> : vector<128x784xf32>
      %75 = tpu.matmul %0, %74, %cst_34 {dimension_numbers = #tpu.dot_dimension_numbers<[1], [0], [0], [1], [0, 0, 1, 1], [], []>} : vector<128x224xbf16>, vector<224x784xbf16>, vector<128x784xf32> -> vector<128x784xf32>
      %76 = arith.index_cast %22 : i32 to index
      %c0_35 = arith.constant 0 : index
      %c0_36 = arith.constant 0 : index
      %77 = vector.load %arg3[%76, %c0_35, %c0_36] : memref<16x128x784xf32, #tpu.memory_space<vmem>>, vector<1x128x784xf32>
      %78 = vector.shape_cast %77 : vector<1x128x784xf32> to vector<128x784xf32>
      %79 = vector.shape_cast %75 : vector<128x784xf32> to vector<1x128x784xf32>
      tpu.vector_store %arg3[%76, %c0_35, %c0_36], %79 {strides = array<i32>} : memref<16x128x784xf32, #tpu.memory_space<vmem>>, vector<1x128x784xf32>,
      %c2_i32_37 = arith.constant 2 : i32
      %80 = arith.muli %arg5, %c2_i32_37 : i32
      %c1_i32_38 = arith.constant 1 : i32
      %81 = arith.addi %80, %c1_i32_38 : i32
      %82 = arith.index_cast %81 : i32 to index
      %c0_39 = arith.constant 0 : index
      %c0_40 = arith.constant 0 : index
      %83 = vector.load %arg1[%82, %c0_39, %c0_40] : memref<16x32x784xf32, #tpu.memory_space<vmem>>, vector<1x32x784xf32>
      %84 = vector.shape_cast %83 : vector<1x32x784xf32> to vector<32x784xf32>
      %85 = arith.truncf %84 : vector<32x784xf32> to vector<32x784xbf16>
      %86 = vector.extract_strided_slice %85 {offsets = [0, 783], sizes = [32, 1], strides = [1, 1]} : vector<32x784xbf16> to vector<32x1xbf16>
      %87 = vector.extract_strided_slice %85 {offsets = [0, 0], sizes = [32, 783], strides = [1, 1]} : vector<32x784xbf16> to vector<32x783xbf16>
      %88 = tpu.concatenate %86, %87 in 1 : vector<32x1xbf16>, vector<32x783xbf16> -> vector<32x784xbf16>
      %89 = vector.extract_strided_slice %85 {offsets = [0, 755], sizes = [32, 29], strides = [1, 1]} : vector<32x784xbf16> to vector<32x29xbf16>
      %90 = vector.extract_strided_slice %85 {offsets = [0, 0], sizes = [32, 755], strides = [1, 1]} : vector<32x784xbf16> to vector<32x755xbf16>
      %91 = tpu.concatenate %89, %90 in 1 : vector<32x29xbf16>, vector<32x755xbf16> -> vector<32x784xbf16>
      %92 = arith.select %19, %88, %91 : vector<32x784xi1>, vector<32x784xbf16>
      %cst_41 = arith.constant 0.000000e+00 : bf16
      %93 = vector.broadcast %cst_41 : bf16 to vector<32x84xbf16>
      %94 = vector.extract_strided_slice %92 {offsets = [0, 0], sizes = [32, 700], strides = [1, 1]} : vector<32x784xbf16> to vector<32x700xbf16>
      %95 = tpu.concatenate %93, %94 in 1 : vector<32x84xbf16>, vector<32x700xbf16> -> vector<32x784xbf16>
      %c1 = arith.constant 1 : index
      %c0_42 = arith.constant 0 : index
      %c0_43 = arith.constant 0 : index
      %96 = vector.load %arg4[%c1, %c0_42, %c0_43] : memref<2x224x784xbf16, #tpu.memory_space<vmem>>, vector<1x32x784xbf16>
      %97 = vector.shape_cast %96 : vector<1x32x784xbf16> to vector<32x784xbf16>
      %98 = vector.shape_cast %95 : vector<32x784xbf16> to vector<1x32x784xbf16>
      tpu.vector_store %arg4[%c1, %c0_42, %c0_43], %98 {strides = array<i32>} : memref<2x224x784xbf16, #tpu.memory_space<vmem>>, vector<1x32x784xbf16>,
      %cst_44 = arith.constant 0.000000e+00 : bf16
      %99 = vector.broadcast %cst_44 : bf16 to vector<32x56xbf16>
      %100 = vector.extract_strided_slice %92 {offsets = [0, 0], sizes = [32, 728], strides = [1, 1]} : vector<32x784xbf16> to vector<32x728xbf16>
      %101 = tpu.concatenate %99, %100 in 1 : vector<32x56xbf16>, vector<32x728xbf16> -> vector<32x784xbf16>
      %c1_45 = arith.constant 1 : index
      %c32_46 = arith.constant 32 : index
      %c0_47 = arith.constant 0 : index
      %102 = vector.load %arg4[%c1_45, %c32_46, %c0_47] : memref<2x224x784xbf16, #tpu.memory_space<vmem>>, vector<1x32x784xbf16>
      %103 = vector.shape_cast %102 : vector<1x32x784xbf16> to vector<32x784xbf16>
      %104 = vector.shape_cast %101 : vector<32x784xbf16> to vector<1x32x784xbf16>
      tpu.vector_store %arg4[%c1_45, %c32_46, %c0_47], %104 {strides = array<i32>} : memref<2x224x784xbf16, #tpu.memory_space<vmem>>, vector<1x32x784xbf16>,
      %cst_48 = arith.constant 0.000000e+00 : bf16
      %105 = vector.broadcast %cst_48 : bf16 to vector<32x28xbf16>
      %106 = vector.extract_strided_slice %92 {offsets = [0, 0], sizes = [32, 756], strides = [1, 1]} : vector<32x784xbf16> to vector<32x756xbf16>
      %107 = tpu.concatenate %105, %106 in 1 : vector<32x28xbf16>, vector<32x756xbf16> -> vector<32x784xbf16>
      %c1_49 = arith.constant 1 : index
      %c64_50 = arith.constant 64 : index
      %c0_51 = arith.constant 0 : index
      %108 = vector.load %arg4[%c1_49, %c64_50, %c0_51] : memref<2x224x784xbf16, #tpu.memory_space<vmem>>, vector<1x32x784xbf16>
      %109 = vector.shape_cast %108 : vector<1x32x784xbf16> to vector<32x784xbf16>
      %110 = vector.shape_cast %107 : vector<32x784xbf16> to vector<1x32x784xbf16>
      tpu.vector_store %arg4[%c1_49, %c64_50, %c0_51], %110 {strides = array<i32>} : memref<2x224x784xbf16, #tpu.memory_space<vmem>>, vector<1x32x784xbf16>,
      %c1_52 = arith.constant 1 : index
      %c96_53 = arith.constant 96 : index
      %c0_54 = arith.constant 0 : index
      %111 = vector.load %arg4[%c1_52, %c96_53, %c0_54] : memref<2x224x784xbf16, #tpu.memory_space<vmem>>, vector<1x32x784xbf16>
      %112 = vector.shape_cast %111 : vector<1x32x784xbf16> to vector<32x784xbf16>
      %113 = vector.shape_cast %92 : vector<32x784xbf16> to vector<1x32x784xbf16>
      tpu.vector_store %arg4[%c1_52, %c96_53, %c0_54], %113 {strides = array<i32>} : memref<2x224x784xbf16, #tpu.memory_space<vmem>>, vector<1x32x784xbf16>,
      %cst_55 = arith.constant 0.000000e+00 : bf16
      %114 = vector.broadcast %cst_55 : bf16 to vector<32x28xbf16>
      %115 = vector.extract_strided_slice %92 {offsets = [0, 28], sizes = [32, 756], strides = [1, 1]} : vector<32x784xbf16> to vector<32x756xbf16>
      %116 = tpu.concatenate %115, %114 in 1 : vector<32x756xbf16>, vector<32x28xbf16> -> vector<32x784xbf16>
      %c1_56 = arith.constant 1 : index
      %c128_57 = arith.constant 128 : index
      %c0_58 = arith.constant 0 : index
      %117 = vector.load %arg4[%c1_56, %c128_57, %c0_58] : memref<2x224x784xbf16, #tpu.memory_space<vmem>>, vector<1x32x784xbf16>
      %118 = vector.shape_cast %117 : vector<1x32x784xbf16> to vector<32x784xbf16>
      %119 = vector.shape_cast %116 : vector<32x784xbf16> to vector<1x32x784xbf16>
      tpu.vector_store %arg4[%c1_56, %c128_57, %c0_58], %119 {strides = array<i32>} : memref<2x224x784xbf16, #tpu.memory_space<vmem>>, vector<1x32x784xbf16>,
      %cst_59 = arith.constant 0.000000e+00 : bf16
      %120 = vector.broadcast %cst_59 : bf16 to vector<32x56xbf16>
      %121 = vector.extract_strided_slice %92 {offsets = [0, 56], sizes = [32, 728], strides = [1, 1]} : vector<32x784xbf16> to vector<32x728xbf16>
      %122 = tpu.concatenate %121, %120 in 1 : vector<32x728xbf16>, vector<32x56xbf16> -> vector<32x784xbf16>
      %c1_60 = arith.constant 1 : index
      %c160_61 = arith.constant 160 : index
      %c0_62 = arith.constant 0 : index
      %123 = vector.load %arg4[%c1_60, %c160_61, %c0_62] : memref<2x224x784xbf16, #tpu.memory_space<vmem>>, vector<1x32x784xbf16>
      %124 = vector.shape_cast %123 : vector<1x32x784xbf16> to vector<32x784xbf16>
      %125 = vector.shape_cast %122 : vector<32x784xbf16> to vector<1x32x784xbf16>
      tpu.vector_store %arg4[%c1_60, %c160_61, %c0_62], %125 {strides = array<i32>} : memref<2x224x784xbf16, #tpu.memory_space<vmem>>, vector<1x32x784xbf16>,
      %cst_63 = arith.constant 0.000000e+00 : bf16
      %126 = vector.broadcast %cst_63 : bf16 to vector<32x84xbf16>
      %127 = vector.extract_strided_slice %92 {offsets = [0, 84], sizes = [32, 700], strides = [1, 1]} : vector<32x784xbf16> to vector<32x700xbf16>
      %128 = tpu.concatenate %127, %126 in 1 : vector<32x700xbf16>, vector<32x84xbf16> -> vector<32x784xbf16>
      %c1_64 = arith.constant 1 : index
      %c192_65 = arith.constant 192 : index
      %c0_66 = arith.constant 0 : index
      %129 = vector.load %arg4[%c1_64, %c192_65, %c0_66] : memref<2x224x784xbf16, #tpu.memory_space<vmem>>, vector<1x32x784xbf16>
      %130 = vector.shape_cast %129 : vector<1x32x784xbf16> to vector<32x784xbf16>
      %131 = vector.shape_cast %128 : vector<32x784xbf16> to vector<1x32x784xbf16>
      tpu.vector_store %arg4[%c1_64, %c192_65, %c0_66], %131 {strides = array<i32>} : memref<2x224x784xbf16, #tpu.memory_space<vmem>>, vector<1x32x784xbf16>,
      %c1_67 = arith.constant 1 : index
      %c0_68 = arith.constant 0 : index
      %c0_69 = arith.constant 0 : index
      %132 = vector.load %arg4[%c1_67, %c0_68, %c0_69] : memref<2x224x784xbf16, #tpu.memory_space<vmem>>, vector<1x224x784xbf16>
      %133 = vector.shape_cast %132 : vector<1x224x784xbf16> to vector<224x784xbf16>
      %cst_70 = arith.constant dense<0.000000e+00> : vector<128x784xf32>
      %134 = tpu.matmul %0, %133, %cst_70 {dimension_numbers = #tpu.dot_dimension_numbers<[1], [0], [0], [1], [0, 0, 1, 1], [], []>} : vector<128x224xbf16>, vector<224x784xbf16>, vector<128x784xf32> -> vector<128x784xf32>
      %135 = arith.index_cast %81 : i32 to index
      %c0_71 = arith.constant 0 : index
      %c0_72 = arith.constant 0 : index
      %136 = vector.load %arg3[%135, %c0_71, %c0_72] : memref<16x128x784xf32, #tpu.memory_space<vmem>>, vector<1x128x784xf32>
      %137 = vector.shape_cast %136 : vector<1x128x784xf32> to vector<128x784xf32>
      %138 = vector.shape_cast %134 : vector<128x784xf32> to vector<1x128x784xf32>
      tpu.vector_store %arg3[%135, %c0_71, %c0_72], %138 {strides = array<i32>} : memref<16x128x784xf32, #tpu.memory_space<vmem>>, vector<1x128x784xf32>,
    }
    %c8_i32_7 = arith.constant 8 : i32
    return
  }
  func.func @transform_0(%arg0: i32) -> (i32, i32, i32) {
    %c0_i32 = arith.constant 0 : i32
    %c0_i32_0 = arith.constant 0 : i32
    %c0_i32_1 = arith.constant 0 : i32
    return %arg0, %c0_i32, %c0_i32_0 : i32, i32, i32
  }
  func.func @transform_1(%arg0: i32) -> (i32, i32) {
    %c0_i32 = arith.constant 0 : i32
    %c0_i32_0 = arith.constant 0 : i32
    %c0_i32_1 = arith.constant 0 : i32
    return %c0_i32, %c0_i32_0 : i32, i32
  }
  func.func @transform_2(%arg0: i32) -> (i32, i32, i32) {
    %c0_i32 = arith.constant 0 : i32
    %c0_i32_0 = arith.constant 0 : i32
    %c0_i32_1 = arith.constant 0 : i32
    return %arg0, %c0_i32, %c0_i32_0 : i32, i32, i32
  }
}

</mosaic_0001>

<llo_original>
// kernel: kernel_generated_4_forward.1
$region0: #{kernel_generated_4_forward.1}
  #allocation0 [shape = 'u32[]', space=smem, size = 0x4, offset = 0x4, fixed_abs, tag = 'smem constant byte address 0x4 - core index']
  #allocation1 [shape = 'u32[144,128]{1,0:T(1,128)}', space=vmem, size = 0x12000, scoped, tag = 'internal scratch']
  #allocation2 [shape = 'bf16[2,224,784]{2,1,0:T(8,128)(2,1)}', space=vmem, size = 0xc4000, scoped, tag = 'scratch operand']
  %s0 = inlined_call_operand.vmem [shape: f32[256,32,784], index: 0, kind: input, shape index: {}]
  %s1 = inlined_call_operand.vmem [shape: bf16[128,224], index: 1, kind: input, shape index: {}]
  %s2 = inlined_call_operand.hbm [shape: f32[256,128,784], index: 2, kind: output, shape index: {}]
  %s3 = sld [smem:[#allocation0]]
  $region48: #{kernel_generated_4_forward.1} parent=0
    _
  %s5 = ssub.s32 1, %s3
  %s6 = scalar_select 0, %s5, %s3
  $region1: #{kernel_generated_4_forward.1} parent=0
    #allocation3 [shape = 'u8[14680064]{0}', space=vmem, size = 0xe00000, scoped, tag = 'output window, operand 0']
    #allocation4 [shape = 's32[2]{0}', space=sflag, size = 0x8, scoped, tag = 'scoped memory for kernel_generated_4_forward.1']
    %7 = vsyncpa [#allocation4], 0
    %s8 = scalar_lea.sflag [#allocation4], 1
    %9 = vsyncpa %s8, 0
    loop: start=0, step=1, limit=18
    $region2: #{kernel_generated_4_forward.1} parent=1 // loop_pre_header
      _
    $region3: #{kernel_generated_4_forward.1} parent=1 // loop_header
      %s11 = sphi 0, %s15
      %p12 = scmp.ge.s32.totalorder %s11, 18
      %s21 = sphi 0, %s23
      %s24 = sphi 0, %s21
      %s25 = sphi 0, %s24
      %s41 = sphi 0, %s25
      %s45 = sphi 0, %s45
      %s47 = sphi 0, %s45
      %s48 = sphi 0, %s47
      %s62 = sphi 0, %s48
      %s68 = sphi 0, %s70
      %s71 = sphi 0, %s68
      %s72 = sphi 0, %s71
      %s88 = sphi 0, %s72
    $region4: #{kernel_generated_4_forward.1} parent=1 // loop_header_branch
      %14 = sbr.rel (%p12) target = $region8
    $region5: #{kernel_generated_4_forward.1} parent=1 // loop_body
      %s16 = ssub.s32 %s11, 1
      %s17 = ssub.s32 %s11, 2
      %s18 = sadd.s32 %s11, 1
      %s19 = ssub.s32 %s11, %s18
      %p20 = scmp.eq.s32.totalorder %s19, 0
      %s22 = sadd.s32 %s21, 1
      %s23 = scalar_select %p20, %s21, %s22
      %p26 = pneg %p20
      %p27 = scmp.eq.s32.totalorder %s11, 15
      %p28 = por %p26, %p27
      %p29 = scmp.ne.s32.totalorder %s21, %s24
      %p30 = scmp.eq.s32.totalorder %s11, 0
      %p31 = por %p29, %p30
      %p32 = scmp.ne.s32.totalorder %s21, %s24
      %p33 = scmp.eq.s32.totalorder %s16, 15
      %p34 = por %p32, %p33
      %p35 = scmp.ne.s32.totalorder %s24, %s25
      %p36 = scmp.eq.s32.totalorder %s16, 0
      %p37 = por %p35, %p36
      %p38 = scmp.ne.s32.totalorder %s24, %s25
      %p39 = scmp.eq.s32.totalorder %s17, 15
      %p40 = por %p38, %p39
      %p42 = scmp.ne.s32.totalorder %s25, %s41
      %p43 = scmp.eq.s32.totalorder %s17, 0
      %p44 = por %p42, %p43
      %s46 = sadd.s32 %s45, 1
      %p49 = scmp.eq.s32.totalorder %s11, 15
      %p50 = scmp.ne.s32.totalorder %s45, %s47
      %p51 = scmp.eq.s32.totalorder %s11, 0
      %p52 = por %p50, %p51
      %p53 = scmp.ne.s32.totalorder %s45, %s47
      %p54 = scmp.eq.s32.totalorder %s16, 15
      %p55 = por %p53, %p54
      %p56 = scmp.ne.s32.totalorder %s47, %s48
      %p57 = scmp.eq.s32.totalorder %s16, 0
      %p58 = por %p56, %p57
      %p59 = scmp.ne.s32.totalorder %s47, %s48
      %p60 = scmp.eq.s32.totalorder %s17, 15
      %p61 = por %p59, %p60
      %p63 = scmp.ne.s32.totalorder %s48, %s62
      %p64 = scmp.eq.s32.totalorder %s17, 0
      %p65 = por %p63, %p64
      %s66 = ssub.s32 %s11, %s18
      %p67 = scmp.eq.s32.totalorder %s66, 0
      %s69 = sadd.s32 %s68, 1
      %s70 = scalar_select %p67, %s68, %s69
      %p73 = pneg %p67
      %p74 = scmp.eq.s32.totalorder %s11, 15
      %p75 = por %p73, %p74
      %p76 = scmp.ne.s32.totalorder %s68, %s71
      %p77 = scmp.eq.s32.totalorder %s11, 0
      %p78 = por %p76, %p77
      %p79 = scmp.ne.s32.totalorder %s68, %s71
      %p80 = scmp.eq.s32.totalorder %s16, 15
      %p81 = por %p79, %p80
      %p82 = scmp.ne.s32.totalorder %s71, %s72
      %p83 = scmp.eq.s32.totalorder %s16, 0
      %p84 = por %p82, %p83
      %p85 = scmp.ne.s32.totalorder %s71, %s72
      %p86 = scmp.eq.s32.totalorder %s17, 15
      %p87 = por %p85, %p86
      %p89 = scmp.ne.s32.totalorder %s72, %s88
      %p90 = scmp.eq.s32.totalorder %s17, 0
      %p91 = por %p89, %p90
      %p92 = scmp.le.s32.totalorder 1, %s11
      %p93 = scmp.lt.s32.totalorder %s11, 17
      %p94 = pnand %p92, %p93
      %p95 = pneg %p94
      // Predicated region
      $region9: #{kernel_generated_4_forward.1} parent=5 // pred_check
        _
      $region10: #{kernel_generated_4_forward.1} parent=5 // pred_check_branch
        %97 = sbr.rel (%p94) target = $region12
      $region11: #{kernel_generated_4_forward.1} parent=5 // pred_region
        %s98 = ssub.s32 %s11, 1
        // Predicated region
        $region13: #{kernel_generated_4_forward.1} parent=11 // pred_check
          %p99 = pneg %p58
        $region14: #{kernel_generated_4_forward.1} parent=11 // pred_check_branch
          %101 = sbr.rel (%p99) target = $region16
        $region15: #{kernel_generated_4_forward.1} parent=11 // pred_region
          _
        $region16: #{kernel_generated_4_forward.1} parent=11 // pred_fallthru
          _
      $region12: #{kernel_generated_4_forward.1} parent=5 // pred_fallthru
        _
      %p102 = scmp.lt.s32.totalorder %s11, 16
      // Predicated region
      $region17: #{kernel_generated_4_forward.1} parent=5 // pred_check
        %p103 = pneg %p102
      $region18: #{kernel_generated_4_forward.1} parent=5 // pred_check_branch
        %105 = sbr.rel (%p103) target = $region20
      $region19: #{kernel_generated_4_forward.1} parent=5 // pred_region
        // Predicated region
        $region21: #{kernel_generated_4_forward.1} parent=19 // pred_check
          %p106 = pneg %p31
        $region22: #{kernel_generated_4_forward.1} parent=19 // pred_check_branch
          %108 = sbr.rel (%p106) target = $region24
        $region23: #{kernel_generated_4_forward.1} parent=19 // pred_region
          %s109 = smul.u32 16, %s11
          %p110 = scmp.lt.s32.totalorder %s109, 255
          %s111 = scalar_select %p110, %s109, 255
          %s112 = smul.addr %s111, 28
          %s113 = smul.addr %s112, 8
          %s114 = scalar_lea.vmem %s0, %s113
          %s115 = smul.u32 16, %s11
        $region24: #{kernel_generated_4_forward.1} parent=19 // pred_fallthru
          _
      $region20: #{kernel_generated_4_forward.1} parent=5 // pred_fallthru
        _
      %p116 = scmp.le.s32.totalorder 1, %s11
      %p117 = scmp.lt.s32.totalorder %s11, 17
      %p118 = pnand %p116, %p117
      %p119 = pneg %p118
      // Predicated region
      $region25: #{kernel_generated_4_forward.1} parent=5 // pred_check
        _
      $region26: #{kernel_generated_4_forward.1} parent=5 // pred_check_branch
        %121 = sbr.rel (%p118) target = $region28
      $region27: #{kernel_generated_4_forward.1} parent=5 // pred_region
        %s122 = ssub.s32 %s11, 1
        %s123 = smul.u32 16, %s16
        %p124 = scmp.lt.s32.totalorder %s123, 255
        %s125 = scalar_select %p124, %s123, 255
        %s126 = smul.addr %s125, 28
        %s127 = smul.addr %s126, 8
        %s128 = scalar_lea.vmem %s0, %s127
        %p129 = pneg %p37
        %p130 = pneg %p34
        %p131 = pneg %p58
        %p132 = pneg %p55
        %p133 = pneg %p84
        %p134 = pneg %p81
        %s135 = sand.u32 %s71, 1
        %s136 = scalar_lea.sflag [#allocation4], %s135
        %s137 = sand.u32 %s71, 1
        %s138 = smul.addr %s137, 14336
        %s139 = scalar_lea.vmem [#allocation3], %s138
        %s140 = smul.u32 16, %s16
        %p141 = scmp.lt.s32.totalorder %s140, 255
        %s142 = scalar_select %p141, %s140, 255
        %s143 = smul.addr %s142, 28
        %s144 = smul.addr %s143, 8
        %s145 = scalar_lea.vmem %s0, %s144
        %s146 = smul.u32 16, %s16
        %s147 = smul.u32 16, %s16
        %v151 = vld [vmem:[%s1] sm:$0xff]
        %v152 = vld [vmem:[%s1 + $0x8] sm:$0xff]
        %v153 = vld [vmem:[%s1 + $0x10] sm:$0xff]
        %v154 = vld [vmem:[%s1 + $0x18] sm:$0xff]
        %v155 = vld [vmem:[%s1 + $0x20] sm:$0xff]
        %v156 = vld [vmem:[%s1 + $0x28] sm:$0xff]
        %v157 = vld [vmem:[%s1 + $0x30] sm:$0xff]
        %v158 = vld [vmem:[%s1 + $0x38] sm:$0xff]
        %v159 = vld [vmem:[%s1 + $0x40] sm:$0xff]
        %v160 = vld [vmem:[%s1 + $0x48] sm:$0xff]
        %v161 = vld [vmem:[%s1 + $0x50] sm:$0xff]
        %v162 = vld [vmem:[%s1 + $0x58] sm:$0xff]
        %v163 = vld [vmem:[%s1 + $0x60] sm:$0xff]
        %v164 = vld [vmem:[%s1 + $0x68] sm:$0xff]
        %v165 = vld [vmem:[%s1 + $0x70] sm:$0xff]
        %v166 = vld [vmem:[%s1 + $0x78] sm:$0xff]
        %v167 = vlaneseq
        %v168 = vand.u32 %v167, 127
        %v169 = vadd.s32 %v168, 128
        %v170 = vadd.s32 %v168, 256
        %v171 = vadd.s32 %v168, 384
        %v172 = vadd.s32 %v168, 512
        %v173 = vadd.s32 %v168, 640
        %v174 = vadd.s32 %v168, 768
        %vm175 = vcmp.lt.s32.totalorder %v168, 0
        %v176 = vsub.s32 0, %v168
        %v177 = vsel %vm175, %v176, %v168
        %v178 = vmul.u32.u64.compose %v177, 2454267026
        %v179 = vextract.low.u32 %v178
        %v180 = vextract.high.u32 %v178
        %vm181 = vc.u32 %v179, 2454267026
        %v182 = vsel %vm181, 1, 0
        %v183 = vadd.s32 %v180, %v182
        %v184 = vshrl.u32 %v183, 4
        %v185 = vmul.u32 %v184, 28
        %v186 = vsub.s32 %v177, %v185
        %v187 = vsub.s32 0, %v186
        %v188 = vsel %vm175, %v187, %v186
        %vm189 = vcmp.lt.s32.totalorder %v169, 0
        %v190 = vsub.s32 0, %v169
        %v191 = vsel %vm189, %v190, %v169
        %v192 = vmul.u32.u64.compose %v191, 2454267026
        %v193 = vextract.low.u32 %v192
        %v194 = vextract.high.u32 %v192
        %vm195 = vc.u32 %v193, 2454267026
        %v196 = vsel %vm195, 1, 0
        %v197 = vadd.s32 %v194, %v196
        %v198 = vshrl.u32 %v197, 4
        %v199 = vmul.u32 %v198, 28
        %v200 = vsub.s32 %v191, %v199
        %v201 = vsub.s32 0, %v200
        %v202 = vsel %vm189, %v201, %v200
        %vm203 = vcmp.lt.s32.totalorder %v170, 0
        %v204 = vsub.s32 0, %v170
        %v205 = vsel %vm203, %v204, %v170
        %v206 = vmul.u32.u64.compose %v205, 2454267026
        %v207 = vextract.low.u32 %v206
        %v208 = vextract.high.u32 %v206
        %vm209 = vc.u32 %v207, 2454267026
        %v210 = vsel %vm209, 1, 0
        %v211 = vadd.s32 %v208, %v210
        %v212 = vshrl.u32 %v211, 4
        %v213 = vmul.u32 %v212, 28
        %v214 = vsub.s32 %v205, %v213
        %v215 = vsub.s32 0, %v214
        %v216 = vsel %vm203, %v215, %v214
        %vm217 = vcmp.lt.s32.totalorder %v171, 0
        %v218 = vsub.s32 0, %v171
        %v219 = vsel %vm217, %v218, %v171
        %v220 = vmul.u32.u64.compose %v219, 2454267026
        %v221 = vextract.low.u32 %v220
        %v222 = vextract.high.u32 %v220
        %vm223 = vc.u32 %v221, 2454267026
        %v224 = vsel %vm223, 1, 0
        %v225 = vadd.s32 %v222, %v224
        %v226 = vshrl.u32 %v225, 4
        %v227 = vmul.u32 %v226, 28
        %v228 = vsub.s32 %v219, %v227
        %v229 = vsub.s32 0, %v228
        %v230 = vsel %vm217, %v229, %v228
        %vm231 = vcmp.lt.s32.totalorder %v172, 0
        %v232 = vsub.s32 0, %v172
        %v233 = vsel %vm231, %v232, %v172
        %v234 = vmul.u32.u64.compose %v233, 2454267026
        %v235 = vextract.low.u32 %v234
        %v236 = vextract.high.u32 %v234
        %vm237 = vc.u32 %v235, 2454267026
        %v238 = vsel %vm237, 1, 0
        %v239 = vadd.s32 %v236, %v238
        %v240 = vshrl.u32 %v239, 4
        %v241 = vmul.u32 %v240, 28
        %v242 = vsub.s32 %v233, %v241
        %v243 = vsub.s32 0, %v242
        %v244 = vsel %vm231, %v243, %v242
        %vm245 = vcmp.lt.s32.totalorder %v173, 0
        %v246 = vsub.s32 0, %v173
        %v247 = vsel %vm245, %v246, %v173
        %v248 = vmul.u32.u64.compose %v247, 2454267026
        %v249 = vextract.low.u32 %v248
        %v250 = vextract.high.u32 %v248
        %vm251 = vc.u32 %v249, 2454267026
        %v252 = vsel %vm251, 1, 0
        %v253 = vadd.s32 %v250, %v252
        %v254 = vshrl.u32 %v253, 4
        %v255 = vmul.u32 %v254, 28
        %v256 = vsub.s32 %v247, %v255
        %v257 = vsub.s32 0, %v256
        %v258 = vsel %vm245, %v257, %v256
        %vm259 = vcmp.lt.s32.totalorder %v174, 0
        %v260 = vsub.s32 0, %v174
        %v261 = vsel %vm259, %v260, %v174
        %v262 = vmul.u32.u64.compose %v261, 2454267026
        %v263 = vextract.low.u32 %v262
        %v264 = vextract.high.u32 %v262
        %vm265 = vc.u32 %v263, 2454267026
        %v266 = vsel %vm265, 1, 0
        %v267 = vadd.s32 %v264, %v266
        %v268 = vshrl.u32 %v267, 4
        %v269 = vmul.u32 %v268, 28
        %v270 = vsub.s32 %v261, %v269
        %v271 = vsub.s32 0, %v270
        %v272 = vsel %vm259, %v271, %v270
        %vm273 = vcmp.ne.s32.totalorder %v188, 0
        %vm274 = vcmp.ne.s32.totalorder %v202, 0
        %vm275 = vcmp.ne.s32.totalorder %v216, 0
        %vm276 = vcmp.ne.s32.totalorder %v230, 0
        %vm277 = vcmp.ne.s32.totalorder %v244, 0
        %vm278 = vcmp.ne.s32.totalorder %v258, 0
        %vm279 = vcmp.ne.s32.totalorder %v272, 0
        %vm280 = vcmp.lt.s32.totalorder %v188, 0
        %vm281 = vcmp.lt.s32.totalorder %v202, 0
        %vm282 = vcmp.lt.s32.totalorder %v216, 0
        %vm283 = vcmp.lt.s32.totalorder %v230, 0
        %vm284 = vcmp.lt.s32.totalorder %v244, 0
        %vm285 = vcmp.lt.s32.totalorder %v258, 0
        %vm286 = vcmp.lt.s32.totalorder %v272, 0
        %vm287 = vmand %vm280, %vm273
        %vm288 = vmand %vm281, %vm274
        %vm289 = vmand %vm282, %vm275
        %vm290 = vmand %vm283, %vm276
        %vm291 = vmand %vm284, %vm277
        %vm292 = vmand %vm285, %vm278
        %vm293 = vmand %vm286, %vm279
        %v294 = vadd.s32 %v188, 28
        %v295 = vadd.s32 %v202, 28
        %v296 = vadd.s32 %v216, 28
        %v297 = vadd.s32 %v230, 28
        %v298 = vadd.s32 %v244, 28
        %v299 = vadd.s32 %v258, 28
        %v300 = vadd.s32 %v272, 28
        %v301 = vsel %vm287, %v294, %v188
        %v302 = vsel %vm288, %v295, %v202
        %v303 = vsel %vm289, %v296, %v216
        %v304 = vsel %vm290, %v297, %v230
        %v305 = vsel %vm291, %v298, %v244
        %v306 = vsel %vm292, %v299, %v258
        %v307 = vsel %vm293, %v300, %v272
        %vm308 = vcmp.eq.s32.totalorder %v301, 0
        %vm309 = vcmp.eq.s32.totalorder %v302, 0
        %vm310 = vcmp.eq.s32.totalorder %v303, 0
        %vm311 = vcmp.eq.s32.totalorder %v304, 0
        %vm312 = vcmp.eq.s32.totalorder %v305, 0
        %vm313 = vcmp.eq.s32.totalorder %v306, 0
        %vm314 = vcmp.eq.s32.totalorder %v307, 0
        loop: start=0, step=1, limit=8
        $region29: #{kernel_generated_4_forward.1} parent=27 // loop_pre_header
          _
        $region30: #{kernel_generated_4_forward.1} parent=27 // loop_header
          %s316 = sphi 0, %s320
          %p317 = scmp.ge.s32.totalorder %s316, 8
        $region31: #{kernel_generated_4_forward.1} parent=27 // loop_header_branch
          %319 = sbr.rel (%p317) target = $region35
        $region32: #{kernel_generated_4_forward.1} parent=27 // loop_body
          %s321 = smul.u32 %s316, 2
          %s322 = smul.u32 %s321, 28
          %s323 = smul.addr %s322, 8
          %s324 = scalar_lea.vmem %s145, %s323
          %v325 = vld [vmem:[%s324] sm:$0xff]
          %v326 = vld [vmem:[%s324 + $0x8] sm:$0xff]
          %v327 = vld [vmem:[%s324 + $0x10] sm:$0xff]
          %v328 = vld [vmem:[%s324 + $0x18] sm:$0xff]
          %v329 = vld [vmem:[%s324 + $0x20] sm:$0xff]
          %v330 = vld [vmem:[%s324 + $0x28] sm:$0xff]
          %v331 = vld [vmem:[%s324 + $0x30] sm:$0xff]
          %v332 = vld [vmem:[%s324 + $0x38] sm:$0xff]
          %v333 = vld [vmem:[%s324 + $0x40] sm:$0xff]
          %v334 = vld [vmem:[%s324 + $0x48] sm:$0xff]
          %v335 = vld [vmem:[%s324 + $0x50] sm:$0xff]
          %v336 = vld [vmem:[%s324 + $0x58] sm:$0xff]
          %v337 = vld [vmem:[%s324 + $0x60] sm:$0xff]
          %v338 = vld [vmem:[%s324 + $0x68] sm:$0xff]
          %v339 = vld [vmem:[%s324 + $0x70] sm:$0xff]
          %v340 = vld [vmem:[%s324 + $0x78] sm:$0xff]
          %v341 = vld [vmem:[%s324 + $0x80] sm:$0xff]
          %v342 = vld [vmem:[%s324 + $0x88] sm:$0xff]
          %v343 = vld [vmem:[%s324 + $0x90] sm:$0xff]
          %v344 = vld [vmem:[%s324 + $0x98] sm:$0xff]
          %v345 = vld [vmem:[%s324 + $0xa0] sm:$0xff]
          %v346 = vld [vmem:[%s324 + $0xa8] sm:$0xff]
          %v347 = vld [vmem:[%s324 + $0xb0] sm:$0xff]
          %v348 = vld [vmem:[%s324 + $0xb8] sm:$0xff]
          %v349 = vld [vmem:[%s324 + $0xc0] sm:$0xff]
          %v350 = vld [vmem:[%s324 + $0xc8] sm:$0xff]
          %v351 = vld [vmem:[%s324 + $0xd0] sm:$0xff]
          %v352 = vld [vmem:[%s324 + $0xd8] sm:$0xff]
          %v353 = vpack.c.bf16 %v332, %v325
          %v354 = vpack.c.bf16 %v333, %v326
          %v355 = vpack.c.bf16 %v334, %v327
          %v356 = vpack.c.bf16 %v335, %v328
          %v357 = vpack.c.bf16 %v336, %v329
          %v358 = vpack.c.bf16 %v337, %v330
          %v359 = vpack.c.bf16 %v338, %v331
          %v360 = vpack.c.bf16 %v346, %v339
          %v361 = vpack.c.bf16 %v347, %v340
          %v362 = vpack.c.bf16 %v348, %v341
          %v363 = vpack.c.bf16 %v349, %v342
          %v364 = vpack.c.bf16 %v350, %v343
          %v365 = vpack.c.bf16 %v351, %v344
          %v366 = vpack.c.bf16 %v352, %v345
          %369 = vrot.lane.b32.xlu0 %v359, 113
          %v370 = vpop.permute.xlu0 %369
          %371 = vrot.lane.b32.xlu0 %v366, 113
          %v372 = vpop.permute.xlu0 %371
          %385 = vrot.lane.b32.xlu0 %v353, 1
          %v386 = vpop.permute.xlu0 %385
          %387 = vrot.lane.b32.xlu0 %v354, 1
          %v388 = vpop.permute.xlu0 %387
          %389 = vrot.lane.b32.xlu0 %v355, 1
          %v390 = vpop.permute.xlu0 %389
          %391 = vrot.lane.b32.xlu0 %v356, 1
          %v392 = vpop.permute.xlu0 %391
          %393 = vrot.lane.b32.xlu0 %v357, 1
          %v394 = vpop.permute.xlu0 %393
          %395 = vrot.lane.b32.xlu0 %v358, 1
          %v396 = vpop.permute.xlu0 %395
          %397 = vrot.lane.b32.xlu0 %v359, 1
          %v398 = vpop.permute.xlu0 %397
          %399 = vrot.lane.b32.xlu0 %v360, 1
          %v400 = vpop.permute.xlu0 %399
          %401 = vrot.lane.b32.xlu0 %v361, 1
          %v402 = vpop.permute.xlu0 %401
          %403 = vrot.lane.b32.xlu0 %v362, 1
          %v404 = vpop.permute.xlu0 %403
          %405 = vrot.lane.b32.xlu0 %v363, 1
          %v406 = vpop.permute.xlu0 %405
          %407 = vrot.lane.b32.xlu0 %v364, 1
          %v408 = vpop.permute.xlu0 %407
          %409 = vrot.lane.b32.xlu0 %v365, 1
          %v410 = vpop.permute.xlu0 %409
          %411 = vrot.lane.b32.xlu0 %v366, 1
          %v412 = vpop.permute.xlu0 %411
          %vm413 = vcmask 7168
          %v414 = vsel %vm413, %v386, %v388
          %v415 = vsel %vm413, %v388, %v390
          %v416 = vsel %vm413, %v390, %v392
          %v417 = vsel %vm413, %v392, %v394
          %v418 = vsel %vm413, %v394, %v396
          %v419 = vsel %vm413, %v396, %v398
          %v420 = vsel %vm413, %v400, %v402
          %v421 = vsel %vm413, %v402, %v404
          %v422 = vsel %vm413, %v404, %v406
          %v423 = vsel %vm413, %v406, %v408
          %v424 = vsel %vm413, %v408, %v410
          %v425 = vsel %vm413, %v410, %v412
          %vm438 = vcmask 7168
          %v441 = vsel %vm438, %v370, %v386
          %v445 = vsel %vm438, %v372, %v400
          %447 = vrot.lane.b32.xlu0 %v358, 13
          %v448 = vpop.permute.xlu0 %447
          %449 = vrot.lane.b32.xlu0 %v359, 13
          %v450 = vpop.permute.xlu0 %449
          %451 = vrot.lane.b32.xlu0 %v365, 13
          %v452 = vpop.permute.xlu0 %451
          %453 = vrot.lane.b32.xlu0 %v366, 13
          %v454 = vpop.permute.xlu0 %453
          %vm455 = vcmask 105472
          %v456 = vsel %vm455, %v448, %v450
          %v457 = vsel %vm455, %v452, %v454
          %458 = vrot.lane.b32.xlu0 %v353, 29
          %v459 = vpop.permute.xlu0 %458
          %460 = vrot.lane.b32.xlu0 %v354, 29
          %v461 = vpop.permute.xlu0 %460
          %462 = vrot.lane.b32.xlu0 %v355, 29
          %v463 = vpop.permute.xlu0 %462
          %464 = vrot.lane.b32.xlu0 %v356, 29
          %v465 = vpop.permute.xlu0 %464
          %466 = vrot.lane.b32.xlu0 %v357, 29
          %v467 = vpop.permute.xlu0 %466
          %468 = vrot.lane.b32.xlu0 %v358, 29
          %v469 = vpop.permute.xlu0 %468
          %470 = vrot.lane.b32.xlu0 %v360, 29
          %v471 = vpop.permute.xlu0 %470
          %472 = vrot.lane.b32.xlu0 %v361, 29
          %v473 = vpop.permute.xlu0 %472
          %474 = vrot.lane.b32.xlu0 %v362, 29
          %v475 = vpop.permute.xlu0 %474
          %476 = vrot.lane.b32.xlu0 %v363, 29
          %v477 = vpop.permute.xlu0 %476
          %478 = vrot.lane.b32.xlu0 %v364, 29
          %v479 = vpop.permute.xlu0 %478
          %480 = vrot.lane.b32.xlu0 %v365, 29
          %v481 = vpop.permute.xlu0 %480
          %vm482 = vcmask 236544
          %v483 = vsel %vm482, %v459, %v461
          %v484 = vsel %vm482, %v461, %v463
          %v485 = vsel %vm482, %v463, %v465
          %v486 = vsel %vm482, %v465, %v467
          %v487 = vsel %vm482, %v467, %v469
          %v488 = vsel %vm482, %v471, %v473
          %v489 = vsel %vm482, %v473, %v475
          %v490 = vsel %vm482, %v475, %v477
          %v491 = vsel %vm482, %v477, %v479
          %v492 = vsel %vm482, %v479, %v481
          %vm505 = vcmask 236544
          %v508 = vsel %vm505, %v456, %v459
          %v512 = vsel %vm505, %v457, %v471
          %vm514 = vmpackc.low %vm309, %vm308
          %vm515 = vmpackc.low %vm311, %vm310
          %vm516 = vmpackc.low %vm313, %vm312
          %vm517 = vmpackc.low %vm314, %vm314
          %v518 = vsel %vm514, 65537, 0
          %v519 = vsel %vm515, 65537, 0
          %v520 = vsel %vm516, 65537, 0
          %v521 = vsel %vm517, 65537, 0
          %v522 = vlaneseq
          %v523 = vshrl.u32 %v522, 7
          %v524 = vsub.s32 0, %v523
          %v525 = vrot.slane %v518, %v524
          %v526 = vlaneseq
          %v527 = vshrl.u32 %v526, 7
          %v528 = vsub.s32 4, %v527
          %v529 = vrot.slane %v518, %v528
          %v530 = vlaneseq
          %v531 = vshrl.u32 %v530, 7
          %v532 = vsub.s32 0, %v531
          %v533 = vrot.slane %v519, %v532
          %v534 = vlaneseq
          %v535 = vshrl.u32 %v534, 7
          %v536 = vsub.s32 4, %v535
          %v537 = vrot.slane %v519, %v536
          %v538 = vlaneseq
          %v539 = vshrl.u32 %v538, 7
          %v540 = vsub.s32 0, %v539
          %v541 = vrot.slane %v520, %v540
          %v542 = vlaneseq
          %v543 = vshrl.u32 %v542, 7
          %v544 = vsub.s32 4, %v543
          %v545 = vrot.slane %v520, %v544
          %v546 = vlaneseq
          %v547 = vshrl.u32 %v546, 7
          %v548 = vsub.s32 0, %v547
          %v549 = vrot.slane %v521, %v548
          %vm550 = vcmp.ne.s16.totalorder %v525, 0
          %vm551 = vcmp.ne.s16.totalorder %v529, 0
          %vm552 = vcmp.ne.s16.totalorder %v533, 0
          %vm553 = vcmp.ne.s16.totalorder %v537, 0
          %vm554 = vcmp.ne.s16.totalorder %v541, 0
          %vm555 = vcmp.ne.s16.totalorder %v545, 0
          %vm556 = vcmp.ne.s16.totalorder %v549, 0
          %v557 = vsel %vm550, %v441, %v508
          %v558 = vsel %vm551, %v414, %v483
          %v559 = vsel %vm552, %v415, %v484
          %v560 = vsel %vm553, %v416, %v485
          %v561 = vsel %vm554, %v417, %v486
          %v562 = vsel %vm555, %v418, %v487
          %v563 = vsel %vm556, %v419, %v469
          %v564 = vsel %vm550, %v445, %v512
          %v565 = vsel %vm551, %v420, %v488
          %v566 = vsel %vm552, %v421, %v489
          %v567 = vsel %vm553, %v422, %v490
          %v568 = vsel %vm554, %v423, %v491
          %v569 = vsel %vm555, %v424, %v492
          %v570 = vsel %vm556, %v425, %v481
          %583 = vrot.lane.b32.xlu0 %v557, 84
          %v584 = vpop.permute.xlu0 %583
          %585 = vrot.lane.b32.xlu0 %v558, 84
          %v586 = vpop.permute.xlu0 %585
          %587 = vrot.lane.b32.xlu0 %v559, 84
          %v588 = vpop.permute.xlu0 %587
          %589 = vrot.lane.b32.xlu0 %v560, 84
          %v590 = vpop.permute.xlu0 %589
          %591 = vrot.lane.b32.xlu0 %v561, 84
          %v592 = vpop.permute.xlu0 %591
          %593 = vrot.lane.b32.xlu0 %v562, 84
          %v594 = vpop.permute.xlu0 %593
          %595 = vrot.lane.b32.xlu0 %v564, 84
          %v596 = vpop.permute.xlu0 %595
          %597 = vrot.lane.b32.xlu0 %v565, 84
          %v598 = vpop.permute.xlu0 %597
          %599 = vrot.lane.b32.xlu0 %v566, 84
          %v600 = vpop.permute.xlu0 %599
          %601 = vrot.lane.b32.xlu0 %v567, 84
          %v602 = vpop.permute.xlu0 %601
          %603 = vrot.lane.b32.xlu0 %v568, 84
          %v604 = vpop.permute.xlu0 %603
          %605 = vrot.lane.b32.xlu0 %v569, 84
          %v606 = vpop.permute.xlu0 %605
          %vm607 = vcmask 687104
          %v608 = vsel %vm607, %v584, %v586
          %v609 = vsel %vm607, %v586, %v588
          %v610 = vsel %vm607, %v588, %v590
          %v611 = vsel %vm607, %v590, %v592
          %v612 = vsel %vm607, %v592, %v594
          %v613 = vsel %vm607, %v596, %v598
          %v614 = vsel %vm607, %v598, %v600
          %v615 = vsel %vm607, %v600, %v602
          %v616 = vsel %vm607, %v602, %v604
          %v617 = vsel %vm607, %v604, %v606
          %vm618 = vcmask 687104
          %v621 = vsel %vm618, 0, %v584
          %v623 = vsel %vm618, 0, %v596
          %v626 = vunpack.c.l.b16 %v621
          %v627 = vunpack.c.l.b16 %v608
          %v628 = vunpack.c.l.b16 %v609
          %v629 = vunpack.c.l.b16 %v610
          %v630 = vunpack.c.l.b16 %v611
          %v631 = vunpack.c.l.b16 %v612
          %v632 = vunpack.c.l.b16 %v594
          %v633 = vunpack.c.h.b16 %v621
          %v634 = vunpack.c.h.b16 %v608
          %v635 = vunpack.c.h.b16 %v609
          %v636 = vunpack.c.h.b16 %v610
          %v637 = vunpack.c.h.b16 %v611
          %v638 = vunpack.c.h.b16 %v612
          %v639 = vunpack.c.h.b16 %v594
          %v640 = vunpack.c.l.b16 %v623
          %v641 = vunpack.c.l.b16 %v613
          %v642 = vunpack.c.l.b16 %v614
          %v643 = vunpack.c.l.b16 %v615
          %v644 = vunpack.c.l.b16 %v616
          %v645 = vunpack.c.l.b16 %v617
          %v646 = vunpack.c.l.b16 %v606
          %v647 = vunpack.c.h.b16 %v623
          %v648 = vunpack.c.h.b16 %v613
          %v649 = vunpack.c.h.b16 %v614
          %v650 = vunpack.c.h.b16 %v615
          %v651 = vunpack.c.h.b16 %v616
          %v652 = vunpack.c.h.b16 %v617
          %v653 = vunpack.c.h.b16 %v606
          %v654 = vpack.c.b16 %v627, %v626
          %v655 = vpack.c.b16 %v629, %v628
          %v656 = vpack.c.b16 %v631, %v630
          %v657 = vpack.c.b16 %v632, %v632
          %v658 = vpack.c.b16 %v634, %v633
          %v659 = vpack.c.b16 %v636, %v635
          %v660 = vpack.c.b16 %v638, %v637
          %v661 = vpack.c.b16 %v639, %v639
          %v662 = vpack.c.b16 %v641, %v640
          %v663 = vpack.c.b16 %v643, %v642
          %v664 = vpack.c.b16 %v645, %v644
          %v665 = vpack.c.b16 %v646, %v646
          %v666 = vpack.c.b16 %v648, %v647
          %v667 = vpack.c.b16 %v650, %v649
          %v668 = vpack.c.b16 %v652, %v651
          %v669 = vpack.c.b16 %v653, %v653
          %686 = vst [vmem:[#allocation2] sm:$0xff] %v654
          %687 = vst [vmem:[#allocation2 + $0x8] sm:$0xff] %v655
          %688 = vst [vmem:[#allocation2 + $0x10] sm:$0xff] %v656
          %vm689 = vcmask 125952
          %690 = vst.msk [vmem:[#allocation2 + $0x18] sm:$0xf] %vm689, %v657
          %691 = vst [vmem:[#allocation2 + $0x1c] sm:$0xff] %v658
          %692 = vst [vmem:[#allocation2 + $0x24] sm:$0xff] %v659
          %693 = vst [vmem:[#allocation2 + $0x2c] sm:$0xff] %v660
          %694 = vst.msk [vmem:[#allocation2 + $0x34] sm:$0xf] %vm689, %v661
          %695 = vst [vmem:[#allocation2 + $0x38] sm:$0xff] %v662
          %696 = vst [vmem:[#allocation2 + $0x40] sm:$0xff] %v663
          %697 = vst [vmem:[#allocation2 + $0x48] sm:$0xff] %v664
          %698 = vst.msk [vmem:[#allocation2 + $0x50] sm:$0xf] %vm689, %v665
          %699 = vst [vmem:[#allocation2 + $0x54] sm:$0xff] %v666
          %700 = vst [vmem:[#allocation2 + $0x5c] sm:$0xff] %v667
          %701 = vst [vmem:[#allocation2 + $0x64] sm:$0xff] %v668
          %702 = vst.msk [vmem:[#allocation2 + $0x6c] sm:$0xf] %vm689, %v669
          %703 = vrot.lane.b32.xlu0 %v557, 56
          %v704 = vpop.permute.xlu0 %703
          %705 = vrot.lane.b32.xlu0 %v558, 56
          %v706 = vpop.permute.xlu0 %705
          %707 = vrot.lane.b32.xlu0 %v559, 56
          %v708 = vpop.permute.xlu0 %707
          %709 = vrot.lane.b32.xlu0 %v560, 56
          %v710 = vpop.permute.xlu0 %709
          %711 = vrot.lane.b32.xlu0 %v561, 56
          %v712 = vpop.permute.xlu0 %711
          %713 = vrot.lane.b32.xlu0 %v562, 56
          %v714 = vpop.permute.xlu0 %713
          %715 = vrot.lane.b32.xlu0 %v564, 56
          %v716 = vpop.permute.xlu0 %715
          %717 = vrot.lane.b32.xlu0 %v565, 56
          %v718 = vpop.permute.xlu0 %717
          %719 = vrot.lane.b32.xlu0 %v566, 56
          %v720 = vpop.permute.xlu0 %719
          %721 = vrot.lane.b32.xlu0 %v567, 56
          %v722 = vpop.permute.xlu0 %721
          %723 = vrot.lane.b32.xlu0 %v568, 56
          %v724 = vpop.permute.xlu0 %723
          %725 = vrot.lane.b32.xlu0 %v569, 56
          %v726 = vpop.permute.xlu0 %725
          %vm727 = vcmask 457728
          %v728 = vsel %vm727, %v704, %v706
          %v729 = vsel %vm727, %v706, %v708
          %v730 = vsel %vm727, %v708, %v710
          %v731 = vsel %vm727, %v710, %v712
          %v732 = vsel %vm727, %v712, %v714
          %v733 = vsel %vm727, %v716, %v718
          %v734 = vsel %vm727, %v718, %v720
          %v735 = vsel %vm727, %v720, %v722
          %v736 = vsel %vm727, %v722, %v724
          %v737 = vsel %vm727, %v724, %v726
          %vm738 = vcmask 457728
          %v740 = vsel %vm738, 0, %v704
          %v742 = vsel %vm738, 0, %v716
          %v745 = vunpack.c.l.b16 %v740
          %v746 = vunpack.c.l.b16 %v728
          %v747 = vunpack.c.l.b16 %v729
          %v748 = vunpack.c.l.b16 %v730
          %v749 = vunpack.c.l.b16 %v731
          %v750 = vunpack.c.l.b16 %v732
          %v751 = vunpack.c.l.b16 %v714
          %v752 = vunpack.c.h.b16 %v740
          %v753 = vunpack.c.h.b16 %v728
          %v754 = vunpack.c.h.b16 %v729
          %v755 = vunpack.c.h.b16 %v730
          %v756 = vunpack.c.h.b16 %v731
          %v757 = vunpack.c.h.b16 %v732
          %v758 = vunpack.c.h.b16 %v714
          %v759 = vunpack.c.l.b16 %v742
          %v760 = vunpack.c.l.b16 %v733
          %v761 = vunpack.c.l.b16 %v734
          %v762 = vunpack.c.l.b16 %v735
          %v763 = vunpack.c.l.b16 %v736
          %v764 = vunpack.c.l.b16 %v737
          %v765 = vunpack.c.l.b16 %v726
          %v766 = vunpack.c.h.b16 %v742
          %v767 = vunpack.c.h.b16 %v733
          %v768 = vunpack.c.h.b16 %v734
          %v769 = vunpack.c.h.b16 %v735
          %v770 = vunpack.c.h.b16 %v736
          %v771 = vunpack.c.h.b16 %v737
          %v772 = vunpack.c.h.b16 %v726
          %v773 = vpack.c.b16 %v746, %v745
          %v774 = vpack.c.b16 %v748, %v747
          %v775 = vpack.c.b16 %v750, %v749
          %v776 = vpack.c.b16 %v751, %v751
          %v777 = vpack.c.b16 %v753, %v752
          %v778 = vpack.c.b16 %v755, %v754
          %v779 = vpack.c.b16 %v757, %v756
          %v780 = vpack.c.b16 %v758, %v758
          %v781 = vpack.c.b16 %v760, %v759
          %v782 = vpack.c.b16 %v762, %v761
          %v783 = vpack.c.b16 %v764, %v763
          %v784 = vpack.c.b16 %v765, %v765
          %v785 = vpack.c.b16 %v767, %v766
          %v786 = vpack.c.b16 %v769, %v768
          %v787 = vpack.c.b16 %v771, %v770
          %v788 = vpack.c.b16 %v772, %v772
          %805 = vst [vmem:[#allocation2 + $0x70] sm:$0xff] %v773
          %806 = vst [vmem:[#allocation2 + $0x78] sm:$0xff] %v774
          %807 = vst [vmem:[#allocation2 + $0x80] sm:$0xff] %v775
          %808 = vst.msk [vmem:[#allocation2 + $0x88] sm:$0xf] %vm689, %v776
          %809 = vst [vmem:[#allocation2 + $0x8c] sm:$0xff] %v777
          %810 = vst [vmem:[#allocation2 + $0x94] sm:$0xff] %v778
          %811 = vst [vmem:[#allocation2 + $0x9c] sm:$0xff] %v779
          %812 = vst.msk [vmem:[#allocation2 + $0xa4] sm:$0xf] %vm689, %v780
          %813 = vst [vmem:[#allocation2 + $0xa8] sm:$0xff] %v781
          %814 = vst [vmem:[#allocation2 + $0xb0] sm:$0xff] %v782
          %815 = vst [vmem:[#allocation2 + $0xb8] sm:$0xff] %v783
          %816 = vst.msk [vmem:[#allocation2 + $0xc0] sm:$0xf] %vm689, %v784
          %817 = vst [vmem:[#allocation2 + $0xc4] sm:$0xff] %v785
          %818 = vst [vmem:[#allocation2 + $0xcc] sm:$0xff] %v786
          %819 = vst [vmem:[#allocation2 + $0xd4] sm:$0xff] %v787
          %820 = vst.msk [vmem:[#allocation2 + $0xdc] sm:$0xf] %vm689, %v788
          %821 = vrot.lane.b32.xlu0 %v557, 28
          %v822 = vpop.permute.xlu0 %821
          %823 = vrot.lane.b32.xlu0 %v558, 28
          %v824 = vpop.permute.xlu0 %823
          %825 = vrot.lane.b32.xlu0 %v559, 28
          %v826 = vpop.permute.xlu0 %825
          %827 = vrot.lane.b32.xlu0 %v560, 28
          %v828 = vpop.permute.xlu0 %827
          %829 = vrot.lane.b32.xlu0 %v561, 28
          %v830 = vpop.permute.xlu0 %829
          %831 = vrot.lane.b32.xlu0 %v562, 28
          %v832 = vpop.permute.xlu0 %831
          %833 = vrot.lane.b32.xlu0 %v564, 28
          %v834 = vpop.permute.xlu0 %833
          %835 = vrot.lane.b32.xlu0 %v565, 28
          %v836 = vpop.permute.xlu0 %835
          %837 = vrot.lane.b32.xlu0 %v566, 28
          %v838 = vpop.permute.xlu0 %837
          %839 = vrot.lane.b32.xlu0 %v567, 28
          %v840 = vpop.permute.xlu0 %839
          %841 = vrot.lane.b32.xlu0 %v568, 28
          %v842 = vpop.permute.xlu0 %841
          %843 = vrot.lane.b32.xlu0 %v569, 28
          %v844 = vpop.permute.xlu0 %843
          %vm845 = vcmask 228352
          %v846 = vsel %vm845, %v822, %v824
          %v847 = vsel %vm845, %v824, %v826
          %v848 = vsel %vm845, %v826, %v828
          %v849 = vsel %vm845, %v828, %v830
          %v850 = vsel %vm845, %v830, %v832
          %v851 = vsel %vm845, %v834, %v836
          %v852 = vsel %vm845, %v836, %v838
          %v853 = vsel %vm845, %v838, %v840
          %v854 = vsel %vm845, %v840, %v842
          %v855 = vsel %vm845, %v842, %v844
          %vm856 = vcmask 228352
          %v858 = vsel %vm856, 0, %v822
          %v860 = vsel %vm856, 0, %v834
          %v863 = vunpack.c.l.b16 %v858
          %v864 = vunpack.c.l.b16 %v846
          %v865 = vunpack.c.l.b16 %v847
          %v866 = vunpack.c.l.b16 %v848
          %v867 = vunpack.c.l.b16 %v849
          %v868 = vunpack.c.l.b16 %v850
          %v869 = vunpack.c.l.b16 %v832
          %v870 = vunpack.c.h.b16 %v858
          %v871 = vunpack.c.h.b16 %v846
          %v872 = vunpack.c.h.b16 %v847
          %v873 = vunpack.c.h.b16 %v848
          %v874 = vunpack.c.h.b16 %v849
          %v875 = vunpack.c.h.b16 %v850
          %v876 = vunpack.c.h.b16 %v832
          %v877 = vunpack.c.l.b16 %v860
          %v878 = vunpack.c.l.b16 %v851
          %v879 = vunpack.c.l.b16 %v852
          %v880 = vunpack.c.l.b16 %v853
          %v881 = vunpack.c.l.b16 %v854
          %v882 = vunpack.c.l.b16 %v855
          %v883 = vunpack.c.l.b16 %v844
          %v884 = vunpack.c.h.b16 %v860
          %v885 = vunpack.c.h.b16 %v851
          %v886 = vunpack.c.h.b16 %v852
          %v887 = vunpack.c.h.b16 %v853
          %v888 = vunpack.c.h.b16 %v854
          %v889 = vunpack.c.h.b16 %v855
          %v890 = vunpack.c.h.b16 %v844
          %v891 = vpack.c.b16 %v864, %v863
          %v892 = vpack.c.b16 %v866, %v865
          %v893 = vpack.c.b16 %v868, %v867
          %v894 = vpack.c.b16 %v869, %v869
          %v895 = vpack.c.b16 %v871, %v870
          %v896 = vpack.c.b16 %v873, %v872
          %v897 = vpack.c.b16 %v875, %v874
          %v898 = vpack.c.b16 %v876, %v876
          %v899 = vpack.c.b16 %v878, %v877
          %v900 = vpack.c.b16 %v880, %v879
          %v901 = vpack.c.b16 %v882, %v881
          %v902 = vpack.c.b16 %v883, %v883
          %v903 = vpack.c.b16 %v885, %v884
          %v904 = vpack.c.b16 %v887, %v886
          %v905 = vpack.c.b16 %v889, %v888
          %v906 = vpack.c.b16 %v890, %v890
          %923 = vst [vmem:[#allocation2 + $0xe0] sm:$0xff] %v891
          %924 = vst [vmem:[#allocation2 + $0xe8] sm:$0xff] %v892
          %925 = vst [vmem:[#allocation2 + $0xf0] sm:$0xff] %v893
          %926 = vst.msk [vmem:[#allocation2 + $0xf8] sm:$0xf] %vm689, %v894
          %927 = vst [vmem:[#allocation2 + $0xfc] sm:$0xff] %v895
          %928 = vst [vmem:[#allocation2 + $0x104] sm:$0xff] %v896
          %929 = vst [vmem:[#allocation2 + $0x10c] sm:$0xff] %v897
          %930 = vst.msk [vmem:[#allocation2 + $0x114] sm:$0xf] %vm689, %v898
          %931 = vst [vmem:[#allocation2 + $0x118] sm:$0xff] %v899
          %932 = vst [vmem:[#allocation2 + $0x120] sm:$0xff] %v900
          %933 = vst [vmem:[#allocation2 + $0x128] sm:$0xff] %v901
          %934 = vst.msk [vmem:[#allocation2 + $0x130] sm:$0xf] %vm689, %v902
          %935 = vst [vmem:[#allocation2 + $0x134] sm:$0xff] %v903
          %936 = vst [vmem:[#allocation2 + $0x13c] sm:$0xff] %v904
          %937 = vst [vmem:[#allocation2 + $0x144] sm:$0xff] %v905
          %938 = vst.msk [vmem:[#allocation2 + $0x14c] sm:$0xf] %vm689, %v906
          %v941 = vunpack.c.l.b16 %v557
          %v942 = vunpack.c.l.b16 %v558
          %v943 = vunpack.c.l.b16 %v559
          %v944 = vunpack.c.l.b16 %v560
          %v945 = vunpack.c.l.b16 %v561
          %v946 = vunpack.c.l.b16 %v562
          %v947 = vunpack.c.l.b16 %v563
          %v948 = vunpack.c.h.b16 %v557
          %v949 = vunpack.c.h.b16 %v558
          %v950 = vunpack.c.h.b16 %v559
          %v951 = vunpack.c.h.b16 %v560
          %v952 = vunpack.c.h.b16 %v561
          %v953 = vunpack.c.h.b16 %v562
          %v954 = vunpack.c.h.b16 %v563
          %v955 = vunpack.c.l.b16 %v564
          %v956 = vunpack.c.l.b16 %v565
          %v957 = vunpack.c.l.b16 %v566
          %v958 = vunpack.c.l.b16 %v567
          %v959 = vunpack.c.l.b16 %v568
          %v960 = vunpack.c.l.b16 %v569
          %v961 = vunpack.c.l.b16 %v570
          %v962 = vunpack.c.h.b16 %v564
          %v963 = vunpack.c.h.b16 %v565
          %v964 = vunpack.c.h.b16 %v566
          %v965 = vunpack.c.h.b16 %v567
          %v966 = vunpack.c.h.b16 %v568
          %v967 = vunpack.c.h.b16 %v569
          %v968 = vunpack.c.h.b16 %v570
          %v969 = vpack.c.b16 %v942, %v941
          %v970 = vpack.c.b16 %v944, %v943
          %v971 = vpack.c.b16 %v946, %v945
          %v972 = vpack.c.b16 %v947, %v947
          %v973 = vpack.c.b16 %v949, %v948
          %v974 = vpack.c.b16 %v951, %v950
          %v975 = vpack.c.b16 %v953, %v952
          %v976 = vpack.c.b16 %v954, %v954
          %v977 = vpack.c.b16 %v956, %v955
          %v978 = vpack.c.b16 %v958, %v957
          %v979 = vpack.c.b16 %v960, %v959
          %v980 = vpack.c.b16 %v961, %v961
          %v981 = vpack.c.b16 %v963, %v962
          %v982 = vpack.c.b16 %v965, %v964
          %v983 = vpack.c.b16 %v967, %v966
          %v984 = vpack.c.b16 %v968, %v968
          %1001 = vst [vmem:[#allocation2 + $0x150] sm:$0xff] %v969
          %1002 = vst [vmem:[#allocation2 + $0x158] sm:$0xff] %v970
          %1003 = vst [vmem:[#allocation2 + $0x160] sm:$0xff] %v971
          %1004 = vst.msk [vmem:[#allocation2 + $0x168] sm:$0xf] %vm689, %v972
          %1005 = vst [vmem:[#allocation2 + $0x16c] sm:$0xff] %v973
          %1006 = vst [vmem:[#allocation2 + $0x174] sm:$0xff] %v974
          %1007 = vst [vmem:[#allocation2 + $0x17c] sm:$0xff] %v975
          %1008 = vst.msk [vmem:[#allocation2 + $0x184] sm:$0xf] %vm689, %v976
          %1009 = vst [vmem:[#allocation2 + $0x188] sm:$0xff] %v977
          %1010 = vst [vmem:[#allocation2 + $0x190] sm:$0xff] %v978
          %1011 = vst [vmem:[#allocation2 + $0x198] sm:$0xff] %v979
          %1012 = vst.msk [vmem:[#allocation2 + $0x1a0] sm:$0xf] %vm689, %v980
          %1013 = vst [vmem:[#allocation2 + $0x1a4] sm:$0xff] %v981
          %1014 = vst [vmem:[#allocation2 + $0x1ac] sm:$0xff] %v982
          %1015 = vst [vmem:[#allocation2 + $0x1b4] sm:$0xff] %v983
          %1016 = vst.msk [vmem:[#allocation2 + $0x1bc] sm:$0xf] %vm689, %v984
          %1017 = vrot.lane.b32.xlu0 %v557, 100
          %v1018 = vpop.permute.xlu0 %1017
          %1019 = vrot.lane.b32.xlu0 %v558, 100
          %v1020 = vpop.permute.xlu0 %1019
          %1021 = vrot.lane.b32.xlu0 %v559, 100
          %v1022 = vpop.permute.xlu0 %1021
          %1023 = vrot.lane.b32.xlu0 %v560, 100
          %v1024 = vpop.permute.xlu0 %1023
          %1025 = vrot.lane.b32.xlu0 %v561, 100
          %v1026 = vpop.permute.xlu0 %1025
          %1027 = vrot.lane.b32.xlu0 %v562, 100
          %v1028 = vpop.permute.xlu0 %1027
          %1029 = vrot.lane.b32.xlu0 %v563, 100
          %v1030 = vpop.permute.xlu0 %1029
          %1031 = vrot.lane.b32.xlu0 %v564, 100
          %v1032 = vpop.permute.xlu0 %1031
          %1033 = vrot.lane.b32.xlu0 %v565, 100
          %v1034 = vpop.permute.xlu0 %1033
          %1035 = vrot.lane.b32.xlu0 %v566, 100
          %v1036 = vpop.permute.xlu0 %1035
          %1037 = vrot.lane.b32.xlu0 %v567, 100
          %v1038 = vpop.permute.xlu0 %1037
          %1039 = vrot.lane.b32.xlu0 %v568, 100
          %v1040 = vpop.permute.xlu0 %1039
          %1041 = vrot.lane.b32.xlu0 %v569, 100
          %v1042 = vpop.permute.xlu0 %1041
          %1043 = vrot.lane.b32.xlu0 %v570, 100
          %v1044 = vpop.permute.xlu0 %1043
          %vm1045 = vcmask 818176
          %v1046 = vsel %vm1045, %v1018, %v1020
          %v1047 = vsel %vm1045, %v1020, %v1022
          %v1048 = vsel %vm1045, %v1022, %v1024
          %v1049 = vsel %vm1045, %v1024, %v1026
          %v1050 = vsel %vm1045, %v1026, %v1028
          %v1051 = vsel %vm1045, %v1028, %v1030
          %v1052 = vsel %vm1045, %v1032, %v1034
          %v1053 = vsel %vm1045, %v1034, %v1036
          %v1054 = vsel %vm1045, %v1036, %v1038
          %v1055 = vsel %vm1045, %v1038, %v1040
          %v1056 = vsel %vm1045, %v1040, %v1042
          %v1057 = vsel %vm1045, %v1042, %v1044
          %vm1058 = vcmask 949248
          %v1060 = vsel %vm1058, %v1051, 0
          %v1062 = vsel %vm1058, %v1057, 0
          %v1066 = vunpack.c.l.b16 %v1046
          %v1067 = vunpack.c.l.b16 %v1047
          %v1068 = vunpack.c.l.b16 %v1048
          %v1069 = vunpack.c.l.b16 %v1049
          %v1070 = vunpack.c.l.b16 %v1050
          %v1071 = vunpack.c.l.b16 %v1060
          %v1072 = vunpack.c.l.b16 0
          %v1073 = vunpack.c.h.b16 %v1046
          %v1074 = vunpack.c.h.b16 %v1047
          %v1075 = vunpack.c.h.b16 %v1048
          %v1076 = vunpack.c.h.b16 %v1049
          %v1077 = vunpack.c.h.b16 %v1050
          %v1078 = vunpack.c.h.b16 %v1060
          %v1079 = vunpack.c.h.b16 0
          %v1080 = vunpack.c.l.b16 %v1052
          %v1081 = vunpack.c.l.b16 %v1053
          %v1082 = vunpack.c.l.b16 %v1054
          %v1083 = vunpack.c.l.b16 %v1055
          %v1084 = vunpack.c.l.b16 %v1056
          %v1085 = vunpack.c.l.b16 %v1062
          %v1086 = vunpack.c.h.b16 %v1052
          %v1087 = vunpack.c.h.b16 %v1053
          %v1088 = vunpack.c.h.b16 %v1054
          %v1089 = vunpack.c.h.b16 %v1055
          %v1090 = vunpack.c.h.b16 %v1056
          %v1091 = vunpack.c.h.b16 %v1062
          %v1092 = vpack.c.b16 %v1067, %v1066
          %v1093 = vpack.c.b16 %v1069, %v1068
          %v1094 = vpack.c.b16 %v1071, %v1070
          %v1095 = vpack.c.b16 %v1072, %v1072
          %v1096 = vpack.c.b16 %v1074, %v1073
          %v1097 = vpack.c.b16 %v1076, %v1075
          %v1098 = vpack.c.b16 %v1078, %v1077
          %v1099 = vpack.c.b16 %v1079, %v1079
          %v1100 = vpack.c.b16 %v1081, %v1080
          %v1101 = vpack.c.b16 %v1083, %v1082
          %v1102 = vpack.c.b16 %v1085, %v1084
          %v1103 = vpack.c.b16 %v1087, %v1086
          %v1104 = vpack.c.b16 %v1089, %v1088
          %v1105 = vpack.c.b16 %v1091, %v1090
          %1120 = vst [vmem:[#allocation2 + $0x1c0] sm:$0xff] %v1092
          %1121 = vst [vmem:[#allocation2 + $0x1c8] sm:$0xff] %v1093
          %1122 = vst [vmem:[#allocation2 + $0x1d0] sm:$0xff] %v1094
          %1123 = vst.msk [vmem:[#allocation2 + $0x1d8] sm:$0xf] %vm689, %v1095
          %1124 = vst [vmem:[#allocation2 + $0x1dc] sm:$0xff] %v1096
          %1125 = vst [vmem:[#allocation2 + $0x1e4] sm:$0xff] %v1097
          %1126 = vst [vmem:[#allocation2 + $0x1ec] sm:$0xff] %v1098
          %1127 = vst.msk [vmem:[#allocation2 + $0x1f4] sm:$0xf] %vm689, %v1099
          %1128 = vst [vmem:[#allocation2 + $0x1f8] sm:$0xff] %v1100
          %1129 = vst [vmem:[#allocation2 + $0x200] sm:$0xff] %v1101
          %1130 = vst [vmem:[#allocation2 + $0x208] sm:$0xff] %v1102
          %1131 = vst.msk [vmem:[#allocation2 + $0x210] sm:$0xf] %vm689, %v1095
          %1132 = vst [vmem:[#allocation2 + $0x214] sm:$0xff] %v1103
          %1133 = vst [vmem:[#allocation2 + $0x21c] sm:$0xff] %v1104
          %1134 = vst [vmem:[#allocation2 + $0x224] sm:$0xff] %v1105
          %1135 = vst.msk [vmem:[#allocation2 + $0x22c] sm:$0xf] %vm689, %v1099
          %1136 = vrot.lane.b32.xlu0 %v557, 72
          %v1137 = vpop.permute.xlu0 %1136
          %1138 = vrot.lane.b32.xlu0 %v558, 72
          %v1139 = vpop.permute.xlu0 %1138
          %1140 = vrot.lane.b32.xlu0 %v559, 72
          %v1141 = vpop.permute.xlu0 %1140
          %1142 = vrot.lane.b32.xlu0 %v560, 72
          %v1143 = vpop.permute.xlu0 %1142
          %1144 = vrot.lane.b32.xlu0 %v561, 72
          %v1145 = vpop.permute.xlu0 %1144
          %1146 = vrot.lane.b32.xlu0 %v562, 72
          %v1147 = vpop.permute.xlu0 %1146
          %1148 = vrot.lane.b32.xlu0 %v563, 72
          %v1149 = vpop.permute.xlu0 %1148
          %1150 = vrot.lane.b32.xlu0 %v564, 72
          %v1151 = vpop.permute.xlu0 %1150
          %1152 = vrot.lane.b32.xlu0 %v565, 72
          %v1153 = vpop.permute.xlu0 %1152
          %1154 = vrot.lane.b32.xlu0 %v566, 72
          %v1155 = vpop.permute.xlu0 %1154
          %1156 = vrot.lane.b32.xlu0 %v567, 72
          %v1157 = vpop.permute.xlu0 %1156
          %1158 = vrot.lane.b32.xlu0 %v568, 72
          %v1159 = vpop.permute.xlu0 %1158
          %1160 = vrot.lane.b32.xlu0 %v569, 72
          %v1161 = vpop.permute.xlu0 %1160
          %1162 = vrot.lane.b32.xlu0 %v570, 72
          %v1163 = vpop.permute.xlu0 %1162
          %vm1164 = vcmask 588800
          %v1165 = vsel %vm1164, %v1137, %v1139
          %v1166 = vsel %vm1164, %v1139, %v1141
          %v1167 = vsel %vm1164, %v1141, %v1143
          %v1168 = vsel %vm1164, %v1143, %v1145
          %v1169 = vsel %vm1164, %v1145, %v1147
          %v1170 = vsel %vm1164, %v1147, %v1149
          %v1171 = vsel %vm1164, %v1151, %v1153
          %v1172 = vsel %vm1164, %v1153, %v1155
          %v1173 = vsel %vm1164, %v1155, %v1157
          %v1174 = vsel %vm1164, %v1157, %v1159
          %v1175 = vsel %vm1164, %v1159, %v1161
          %v1176 = vsel %vm1164, %v1161, %v1163
          %vm1177 = vcmask 719872
          %v1179 = vsel %vm1177, %v1170, 0
          %v1181 = vsel %vm1177, %v1176, 0
          %v1184 = vunpack.c.l.b16 %v1165
          %v1185 = vunpack.c.l.b16 %v1166
          %v1186 = vunpack.c.l.b16 %v1167
          %v1187 = vunpack.c.l.b16 %v1168
          %v1188 = vunpack.c.l.b16 %v1169
          %v1189 = vunpack.c.l.b16 %v1179
          %v1190 = vunpack.c.h.b16 %v1165
          %v1191 = vunpack.c.h.b16 %v1166
          %v1192 = vunpack.c.h.b16 %v1167
          %v1193 = vunpack.c.h.b16 %v1168
          %v1194 = vunpack.c.h.b16 %v1169
          %v1195 = vunpack.c.h.b16 %v1179
          %v1196 = vunpack.c.l.b16 %v1171
          %v1197 = vunpack.c.l.b16 %v1172
          %v1198 = vunpack.c.l.b16 %v1173
          %v1199 = vunpack.c.l.b16 %v1174
          %v1200 = vunpack.c.l.b16 %v1175
          %v1201 = vunpack.c.l.b16 %v1181
          %v1202 = vunpack.c.h.b16 %v1171
          %v1203 = vunpack.c.h.b16 %v1172
          %v1204 = vunpack.c.h.b16 %v1173
          %v1205 = vunpack.c.h.b16 %v1174
          %v1206 = vunpack.c.h.b16 %v1175
          %v1207 = vunpack.c.h.b16 %v1181
          %v1208 = vpack.c.b16 %v1185, %v1184
          %v1209 = vpack.c.b16 %v1187, %v1186
          %v1210 = vpack.c.b16 %v1189, %v1188
          %v1211 = vpack.c.b16 %v1191, %v1190
          %v1212 = vpack.c.b16 %v1193, %v1192
          %v1213 = vpack.c.b16 %v1195, %v1194
          %v1214 = vpack.c.b16 %v1197, %v1196
          %v1215 = vpack.c.b16 %v1199, %v1198
          %v1216 = vpack.c.b16 %v1201, %v1200
          %v1217 = vpack.c.b16 %v1203, %v1202
          %v1218 = vpack.c.b16 %v1205, %v1204
          %v1219 = vpack.c.b16 %v1207, %v1206
          %1232 = vst [vmem:[#allocation2 + $0x230] sm:$0xff] %v1208
          %1233 = vst [vmem:[#allocation2 + $0x238] sm:$0xff] %v1209
          %1234 = vst [vmem:[#allocation2 + $0x240] sm:$0xff] %v1210
          %1235 = vst.msk [vmem:[#allocation2 + $0x248] sm:$0xf] %vm689, %v1095
          %1236 = vst [vmem:[#allocation2 + $0x24c] sm:$0xff] %v1211
          %1237 = vst [vmem:[#allocation2 + $0x254] sm:$0xff] %v1212
          %1238 = vst [vmem:[#allocation2 + $0x25c] sm:$0xff] %v1213
          %1239 = vst.msk [vmem:[#allocation2 + $0x264] sm:$0xf] %vm689, %v1099
          %1240 = vst [vmem:[#allocation2 + $0x268] sm:$0xff] %v1214
          %1241 = vst [vmem:[#allocation2 + $0x270] sm:$0xff] %v1215
          %1242 = vst [vmem:[#allocation2 + $0x278] sm:$0xff] %v1216
          %1243 = vst.msk [vmem:[#allocation2 + $0x280] sm:$0xf] %vm689, %v1095
          %1244 = vst [vmem:[#allocation2 + $0x284] sm:$0xff] %v1217
          %1245 = vst [vmem:[#allocation2 + $0x28c] sm:$0xff] %v1218
          %1246 = vst [vmem:[#allocation2 + $0x294] sm:$0xff] %v1219
          %1247 = vst.msk [vmem:[#allocation2 + $0x29c] sm:$0xf] %vm689, %v1099
          %1248 = vrot.lane.b32.xlu0 %v557, 44
          %v1249 = vpop.permute.xlu0 %1248
          %1250 = vrot.lane.b32.xlu0 %v558, 44
          %v1251 = vpop.permute.xlu0 %1250
          %1252 = vrot.lane.b32.xlu0 %v559, 44
          %v1253 = vpop.permute.xlu0 %1252
          %1254 = vrot.lane.b32.xlu0 %v560, 44
          %v1255 = vpop.permute.xlu0 %1254
          %1256 = vrot.lane.b32.xlu0 %v561, 44
          %v1257 = vpop.permute.xlu0 %1256
          %1258 = vrot.lane.b32.xlu0 %v562, 44
          %v1259 = vpop.permute.xlu0 %1258
          %1260 = vrot.lane.b32.xlu0 %v563, 44
          %v1261 = vpop.permute.xlu0 %1260
          %1262 = vrot.lane.b32.xlu0 %v564, 44
          %v1263 = vpop.permute.xlu0 %1262
          %1264 = vrot.lane.b32.xlu0 %v565, 44
          %v1265 = vpop.permute.xlu0 %1264
          %1266 = vrot.lane.b32.xlu0 %v566, 44
          %v1267 = vpop.permute.xlu0 %1266
          %1268 = vrot.lane.b32.xlu0 %v567, 44
          %v1269 = vpop.permute.xlu0 %1268
          %1270 = vrot.lane.b32.xlu0 %v568, 44
          %v1271 = vpop.permute.xlu0 %1270
          %1272 = vrot.lane.b32.xlu0 %v569, 44
          %v1273 = vpop.permute.xlu0 %1272
          %1274 = vrot.lane.b32.xlu0 %v570, 44
          %v1275 = vpop.permute.xlu0 %1274
          %vm1276 = vcmask 359424
          %v1277 = vsel %vm1276, %v1249, %v1251
          %v1278 = vsel %vm1276, %v1251, %v1253
          %v1279 = vsel %vm1276, %v1253, %v1255
          %v1280 = vsel %vm1276, %v1255, %v1257
          %v1281 = vsel %vm1276, %v1257, %v1259
          %v1282 = vsel %vm1276, %v1259, %v1261
          %v1283 = vsel %vm1276, %v1263, %v1265
          %v1284 = vsel %vm1276, %v1265, %v1267
          %v1285 = vsel %vm1276, %v1267, %v1269
          %v1286 = vsel %vm1276, %v1269, %v1271
          %v1287 = vsel %vm1276, %v1271, %v1273
          %v1288 = vsel %vm1276, %v1273, %v1275
          %vm1289 = vcmask 490496
          %v1291 = vsel %vm1289, %v1282, 0
          %v1293 = vsel %vm1289, %v1288, 0
          %v1296 = vunpack.c.l.b16 %v1277
          %v1297 = vunpack.c.l.b16 %v1278
          %v1298 = vunpack.c.l.b16 %v1279
          %v1299 = vunpack.c.l.b16 %v1280
          %v1300 = vunpack.c.l.b16 %v1281
          %v1301 = vunpack.c.l.b16 %v1291
          %v1302 = vunpack.c.h.b16 %v1277
          %v1303 = vunpack.c.h.b16 %v1278
          %v1304 = vunpack.c.h.b16 %v1279
          %v1305 = vunpack.c.h.b16 %v1280
          %v1306 = vunpack.c.h.b16 %v1281
          %v1307 = vunpack.c.h.b16 %v1291
          %v1308 = vunpack.c.l.b16 %v1283
          %v1309 = vunpack.c.l.b16 %v1284
          %v1310 = vunpack.c.l.b16 %v1285
          %v1311 = vunpack.c.l.b16 %v1286
          %v1312 = vunpack.c.l.b16 %v1287
          %v1313 = vunpack.c.l.b16 %v1293
          %v1314 = vunpack.c.h.b16 %v1283
          %v1315 = vunpack.c.h.b16 %v1284
          %v1316 = vunpack.c.h.b16 %v1285
          %v1317 = vunpack.c.h.b16 %v1286
          %v1318 = vunpack.c.h.b16 %v1287
          %v1319 = vunpack.c.h.b16 %v1293
          %v1320 = vpack.c.b16 %v1297, %v1296
          %v1321 = vpack.c.b16 %v1299, %v1298
          %v1322 = vpack.c.b16 %v1301, %v1300
          %v1323 = vpack.c.b16 %v1303, %v1302
          %v1324 = vpack.c.b16 %v1305, %v1304
          %v1325 = vpack.c.b16 %v1307, %v1306
          %v1326 = vpack.c.b16 %v1309, %v1308
          %v1327 = vpack.c.b16 %v1311, %v1310
          %v1328 = vpack.c.b16 %v1313, %v1312
          %v1329 = vpack.c.b16 %v1315, %v1314
          %v1330 = vpack.c.b16 %v1317, %v1316
          %v1331 = vpack.c.b16 %v1319, %v1318
          %1344 = vst [vmem:[#allocation2 + $0x2a0] sm:$0xff] %v1320
          %1345 = vst [vmem:[#allocation2 + $0x2a8] sm:$0xff] %v1321
          %1346 = vst [vmem:[#allocation2 + $0x2b0] sm:$0xff] %v1322
          %1347 = vst.msk [vmem:[#allocation2 + $0x2b8] sm:$0xf] %vm689, %v1095
          %1348 = vst [vmem:[#allocation2 + $0x2bc] sm:$0xff] %v1323
          %1349 = vst [vmem:[#allocation2 + $0x2c4] sm:$0xff] %v1324
          %1350 = vst [vmem:[#allocation2 + $0x2cc] sm:$0xff] %v1325
          %1351 = vst.msk [vmem:[#allocation2 + $0x2d4] sm:$0xf] %vm689, %v1099
          %1352 = vst [vmem:[#allocation2 + $0x2d8] sm:$0xff] %v1326
          %1353 = vst [vmem:[#allocation2 + $0x2e0] sm:$0xff] %v1327
          %1354 = vst [vmem:[#allocation2 + $0x2e8] sm:$0xff] %v1328
          %1355 = vst.msk [vmem:[#allocation2 + $0x2f0] sm:$0xf] %vm689, %v1095
          %1356 = vst [vmem:[#allocation2 + $0x2f4] sm:$0xff] %v1329
          %1357 = vst [vmem:[#allocation2 + $0x2fc] sm:$0xff] %v1330
          %1358 = vst [vmem:[#allocation2 + $0x304] sm:$0xff] %v1331
          %1359 = vst.msk [vmem:[#allocation2 + $0x30c] sm:$0xf] %vm689, %v1099
          %v1360 = vld [vmem:[#allocation2] sm:$0xff]
          %v1361 = vld [vmem:[#allocation2 + $0x8] sm:$0xff]
          %v1362 = vld [vmem:[#allocation2 + $0x10] sm:$0xff]
          %v1363 = vld [vmem:[#allocation2 + $0x18] sm:$0xf]
          %v1364 = vld [vmem:[#allocation2 + $0x1c] sm:$0xff]
          %v1365 = vld [vmem:[#allocation2 + $0x24] sm:$0xff]
          %v1366 = vld [vmem:[#allocation2 + $0x2c] sm:$0xff]
          %v1367 = vld [vmem:[#allocation2 + $0x34] sm:$0xf]
          %v1368 = vld [vmem:[#allocation2 + $0x38] sm:$0xff]
          %v1369 = vld [vmem:[#allocation2 + $0x40] sm:$0xff]
          %v1370 = vld [vmem:[#allocation2 + $0x48] sm:$0xff]
          %v1371 = vld [vmem:[#allocation2 + $0x50] sm:$0xf]
          %v1372 = vld [vmem:[#allocation2 + $0x54] sm:$0xff]
          %v1373 = vld [vmem:[#allocation2 + $0x5c] sm:$0xff]
          %v1374 = vld [vmem:[#allocation2 + $0x64] sm:$0xff]
          %v1375 = vld [vmem:[#allocation2 + $0x6c] sm:$0xf]
          %v1376 = vld [vmem:[#allocation2 + $0x70] sm:$0xff]
          %v1377 = vld [vmem:[#allocation2 + $0x78] sm:$0xff]
          %v1378 = vld [vmem:[#allocation2 + $0x80] sm:$0xff]
          %v1379 = vld [vmem:[#allocation2 + $0x88] sm:$0xf]
          %v1380 = vld [vmem:[#allocation2 + $0x8c] sm:$0xff]
          %v1381 = vld [vmem:[#allocation2 + $0x94] sm:$0xff]
          %v1382 = vld [vmem:[#allocation2 + $0x9c] sm:$0xff]
          %v1383 = vld [vmem:[#allocation2 + $0xa4] sm:$0xf]
          %v1384 = vld [vmem:[#allocation2 + $0xa8] sm:$0xff]
          %v1385 = vld [vmem:[#allocation2 + $0xb0] sm:$0xff]
          %v1386 = vld [vmem:[#allocation2 + $0xb8] sm:$0xff]
          %v1387 = vld [vmem:[#allocation2 + $0xc0] sm:$0xf]
          %v1388 = vld [vmem:[#allocation2 + $0xc4] sm:$0xff]
          %v1389 = vld [vmem:[#allocation2 + $0xcc] sm:$0xff]
          %v1390 = vld [vmem:[#allocation2 + $0xd4] sm:$0xff]
          %v1391 = vld [vmem:[#allocation2 + $0xdc] sm:$0xf]
          %v1392 = vld [vmem:[#allocation2 + $0xe0] sm:$0xff]
          %v1393 = vld [vmem:[#allocation2 + $0xe8] sm:$0xff]
          %v1394 = vld [vmem:[#allocation2 + $0xf0] sm:$0xff]
          %v1395 = vld [vmem:[#allocation2 + $0xf8] sm:$0xf]
          %v1396 = vld [vmem:[#allocation2 + $0xfc] sm:$0xff]
          %v1397 = vld [vmem:[#allocation2 + $0x104] sm:$0xff]
          %v1398 = vld [vmem:[#allocation2 + $0x10c] sm:$0xff]
          %v1399 = vld [vmem:[#allocation2 + $0x114] sm:$0xf]
          %v1400 = vld [vmem:[#allocation2 + $0x118] sm:$0xff]
          %v1401 = vld [vmem:[#allocation2 + $0x120] sm:$0xff]
          %v1402 = vld [vmem:[#allocation2 + $0x128] sm:$0xff]
          %v1403 = vld [vmem:[#allocation2 + $0x130] sm:$0xf]
          %v1404 = vld [vmem:[#allocation2 + $0x134] sm:$0xff]
          %v1405 = vld [vmem:[#allocation2 + $0x13c] sm:$0xff]
          %v1406 = vld [vmem:[#allocation2 + $0x144] sm:$0xff]
          %v1407 = vld [vmem:[#allocation2 + $0x14c] sm:$0xf]
          %v1408 = vld [vmem:[#allocation2 + $0x150] sm:$0xff]
          %v1409 = vld [vmem:[#allocation2 + $0x158] sm:$0xff]
          %v1410 = vld [vmem:[#allocation2 + $0x160] sm:$0xff]
          %v1411 = vld [vmem:[#allocation2 + $0x168] sm:$0xf]
          %v1412 = vld [vmem:[#allocation2 + $0x16c] sm:$0xff]
          %v1413 = vld [vmem:[#allocation2 + $0x174] sm:$0xff]
          %v1414 = vld [vmem:[#allocation2 + $0x17c] sm:$0xff]
          %v1415 = vld [vmem:[#allocation2 + $0x184] sm:$0xf]
          %v1416 = vld [vmem:[#allocation2 + $0x188] sm:$0xff]
          %v1417 = vld [vmem:[#allocation2 + $0x190] sm:$0xff]
          %v1418 = vld [vmem:[#allocation2 + $0x198] sm:$0xff]
          %v1419 = vld [vmem:[#allocation2 + $0x1a0] sm:$0xf]
          %v1420 = vld [vmem:[#allocation2 + $0x1a4] sm:$0xff]
          %v1421 = vld [vmem:[#allocation2 + $0x1ac] sm:$0xff]
          %v1422 = vld [vmem:[#allocation2 + $0x1b4] sm:$0xff]
          %v1423 = vld [vmem:[#allocation2 + $0x1bc] sm:$0xf]
          %v1424 = vld [vmem:[#allocation2 + $0x1c0] sm:$0xff]
          %v1425 = vld [vmem:[#allocation2 + $0x1c8] sm:$0xff]
          %v1426 = vld [vmem:[#allocation2 + $0x1d0] sm:$0xff]
          %v1427 = vld [vmem:[#allocation2 + $0x1d8] sm:$0xf]
          %v1428 = vld [vmem:[#allocation2 + $0x1dc] sm:$0xff]
          %v1429 = vld [vmem:[#allocation2 + $0x1e4] sm:$0xff]
          %v1430 = vld [vmem:[#allocation2 + $0x1ec] sm:$0xff]
          %v1431 = vld [vmem:[#allocation2 + $0x1f4] sm:$0xf]
          %v1432 = vld [vmem:[#allocation2 + $0x1f8] sm:$0xff]
          %v1433 = vld [vmem:[#allocation2 + $0x200] sm:$0xff]
          %v1434 = vld [vmem:[#allocation2 + $0x208] sm:$0xff]
          %v1435 = vld [vmem:[#allocation2 + $0x210] sm:$0xf]
          %v1436 = vld [vmem:[#allocation2 + $0x214] sm:$0xff]
          %v1437 = vld [vmem:[#allocation2 + $0x21c] sm:$0xff]
          %v1438 = vld [vmem:[#allocation2 + $0x224] sm:$0xff]
          %v1439 = vld [vmem:[#allocation2 + $0x22c] sm:$0xf]
          %v1440 = vld [vmem:[#allocation2 + $0x230] sm:$0xff]
          %v1441 = vld [vmem:[#allocation2 + $0x238] sm:$0xff]
          %v1442 = vld [vmem:[#allocation2 + $0x240] sm:$0xff]
          %v1443 = vld [vmem:[#allocation2 + $0x248] sm:$0xf]
          %v1444 = vld [vmem:[#allocation2 + $0x24c] sm:$0xff]
          %v1445 = vld [vmem:[#allocation2 + $0x254] sm:$0xff]
          %v1446 = vld [vmem:[#allocation2 + $0x25c] sm:$0xff]
          %v1447 = vld [vmem:[#allocation2 + $0x264] sm:$0xf]
          %v1448 = vld [vmem:[#allocation2 + $0x268] sm:$0xff]
          %v1449 = vld [vmem:[#allocation2 + $0x270] sm:$0xff]
          %v1450 = vld [vmem:[#allocation2 + $0x278] sm:$0xff]
          %v1451 = vld [vmem:[#allocation2 + $0x280] sm:$0xf]
          %v1452 = vld [vmem:[#allocation2 + $0x284] sm:$0xff]
          %v1453 = vld [vmem:[#allocation2 + $0x28c] sm:$0xff]
          %v1454 = vld [vmem:[#allocation2 + $0x294] sm:$0xff]
          %v1455 = vld [vmem:[#allocation2 + $0x29c] sm:$0xf]
          %v1456 = vld [vmem:[#allocation2 + $0x2a0] sm:$0xff]
          %v1457 = vld [vmem:[#allocation2 + $0x2a8] sm:$0xff]
          %v1458 = vld [vmem:[#allocation2 + $0x2b0] sm:$0xff]
          %v1459 = vld [vmem:[#allocation2 + $0x2b8] sm:$0xf]
          %v1460 = vld [vmem:[#allocation2 + $0x2bc] sm:$0xff]
          %v1461 = vld [vmem:[#allocation2 + $0x2c4] sm:$0xff]
          %v1462 = vld [vmem:[#allocation2 + $0x2cc] sm:$0xff]
          %v1463 = vld [vmem:[#allocation2 + $0x2d4] sm:$0xf]
          %v1464 = vld [vmem:[#allocation2 + $0x2d8] sm:$0xff]
          %v1465 = vld [vmem:[#allocation2 + $0x2e0] sm:$0xff]
          %v1466 = vld [vmem:[#allocation2 + $0x2e8] sm:$0xff]
          %v1467 = vld [vmem:[#allocation2 + $0x2f0] sm:$0xf]
          %v1468 = vld [vmem:[#allocation2 + $0x2f4] sm:$0xff]
          %v1469 = vld [vmem:[#allocation2 + $0x2fc] sm:$0xff]
          %v1470 = vld [vmem:[#allocation2 + $0x304] sm:$0xff]
          %v1471 = vld [vmem:[#allocation2 + $0x30c] sm:$0xf]
          %v1488 = vunpack.c.l.b16 %v151
          %v1489 = vunpack.c.h.b16 %v151
          %v1490 = vunpack.c.l.b16 %v152
          %v1491 = vunpack.c.h.b16 %v152
          %v1492 = vunpack.c.l.b16 %v153
          %v1493 = vunpack.c.h.b16 %v153
          %v1494 = vunpack.c.l.b16 %v154
          %v1495 = vunpack.c.h.b16 %v154
          %v1496 = vunpack.c.l.b16 %v155
          %v1497 = vunpack.c.h.b16 %v155
          %v1498 = vunpack.c.l.b16 %v156
          %v1499 = vunpack.c.h.b16 %v156
          %v1500 = vunpack.c.l.b16 %v157
          %v1501 = vunpack.c.h.b16 %v157
          %v1502 = vunpack.c.l.b16 %v158
          %v1503 = vunpack.c.h.b16 %v158
          %v1504 = vunpack.c.l.b16 %v159
          %v1505 = vunpack.c.h.b16 %v159
          %v1506 = vunpack.c.l.b16 %v160
          %v1507 = vunpack.c.h.b16 %v160
          %v1508 = vunpack.c.l.b16 %v161
          %v1509 = vunpack.c.h.b16 %v161
          %v1510 = vunpack.c.l.b16 %v162
          %v1511 = vunpack.c.h.b16 %v162
          %v1512 = vunpack.c.l.b16 %v163
          %v1513 = vunpack.c.h.b16 %v163
          %v1514 = vunpack.c.l.b16 %v164
          %v1515 = vunpack.c.h.b16 %v164
          %v1516 = vunpack.c.l.b16 %v165
          %v1517 = vunpack.c.h.b16 %v165
          %v1518 = vunpack.c.l.b16 %v166
          %v1519 = vunpack.c.h.b16 %v166
          %v1520 = vpack.c.b16 %v1490, %v1488
          %v1521 = vpack.c.b16 %v1491, %v1489
          %v1522 = vpack.c.b16 %v1494, %v1492
          %v1523 = vpack.c.b16 %v1495, %v1493
          %v1524 = vpack.c.b16 %v1498, %v1496
          %v1525 = vpack.c.b16 %v1499, %v1497
          %v1526 = vpack.c.b16 %v1502, %v1500
          %v1527 = vpack.c.b16 %v1503, %v1501
          %v1528 = vpack.c.b16 %v1506, %v1504
          %v1529 = vpack.c.b16 %v1507, %v1505
          %v1530 = vpack.c.b16 %v1510, %v1508
          %v1531 = vpack.c.b16 %v1511, %v1509
          %v1532 = vpack.c.b16 %v1514, %v1512
          %v1533 = vpack.c.b16 %v1515, %v1513
          %v1534 = vpack.c.b16 %v1518, %v1516
          %v1535 = vpack.c.b16 %v1519, %v1517
          %v1656 = vunpack.c.l.b16 %v1360
          %v1657 = vunpack.c.h.b16 %v1360
          %v1658 = vunpack.c.l.b16 %v1361
          %v1659 = vunpack.c.h.b16 %v1361
          %v1660 = vunpack.c.l.b16 %v1362
          %v1661 = vunpack.c.h.b16 %v1362
          %v1662 = vunpack.c.l.b16 %v1363
          %v1663 = vunpack.c.l.b16 %v1364
          %v1664 = vunpack.c.h.b16 %v1364
          %v1665 = vunpack.c.l.b16 %v1365
          %v1666 = vunpack.c.h.b16 %v1365
          %v1667 = vunpack.c.l.b16 %v1366
          %v1668 = vunpack.c.h.b16 %v1366
          %v1669 = vunpack.c.l.b16 %v1367
          %v1670 = vunpack.c.l.b16 %v1368
          %v1671 = vunpack.c.h.b16 %v1368
          %v1672 = vunpack.c.l.b16 %v1369
          %v1673 = vunpack.c.h.b16 %v1369
          %v1674 = vunpack.c.l.b16 %v1370
          %v1675 = vunpack.c.h.b16 %v1370
          %v1676 = vunpack.c.l.b16 %v1371
          %v1677 = vunpack.c.l.b16 %v1372
          %v1678 = vunpack.c.h.b16 %v1372
          %v1679 = vunpack.c.l.b16 %v1373
          %v1680 = vunpack.c.h.b16 %v1373
          %v1681 = vunpack.c.l.b16 %v1374
          %v1682 = vunpack.c.h.b16 %v1374
          %v1683 = vunpack.c.l.b16 %v1375
          %v1684 = vunpack.c.l.b16 %v1376
          %v1685 = vunpack.c.h.b16 %v1376
          %v1686 = vunpack.c.l.b16 %v1377
          %v1687 = vunpack.c.h.b16 %v1377
          %v1688 = vunpack.c.l.b16 %v1378
          %v1689 = vunpack.c.h.b16 %v1378
          %v1690 = vunpack.c.l.b16 %v1379
          %v1691 = vunpack.c.l.b16 %v1380
          %v1692 = vunpack.c.h.b16 %v1380
          %v1693 = vunpack.c.l.b16 %v1381
          %v1694 = vunpack.c.h.b16 %v1381
          %v1695 = vunpack.c.l.b16 %v1382
          %v1696 = vunpack.c.h.b16 %v1382
          %v1697 = vunpack.c.l.b16 %v1383
          %v1698 = vunpack.c.l.b16 %v1384
          %v1699 = vunpack.c.h.b16 %v1384
          %v1700 = vunpack.c.l.b16 %v1385
          %v1701 = vunpack.c.h.b16 %v1385
          %v1702 = vunpack.c.l.b16 %v1386
          %v1703 = vunpack.c.h.b16 %v1386
          %v1704 = vunpack.c.l.b16 %v1387
          %v1705 = vunpack.c.l.b16 %v1388
          %v1706 = vunpack.c.h.b16 %v1388
          %v1707 = vunpack.c.l.b16 %v1389
          %v1708 = vunpack.c.h.b16 %v1389
          %v1709 = vunpack.c.l.b16 %v1390
          %v1710 = vunpack.c.h.b16 %v1390
          %v1711 = vunpack.c.l.b16 %v1391
          %v1712 = vunpack.c.l.b16 %v1392
          %v1713 = vunpack.c.h.b16 %v1392
          %v1714 = vunpack.c.l.b16 %v1393
          %v1715 = vunpack.c.h.b16 %v1393
          %v1716 = vunpack.c.l.b16 %v1394
          %v1717 = vunpack.c.h.b16 %v1394
          %v1718 = vunpack.c.l.b16 %v1395
          %v1719 = vunpack.c.l.b16 %v1396
          %v1720 = vunpack.c.h.b16 %v1396
          %v1721 = vunpack.c.l.b16 %v1397
          %v1722 = vunpack.c.h.b16 %v1397
          %v1723 = vunpack.c.l.b16 %v1398
          %v1724 = vunpack.c.h.b16 %v1398
          %v1725 = vunpack.c.l.b16 %v1399
          %v1726 = vunpack.c.l.b16 %v1400
          %v1727 = vunpack.c.h.b16 %v1400
          %v1728 = vunpack.c.l.b16 %v1401
          %v1729 = vunpack.c.h.b16 %v1401
          %v1730 = vunpack.c.l.b16 %v1402
          %v1731 = vunpack.c.h.b16 %v1402
          %v1732 = vunpack.c.l.b16 %v1403
          %v1733 = vunpack.c.l.b16 %v1404
          %v1734 = vunpack.c.h.b16 %v1404
          %v1735 = vunpack.c.l.b16 %v1405
          %v1736 = vunpack.c.h.b16 %v1405
          %v1737 = vunpack.c.l.b16 %v1406
          %v1738 = vunpack.c.h.b16 %v1406
          %v1739 = vunpack.c.l.b16 %v1407
          %v1740 = vunpack.c.l.b16 %v1408
          %v1741 = vunpack.c.h.b16 %v1408
          %v1742 = vunpack.c.l.b16 %v1409
          %v1743 = vunpack.c.h.b16 %v1409
          %v1744 = vunpack.c.l.b16 %v1410
          %v1745 = vunpack.c.h.b16 %v1410
          %v1746 = vunpack.c.l.b16 %v1411
          %v1747 = vunpack.c.l.b16 %v1412
          %v1748 = vunpack.c.h.b16 %v1412
          %v1749 = vunpack.c.l.b16 %v1413
          %v1750 = vunpack.c.h.b16 %v1413
          %v1751 = vunpack.c.l.b16 %v1414
          %v1752 = vunpack.c.h.b16 %v1414
          %v1753 = vunpack.c.l.b16 %v1415
          %v1754 = vunpack.c.l.b16 %v1416
          %v1755 = vunpack.c.h.b16 %v1416
          %v1756 = vunpack.c.l.b16 %v1417
          %v1757 = vunpack.c.h.b16 %v1417
          %v1758 = vunpack.c.l.b16 %v1418
          %v1759 = vunpack.c.h.b16 %v1418
          %v1760 = vunpack.c.l.b16 %v1419
          %v1761 = vunpack.c.l.b16 %v1420
          %v1762 = vunpack.c.h.b16 %v1420
          %v1763 = vunpack.c.l.b16 %v1421
          %v1764 = vunpack.c.h.b16 %v1421
          %v1765 = vunpack.c.l.b16 %v1422
          %v1766 = vunpack.c.h.b16 %v1422
          %v1767 = vunpack.c.l.b16 %v1423
          %v1768 = vunpack.c.l.b16 %v1424
          %v1769 = vunpack.c.h.b16 %v1424
          %v1770 = vunpack.c.l.b16 %v1425
          %v1771 = vunpack.c.h.b16 %v1425
          %v1772 = vunpack.c.l.b16 %v1426
          %v1773 = vunpack.c.h.b16 %v1426
          %v1774 = vunpack.c.l.b16 %v1427
          %v1775 = vunpack.c.l.b16 %v1428
          %v1776 = vunpack.c.h.b16 %v1428
          %v1777 = vunpack.c.l.b16 %v1429
          %v1778 = vunpack.c.h.b16 %v1429
          %v1779 = vunpack.c.l.b16 %v1430
          %v1780 = vunpack.c.h.b16 %v1430
          %v1781 = vunpack.c.l.b16 %v1431
          %v1782 = vunpack.c.l.b16 %v1432
          %v1783 = vunpack.c.h.b16 %v1432
          %v1784 = vunpack.c.l.b16 %v1433
          %v1785 = vunpack.c.h.b16 %v1433
          %v1786 = vunpack.c.l.b16 %v1434
          %v1787 = vunpack.c.h.b16 %v1434
          %v1788 = vunpack.c.l.b16 %v1435
          %v1789 = vunpack.c.l.b16 %v1436
          %v1790 = vunpack.c.h.b16 %v1436
          %v1791 = vunpack.c.l.b16 %v1437
          %v1792 = vunpack.c.h.b16 %v1437
          %v1793 = vunpack.c.l.b16 %v1438
          %v1794 = vunpack.c.h.b16 %v1438
          %v1795 = vunpack.c.l.b16 %v1439
          %v1796 = vunpack.c.l.b16 %v1440
          %v1797 = vunpack.c.h.b16 %v1440
          %v1798 = vunpack.c.l.b16 %v1441
          %v1799 = vunpack.c.h.b16 %v1441
          %v1800 = vunpack.c.l.b16 %v1442
          %v1801 = vunpack.c.h.b16 %v1442
          %v1802 = vunpack.c.l.b16 %v1443
          %v1803 = vunpack.c.l.b16 %v1444
          %v1804 = vunpack.c.h.b16 %v1444
          %v1805 = vunpack.c.l.b16 %v1445
          %v1806 = vunpack.c.h.b16 %v1445
          %v1807 = vunpack.c.l.b16 %v1446
          %v1808 = vunpack.c.h.b16 %v1446
          %v1809 = vunpack.c.l.b16 %v1447
          %v1810 = vunpack.c.l.b16 %v1448
          %v1811 = vunpack.c.h.b16 %v1448
          %v1812 = vunpack.c.l.b16 %v1449
          %v1813 = vunpack.c.h.b16 %v1449
          %v1814 = vunpack.c.l.b16 %v1450
          %v1815 = vunpack.c.h.b16 %v1450
          %v1816 = vunpack.c.l.b16 %v1451
          %v1817 = vunpack.c.l.b16 %v1452
          %v1818 = vunpack.c.h.b16 %v1452
          %v1819 = vunpack.c.l.b16 %v1453
          %v1820 = vunpack.c.h.b16 %v1453
          %v1821 = vunpack.c.l.b16 %v1454
          %v1822 = vunpack.c.h.b16 %v1454
          %v1823 = vunpack.c.l.b16 %v1455
          %v1824 = vunpack.c.l.b16 %v1456
          %v1825 = vunpack.c.h.b16 %v1456
          %v1826 = vunpack.c.l.b16 %v1457
          %v1827 = vunpack.c.h.b16 %v1457
          %v1828 = vunpack.c.l.b16 %v1458
          %v1829 = vunpack.c.h.b16 %v1458
          %v1830 = vunpack.c.l.b16 %v1459
          %v1831 = vunpack.c.l.b16 %v1460
          %v1832 = vunpack.c.h.b16 %v1460
          %v1833 = vunpack.c.l.b16 %v1461
          %v1834 = vunpack.c.h.b16 %v1461
          %v1835 = vunpack.c.l.b16 %v1462
          %v1836 = vunpack.c.h.b16 %v1462
          %v1837 = vunpack.c.l.b16 %v1463
          %v1838 = vunpack.c.l.b16 %v1464
          %v1839 = vunpack.c.h.b16 %v1464
          %v1840 = vunpack.c.l.b16 %v1465
          %v1841 = vunpack.c.h.b16 %v1465
          %v1842 = vunpack.c.l.b16 %v1466
          %v1843 = vunpack.c.h.b16 %v1466
          %v1844 = vunpack.c.l.b16 %v1467
          %v1845 = vunpack.c.l.b16 %v1468
          %v1846 = vunpack.c.h.b16 %v1468
          %v1847 = vunpack.c.l.b16 %v1469
          %v1848 = vunpack.c.h.b16 %v1469
          %v1849 = vunpack.c.l.b16 %v1470
          %v1850 = vunpack.c.h.b16 %v1470
          %v1851 = vunpack.c.l.b16 %v1471
          %v1852 = vpack.c.b16 %v1663, %v1656
          %v1853 = vpack.c.b16 %v1664, %v1657
          %v1854 = vpack.c.b16 %v1665, %v1658
          %v1855 = vpack.c.b16 %v1666, %v1659
          %v1856 = vpack.c.b16 %v1667, %v1660
          %v1857 = vpack.c.b16 %v1668, %v1661
          %v1858 = vpack.c.b16 %v1669, %v1662
          %v1859 = vpack.c.b16 %v1677, %v1670
          %v1860 = vpack.c.b16 %v1678, %v1671
          %v1861 = vpack.c.b16 %v1679, %v1672
          %v1862 = vpack.c.b16 %v1680, %v1673
          %v1863 = vpack.c.b16 %v1681, %v1674
          %v1864 = vpack.c.b16 %v1682, %v1675
          %v1865 = vpack.c.b16 %v1683, %v1676
          %v1866 = vpack.c.b16 %v1691, %v1684
          %v1867 = vpack.c.b16 %v1692, %v1685
          %v1868 = vpack.c.b16 %v1693, %v1686
          %v1869 = vpack.c.b16 %v1694, %v1687
          %v1870 = vpack.c.b16 %v1695, %v1688
          %v1871 = vpack.c.b16 %v1696, %v1689
          %v1872 = vpack.c.b16 %v1697, %v1690
          %v1873 = vpack.c.b16 %v1705, %v1698
          %v1874 = vpack.c.b16 %v1706, %v1699
          %v1875 = vpack.c.b16 %v1707, %v1700
          %v1876 = vpack.c.b16 %v1708, %v1701
          %v1877 = vpack.c.b16 %v1709, %v1702
          %v1878 = vpack.c.b16 %v1710, %v1703
          %v1879 = vpack.c.b16 %v1711, %v1704
          %v1880 = vpack.c.b16 %v1719, %v1712
          %v1881 = vpack.c.b16 %v1720, %v1713
          %v1882 = vpack.c.b16 %v1721, %v1714
          %v1883 = vpack.c.b16 %v1722, %v1715
          %v1884 = vpack.c.b16 %v1723, %v1716
          %v1885 = vpack.c.b16 %v1724, %v1717
          %v1886 = vpack.c.b16 %v1725, %v1718
          %v1887 = vpack.c.b16 %v1733, %v1726
          %v1888 = vpack.c.b16 %v1734, %v1727
          %v1889 = vpack.c.b16 %v1735, %v1728
          %v1890 = vpack.c.b16 %v1736, %v1729
          %v1891 = vpack.c.b16 %v1737, %v1730
          %v1892 = vpack.c.b16 %v1738, %v1731
          %v1893 = vpack.c.b16 %v1739, %v1732
          %v1894 = vpack.c.b16 %v1747, %v1740
          %v1895 = vpack.c.b16 %v1748, %v1741
          %v1896 = vpack.c.b16 %v1749, %v1742
          %v1897 = vpack.c.b16 %v1750, %v1743
          %v1898 = vpack.c.b16 %v1751, %v1744
          %v1899 = vpack.c.b16 %v1752, %v1745
          %v1900 = vpack.c.b16 %v1753, %v1746
          %v1901 = vpack.c.b16 %v1761, %v1754
          %v1902 = vpack.c.b16 %v1762, %v1755
          %v1903 = vpack.c.b16 %v1763, %v1756
          %v1904 = vpack.c.b16 %v1764, %v1757
          %v1905 = vpack.c.b16 %v1765, %v1758
          %v1906 = vpack.c.b16 %v1766, %v1759
          %v1907 = vpack.c.b16 %v1767, %v1760
          %v1908 = vpack.c.b16 %v1775, %v1768
          %v1909 = vpack.c.b16 %v1776, %v1769
          %v1910 = vpack.c.b16 %v1777, %v1770
          %v1911 = vpack.c.b16 %v1778, %v1771
          %v1912 = vpack.c.b16 %v1779, %v1772
          %v1913 = vpack.c.b16 %v1780, %v1773
          %v1914 = vpack.c.b16 %v1781, %v1774
          %v1915 = vpack.c.b16 %v1789, %v1782
          %v1916 = vpack.c.b16 %v1790, %v1783
          %v1917 = vpack.c.b16 %v1791, %v1784
          %v1918 = vpack.c.b16 %v1792, %v1785
          %v1919 = vpack.c.b16 %v1793, %v1786
          %v1920 = vpack.c.b16 %v1794, %v1787
          %v1921 = vpack.c.b16 %v1795, %v1788
          %v1922 = vpack.c.b16 %v1803, %v1796
          %v1923 = vpack.c.b16 %v1804, %v1797
          %v1924 = vpack.c.b16 %v1805, %v1798
          %v1925 = vpack.c.b16 %v1806, %v1799
          %v1926 = vpack.c.b16 %v1807, %v1800
          %v1927 = vpack.c.b16 %v1808, %v1801
          %v1928 = vpack.c.b16 %v1809, %v1802
          %v1929 = vpack.c.b16 %v1817, %v1810
          %v1930 = vpack.c.b16 %v1818, %v1811
          %v1931 = vpack.c.b16 %v1819, %v1812
          %v1932 = vpack.c.b16 %v1820, %v1813
          %v1933 = vpack.c.b16 %v1821, %v1814
          %v1934 = vpack.c.b16 %v1822, %v1815
          %v1935 = vpack.c.b16 %v1823, %v1816
          %v1936 = vpack.c.b16 %v1831, %v1824
          %v1937 = vpack.c.b16 %v1832, %v1825
          %v1938 = vpack.c.b16 %v1833, %v1826
          %v1939 = vpack.c.b16 %v1834, %v1827
          %v1940 = vpack.c.b16 %v1835, %v1828
          %v1941 = vpack.c.b16 %v1836, %v1829
          %v1942 = vpack.c.b16 %v1837, %v1830
          %v1943 = vpack.c.b16 %v1845, %v1838
          %v1944 = vpack.c.b16 %v1846, %v1839
          %v1945 = vpack.c.b16 %v1847, %v1840
          %v1946 = vpack.c.b16 %v1848, %v1841
          %v1947 = vpack.c.b16 %v1849, %v1842
          %v1948 = vpack.c.b16 %v1850, %v1843
          %v1949 = vpack.c.b16 %v1851, %v1844
          %vm2048 = vcmask 785408
          %v2050 = vsel %vm2048, %v1521, 0
          %v2053 = vsel %vm2048, %v1523, 0
          %v2056 = vsel %vm2048, %v1525, 0
          %v2059 = vsel %vm2048, %v1527, 0
          %v2062 = vsel %vm2048, %v1529, 0
          %v2065 = vsel %vm2048, %v1531, 0
          %v2068 = vsel %vm2048, %v1533, 0
          %v2071 = vsel %vm2048, %v1535, 0
          %2073 = vmatprep.subr.bf16.mxu0 %v1902
          %2074 = vmatpush1.bf16.msra.mxu0 %v1901
          %2075 = vmatprep.subr.bf16.mxu0 %v1895
          %2076 = vmatpush1.bf16.msra.mxu0 %v1894
          %2077 = vmatprep.subr.bf16.mxu0 %v1888
          %2078 = vmatpush1.bf16.msra.mxu0 %v1887
          %2079 = vmatprep.subr.bf16.mxu0 %v1881
          %2080 = vmatpush1.bf16.msra.mxu0 %v1880
          %2081 = vmatprep.subr.bf16.mxu0 %v1874
          %2082 = vmatpush1.bf16.msra.mxu0 %v1873
          %2083 = vmatprep.subr.bf16.mxu0 %v1867
          %2084 = vmatpush1.bf16.msra.mxu0 %v1866
          %2085 = vmatprep.subr.bf16.mxu0 %v1860
          %2086 = vmatpush1.bf16.msra.mxu0 %v1859
          %2087 = vmatprep.subr.bf16.mxu0 %v1853
          %2088 = vmatpush1.bf16.msra.mxu0 %v1852
          %2089 = vmatprep.subr.bf16.mxu0 0
          %2090 = vmatpush2.bf16.msra.mxu0 0
          %2091 = vmatprep.subr.bf16.mxu0 0
          %2092 = vmatpush2.bf16.msra.mxu0 0
          %2093 = vmatprep.subr.bf16.mxu0 %v1944
          %2094 = vmatpush2.bf16.msra.mxu0 %v1943
          %2095 = vmatprep.subr.bf16.mxu0 %v1937
          %2096 = vmatpush2.bf16.msra.mxu0 %v1936
          %2097 = vmatprep.subr.bf16.mxu0 %v1930
          %2098 = vmatpush2.bf16.msra.mxu0 %v1929
          %2099 = vmatprep.subr.bf16.mxu0 %v1923
          %2100 = vmatpush2.bf16.msra.mxu0 %v1922
          %2101 = vmatprep.subr.bf16.mxu0 %v1916
          %2102 = vmatpush2.bf16.msra.mxu0 %v1915
          %2103 = vmatprep.subr.bf16.mxu0 %v1909
          %2104 = vmatpush2.bf16.msra.mxu0 %v1908
          %2105 = vmatprep.mubr.bf16.mxu0 %v2050
          %2106 = vmatmul.mubr.bf16.gmra.mxu0 %v1520
          %v2107 = vpop.f32.mrf.mxu0
          %v2108 = vadd.f32 0.0, %v2107
          %v2109 = vpop.f32.mrf.mxu0
          %v2110 = vadd.f32 0.0, %v2109
          %v2111 = vpop.f32.mrf.mxu0
          %v2112 = vadd.f32 0.0, %v2111
          %v2113 = vpop.f32.mrf.mxu0
          %v2114 = vadd.f32 0.0, %v2113
          %2115 = vmatprep.mubr.bf16.mxu0 %v2053
          %2116 = vmatmul.mubr.bf16.gmra.mxu0 %v1522
          %v2117 = vpop.f32.mrf.mxu0
          %v2118 = vadd.f32 0.0, %v2117
          %v2119 = vpop.f32.mrf.mxu0
          %v2120 = vadd.f32 0.0, %v2119
          %v2121 = vpop.f32.mrf.mxu0
          %v2122 = vadd.f32 0.0, %v2121
          %v2123 = vpop.f32.mrf.mxu0
          %v2124 = vadd.f32 0.0, %v2123
          %2125 = vmatprep.mubr.bf16.mxu0 %v2056
          %2126 = vmatmul.mubr.bf16.gmra.mxu0 %v1524
          %v2127 = vpop.f32.mrf.mxu0
          %v2128 = vadd.f32 0.0, %v2127
          %v2129 = vpop.f32.mrf.mxu0
          %v2130 = vadd.f32 0.0, %v2129
          %v2131 = vpop.f32.mrf.mxu0
          %v2132 = vadd.f32 0.0, %v2131
          %v2133 = vpop.f32.mrf.mxu0
          %v2134 = vadd.f32 0.0, %v2133
          %2135 = vmatprep.mubr.bf16.mxu0 %v2059
          %2136 = vmatmul.mubr.bf16.gmra.mxu0 %v1526
          %v2137 = vpop.f32.mrf.mxu0
          %v2138 = vadd.f32 0.0, %v2137
          %v2139 = vpop.f32.mrf.mxu0
          %v2140 = vadd.f32 0.0, %v2139
          %v2141 = vpop.f32.mrf.mxu0
          %v2142 = vadd.f32 0.0, %v2141
          %v2143 = vpop.f32.mrf.mxu0
          %v2144 = vadd.f32 0.0, %v2143
          %2145 = vmatprep.mubr.bf16.mxu0 %v2062
          %2146 = vmatmul.mubr.bf16.gmra.mxu0 %v1528
          %v2147 = vpop.f32.mrf.mxu0
          %v2148 = vadd.f32 0.0, %v2147
          %v2149 = vpop.f32.mrf.mxu0
          %v2150 = vadd.f32 0.0, %v2149
          %v2151 = vpop.f32.mrf.mxu0
          %v2152 = vadd.f32 0.0, %v2151
          %v2153 = vpop.f32.mrf.mxu0
          %v2154 = vadd.f32 0.0, %v2153
          %2155 = vmatprep.mubr.bf16.mxu0 %v2065
          %2156 = vmatmul.mubr.bf16.gmra.mxu0 %v1530
          %v2157 = vpop.f32.mrf.mxu0
          %v2158 = vadd.f32 0.0, %v2157
          %v2159 = vpop.f32.mrf.mxu0
          %v2160 = vadd.f32 0.0, %v2159
          %v2161 = vpop.f32.mrf.mxu0
          %v2162 = vadd.f32 0.0, %v2161
          %v2163 = vpop.f32.mrf.mxu0
          %v2164 = vadd.f32 0.0, %v2163
          %2165 = vmatprep.mubr.bf16.mxu0 %v2068
          %2166 = vmatmul.mubr.bf16.gmra.mxu0 %v1532
          %v2167 = vpop.f32.mrf.mxu0
          %v2168 = vadd.f32 0.0, %v2167
          %v2169 = vpop.f32.mrf.mxu0
          %v2170 = vadd.f32 0.0, %v2169
          %v2171 = vpop.f32.mrf.mxu0
          %v2172 = vadd.f32 0.0, %v2171
          %v2173 = vpop.f32.mrf.mxu0
          %v2174 = vadd.f32 0.0, %v2173
          %2175 = vmatprep.mubr.bf16.mxu0 %v2071
          %2176 = vmatmul.mubr.bf16.gmra.mxu0 %v1534
          %v2177 = vpop.f32.mrf.mxu0
          %v2178 = vadd.f32 0.0, %v2177
          %v2179 = vpop.f32.mrf.mxu0
          %v2180 = vadd.f32 0.0, %v2179
          %v2181 = vpop.f32.mrf.mxu0
          %v2182 = vadd.f32 0.0, %v2181
          %v2183 = vpop.f32.mrf.mxu0
          %v2184 = vadd.f32 0.0, %v2183
          %2185 = vdwg.mxu0
          %2186 = vmatprep.subr.bf16.mxu0 %v1904
          %2187 = vmatpush1.bf16.msra.mxu0 %v1903
          %2188 = vmatprep.subr.bf16.mxu0 %v1897
          %2189 = vmatpush1.bf16.msra.mxu0 %v1896
          %2190 = vmatprep.subr.bf16.mxu0 %v1890
          %2191 = vmatpush1.bf16.msra.mxu0 %v1889
          %2192 = vmatprep.subr.bf16.mxu0 %v1883
          %2193 = vmatpush1.bf16.msra.mxu0 %v1882
          %2194 = vmatprep.subr.bf16.mxu0 %v1876
          %2195 = vmatpush1.bf16.msra.mxu0 %v1875
          %2196 = vmatprep.subr.bf16.mxu0 %v1869
          %2197 = vmatpush1.bf16.msra.mxu0 %v1868
          %2198 = vmatprep.subr.bf16.mxu0 %v1862
          %2199 = vmatpush1.bf16.msra.mxu0 %v1861
          %2200 = vmatprep.subr.bf16.mxu0 %v1855
          %2201 = vmatpush1.bf16.msra.mxu0 %v1854
          %2202 = vmatprep.subr.bf16.mxu0 0
          %2203 = vmatpush2.bf16.msra.mxu0 0
          %2204 = vmatprep.subr.bf16.mxu0 0
          %2205 = vmatpush2.bf16.msra.mxu0 0
          %2206 = vmatprep.subr.bf16.mxu0 %v1946
          %2207 = vmatpush2.bf16.msra.mxu0 %v1945
          %2208 = vmatprep.subr.bf16.mxu0 %v1939
          %2209 = vmatpush2.bf16.msra.mxu0 %v1938
          %2210 = vmatprep.subr.bf16.mxu0 %v1932
          %2211 = vmatpush2.bf16.msra.mxu0 %v1931
          %2212 = vmatprep.subr.bf16.mxu0 %v1925
          %2213 = vmatpush2.bf16.msra.mxu0 %v1924
          %2214 = vmatprep.subr.bf16.mxu0 %v1918
          %2215 = vmatpush2.bf16.msra.mxu0 %v1917
          %2216 = vmatprep.subr.bf16.mxu0 %v1911
          %2217 = vmatpush2.bf16.msra.mxu0 %v1910
          %2218 = vmatprep.mubr.bf16.mxu0 %v2050
          %2219 = vmatmul.mubr.bf16.gmra.mxu0 %v1520
          %v2220 = vpop.f32.mrf.mxu0
          %v2221 = vadd.f32 0.0, %v2220
          %v2222 = vpop.f32.mrf.mxu0
          %v2223 = vadd.f32 0.0, %v2222
          %v2224 = vpop.f32.mrf.mxu0
          %v2225 = vadd.f32 0.0, %v2224
          %v2226 = vpop.f32.mrf.mxu0
          %v2227 = vadd.f32 0.0, %v2226
          %2228 = vmatprep.mubr.bf16.mxu0 %v2053
          %2229 = vmatmul.mubr.bf16.gmra.mxu0 %v1522
          %v2230 = vpop.f32.mrf.mxu0
          %v2231 = vadd.f32 0.0, %v2230
          %v2232 = vpop.f32.mrf.mxu0
          %v2233 = vadd.f32 0.0, %v2232
          %v2234 = vpop.f32.mrf.mxu0
          %v2235 = vadd.f32 0.0, %v2234
          %v2236 = vpop.f32.mrf.mxu0
          %v2237 = vadd.f32 0.0, %v2236
          %2238 = vmatprep.mubr.bf16.mxu0 %v2056
          %2239 = vmatmul.mubr.bf16.gmra.mxu0 %v1524
          %v2240 = vpop.f32.mrf.mxu0
          %v2241 = vadd.f32 0.0, %v2240
          %v2242 = vpop.f32.mrf.mxu0
          %v2243 = vadd.f32 0.0, %v2242
          %v2244 = vpop.f32.mrf.mxu0
          %v2245 = vadd.f32 0.0, %v2244
          %v2246 = vpop.f32.mrf.mxu0
          %v2247 = vadd.f32 0.0, %v2246
          %2248 = vmatprep.mubr.bf16.mxu0 %v2059
          %2249 = vmatmul.mubr.bf16.gmra.mxu0 %v1526
          %v2250 = vpop.f32.mrf.mxu0
          %v2251 = vadd.f32 0.0, %v2250
          %v2252 = vpop.f32.mrf.mxu0
          %v2253 = vadd.f32 0.0, %v2252
          %v2254 = vpop.f32.mrf.mxu0
          %v2255 = vadd.f32 0.0, %v2254
          %v2256 = vpop.f32.mrf.mxu0
          %v2257 = vadd.f32 0.0, %v2256
          %2258 = vmatprep.mubr.bf16.mxu0 %v2062
          %2259 = vmatmul.mubr.bf16.gmra.mxu0 %v1528
          %v2260 = vpop.f32.mrf.mxu0
          %v2261 = vadd.f32 0.0, %v2260
          %v2262 = vpop.f32.mrf.mxu0
          %v2263 = vadd.f32 0.0, %v2262
          %v2264 = vpop.f32.mrf.mxu0
          %v2265 = vadd.f32 0.0, %v2264
          %v2266 = vpop.f32.mrf.mxu0
          %v2267 = vadd.f32 0.0, %v2266
          %2268 = vmatprep.mubr.bf16.mxu0 %v2065
          %2269 = vmatmul.mubr.bf16.gmra.mxu0 %v1530
          %v2270 = vpop.f32.mrf.mxu0
          %v2271 = vadd.f32 0.0, %v2270
          %v2272 = vpop.f32.mrf.mxu0
          %v2273 = vadd.f32 0.0, %v2272
          %v2274 = vpop.f32.mrf.mxu0
          %v2275 = vadd.f32 0.0, %v2274
          %v2276 = vpop.f32.mrf.mxu0
          %v2277 = vadd.f32 0.0, %v2276
          %2278 = vmatprep.mubr.bf16.mxu0 %v2068
          %2279 = vmatmul.mubr.bf16.gmra.mxu0 %v1532
          %v2280 = vpop.f32.mrf.mxu0
          %v2281 = vadd.f32 0.0, %v2280
          %v2282 = vpop.f32.mrf.mxu0
          %v2283 = vadd.f32 0.0, %v2282
          %v2284 = vpop.f32.mrf.mxu0
          %v2285 = vadd.f32 0.0, %v2284
          %v2286 = vpop.f32.mrf.mxu0
          %v2287 = vadd.f32 0.0, %v2286
          %2288 = vmatprep.mubr.bf16.mxu0 %v2071
          %2289 = vmatmul.mubr.bf16.gmra.mxu0 %v1534
          %v2290 = vpop.f32.mrf.mxu0
          %v2291 = vadd.f32 0.0, %v2290
          %v2292 = vpop.f32.mrf.mxu0
          %v2293 = vadd.f32 0.0, %v2292
          %v2294 = vpop.f32.mrf.mxu0
          %v2295 = vadd.f32 0.0, %v2294
          %v2296 = vpop.f32.mrf.mxu0
          %v2297 = vadd.f32 0.0, %v2296
          %2298 = vdwg.mxu0
          %2299 = vmatprep.subr.bf16.mxu0 %v1906
          %2300 = vmatpush1.bf16.msra.mxu0 %v1905
          %2301 = vmatprep.subr.bf16.mxu0 %v1899
          %2302 = vmatpush1.bf16.msra.mxu0 %v1898
          %2303 = vmatprep.subr.bf16.mxu0 %v1892
          %2304 = vmatpush1.bf16.msra.mxu0 %v1891
          %2305 = vmatprep.subr.bf16.mxu0 %v1885
          %2306 = vmatpush1.bf16.msra.mxu0 %v1884
          %2307 = vmatprep.subr.bf16.mxu0 %v1878
          %2308 = vmatpush1.bf16.msra.mxu0 %v1877
          %2309 = vmatprep.subr.bf16.mxu0 %v1871
          %2310 = vmatpush1.bf16.msra.mxu0 %v1870
          %2311 = vmatprep.subr.bf16.mxu0 %v1864
          %2312 = vmatpush1.bf16.msra.mxu0 %v1863
          %2313 = vmatprep.subr.bf16.mxu0 %v1857
          %2314 = vmatpush1.bf16.msra.mxu0 %v1856
          %2315 = vmatprep.subr.bf16.mxu0 0
          %2316 = vmatpush2.bf16.msra.mxu0 0
          %2317 = vmatprep.subr.bf16.mxu0 0
          %2318 = vmatpush2.bf16.msra.mxu0 0
          %2319 = vmatprep.subr.bf16.mxu0 %v1948
          %2320 = vmatpush2.bf16.msra.mxu0 %v1947
          %2321 = vmatprep.subr.bf16.mxu0 %v1941
          %2322 = vmatpush2.bf16.msra.mxu0 %v1940
          %2323 = vmatprep.subr.bf16.mxu0 %v1934
          %2324 = vmatpush2.bf16.msra.mxu0 %v1933
          %2325 = vmatprep.subr.bf16.mxu0 %v1927
          %2326 = vmatpush2.bf16.msra.mxu0 %v1926
          %2327 = vmatprep.subr.bf16.mxu0 %v1920
          %2328 = vmatpush2.bf16.msra.mxu0 %v1919
          %2329 = vmatprep.subr.bf16.mxu0 %v1913
          %2330 = vmatpush2.bf16.msra.mxu0 %v1912
          %2331 = vmatprep.mubr.bf16.mxu0 %v2050
          %2332 = vmatmul.mubr.bf16.gmra.mxu0 %v1520
          %v2333 = vpop.f32.mrf.mxu0
          %v2334 = vadd.f32 0.0, %v2333
          %v2335 = vpop.f32.mrf.mxu0
          %v2336 = vadd.f32 0.0, %v2335
          %v2337 = vpop.f32.mrf.mxu0
          %v2338 = vadd.f32 0.0, %v2337
          %v2339 = vpop.f32.mrf.mxu0
          %v2340 = vadd.f32 0.0, %v2339
          %2341 = vmatprep.mubr.bf16.mxu0 %v2053
          %2342 = vmatmul.mubr.bf16.gmra.mxu0 %v1522
          %v2343 = vpop.f32.mrf.mxu0
          %v2344 = vadd.f32 0.0, %v2343
          %v2345 = vpop.f32.mrf.mxu0
          %v2346 = vadd.f32 0.0, %v2345
          %v2347 = vpop.f32.mrf.mxu0
          %v2348 = vadd.f32 0.0, %v2347
          %v2349 = vpop.f32.mrf.mxu0
          %v2350 = vadd.f32 0.0, %v2349
          %2351 = vmatprep.mubr.bf16.mxu0 %v2056
          %2352 = vmatmul.mubr.bf16.gmra.mxu0 %v1524
          %v2353 = vpop.f32.mrf.mxu0
          %v2354 = vadd.f32 0.0, %v2353
          %v2355 = vpop.f32.mrf.mxu0
          %v2356 = vadd.f32 0.0, %v2355
          %v2357 = vpop.f32.mrf.mxu0
          %v2358 = vadd.f32 0.0, %v2357
          %v2359 = vpop.f32.mrf.mxu0
          %v2360 = vadd.f32 0.0, %v2359
          %2361 = vmatprep.mubr.bf16.mxu0 %v2059
          %2362 = vmatmul.mubr.bf16.gmra.mxu0 %v1526
          %v2363 = vpop.f32.mrf.mxu0
          %v2364 = vadd.f32 0.0, %v2363
          %v2365 = vpop.f32.mrf.mxu0
          %v2366 = vadd.f32 0.0, %v2365
          %v2367 = vpop.f32.mrf.mxu0
          %v2368 = vadd.f32 0.0, %v2367
          %v2369 = vpop.f32.mrf.mxu0
          %v2370 = vadd.f32 0.0, %v2369
          %2371 = vmatprep.mubr.bf16.mxu0 %v2062
          %2372 = vmatmul.mubr.bf16.gmra.mxu0 %v1528
          %v2373 = vpop.f32.mrf.mxu0
          %v2374 = vadd.f32 0.0, %v2373
          %v2375 = vpop.f32.mrf.mxu0
          %v2376 = vadd.f32 0.0, %v2375
          %v2377 = vpop.f32.mrf.mxu0
          %v2378 = vadd.f32 0.0, %v2377
          %v2379 = vpop.f32.mrf.mxu0
          %v2380 = vadd.f32 0.0, %v2379
          %2381 = vmatprep.mubr.bf16.mxu0 %v2065
          %2382 = vmatmul.mubr.bf16.gmra.mxu0 %v1530
          %v2383 = vpop.f32.mrf.mxu0
          %v2384 = vadd.f32 0.0, %v2383
          %v2385 = vpop.f32.mrf.mxu0
          %v2386 = vadd.f32 0.0, %v2385
          %v2387 = vpop.f32.mrf.mxu0
          %v2388 = vadd.f32 0.0, %v2387
          %v2389 = vpop.f32.mrf.mxu0
          %v2390 = vadd.f32 0.0, %v2389
          %2391 = vmatprep.mubr.bf16.mxu0 %v2068
          %2392 = vmatmul.mubr.bf16.gmra.mxu0 %v1532
          %v2393 = vpop.f32.mrf.mxu0
          %v2394 = vadd.f32 0.0, %v2393
          %v2395 = vpop.f32.mrf.mxu0
          %v2396 = vadd.f32 0.0, %v2395
          %v2397 = vpop.f32.mrf.mxu0
          %v2398 = vadd.f32 0.0, %v2397
          %v2399 = vpop.f32.mrf.mxu0
          %v2400 = vadd.f32 0.0, %v2399
          %2401 = vmatprep.mubr.bf16.mxu0 %v2071
          %2402 = vmatmul.mubr.bf16.gmra.mxu0 %v1534
          %v2403 = vpop.f32.mrf.mxu0
          %v2404 = vadd.f32 0.0, %v2403
          %v2405 = vpop.f32.mrf.mxu0
          %v2406 = vadd.f32 0.0, %v2405
          %v2407 = vpop.f32.mrf.mxu0
          %v2408 = vadd.f32 0.0, %v2407
          %v2409 = vpop.f32.mrf.mxu0
          %v2410 = vadd.f32 0.0, %v2409
          %2411 = vdwg.mxu0
          %2412 = vmatprep.subr.bf16.mxu0 0
          %2413 = vmatpush1.bf16.msra.mxu0 %v1907
          %2414 = vmatprep.subr.bf16.mxu0 0
          %2415 = vmatpush1.bf16.msra.mxu0 %v1900
          %2416 = vmatprep.subr.bf16.mxu0 0
          %2417 = vmatpush1.bf16.msra.mxu0 %v1893
          %2418 = vmatprep.subr.bf16.mxu0 0
          %2419 = vmatpush1.bf16.msra.mxu0 %v1886
          %2420 = vmatprep.subr.bf16.mxu0 0
          %2421 = vmatpush1.bf16.msra.mxu0 %v1879
          %2422 = vmatprep.subr.bf16.mxu0 0
          %2423 = vmatpush1.bf16.msra.mxu0 %v1872
          %2424 = vmatprep.subr.bf16.mxu0 0
          %2425 = vmatpush1.bf16.msra.mxu0 %v1865
          %2426 = vmatprep.subr.bf16.mxu0 0
          %2427 = vmatpush1.bf16.msra.mxu0 %v1858
          %2428 = vmatprep.subr.bf16.mxu0 0
          %2429 = vmatpush2.bf16.msra.mxu0 0
          %2430 = vmatprep.subr.bf16.mxu0 0
          %2431 = vmatpush2.bf16.msra.mxu0 0
          %2432 = vmatprep.subr.bf16.mxu0 0
          %2433 = vmatpush2.bf16.msra.mxu0 %v1949
          %2434 = vmatprep.subr.bf16.mxu0 0
          %2435 = vmatpush2.bf16.msra.mxu0 %v1942
          %2436 = vmatprep.subr.bf16.mxu0 0
          %2437 = vmatpush2.bf16.msra.mxu0 %v1935
          %2438 = vmatprep.subr.bf16.mxu0 0
          %2439 = vmatpush2.bf16.msra.mxu0 %v1928
          %2440 = vmatprep.subr.bf16.mxu0 0
          %2441 = vmatpush2.bf16.msra.mxu0 %v1921
          %2442 = vmatprep.subr.bf16.mxu0 0
          %2443 = vmatpush2.bf16.msra.mxu0 %v1914
          %2444 = vmatprep.mubr.bf16.mxu0 %v2050
          %2445 = vmatmul.mubr.bf16.gmra.mxu0 %v1520
          %v2446 = vpop.f32.mrf.mxu0
          %v2447 = vadd.f32 0.0, %v2446
          %v2448 = vpop.f32.mrf.mxu0
          %v2449 = vpop.f32.mrf.mxu0
          %v2450 = vadd.f32 0.0, %v2449
          %v2451 = vpop.f32.mrf.mxu0
          %2452 = vmatprep.mubr.bf16.mxu0 %v2053
          %2453 = vmatmul.mubr.bf16.gmra.mxu0 %v1522
          %v2454 = vpop.f32.mrf.mxu0
          %v2455 = vadd.f32 0.0, %v2454
          %v2456 = vpop.f32.mrf.mxu0
          %v2457 = vpop.f32.mrf.mxu0
          %v2458 = vadd.f32 0.0, %v2457
          %v2459 = vpop.f32.mrf.mxu0
          %2460 = vmatprep.mubr.bf16.mxu0 %v2056
          %2461 = vmatmul.mubr.bf16.gmra.mxu0 %v1524
          %v2462 = vpop.f32.mrf.mxu0
          %v2463 = vadd.f32 0.0, %v2462
          %v2464 = vpop.f32.mrf.mxu0
          %v2465 = vpop.f32.mrf.mxu0
          %v2466 = vadd.f32 0.0, %v2465
          %v2467 = vpop.f32.mrf.mxu0
          %2468 = vmatprep.mubr.bf16.mxu0 %v2059
          %2469 = vmatmul.mubr.bf16.gmra.mxu0 %v1526
          %v2470 = vpop.f32.mrf.mxu0
          %v2471 = vadd.f32 0.0, %v2470
          %v2472 = vpop.f32.mrf.mxu0
          %v2473 = vpop.f32.mrf.mxu0
          %v2474 = vadd.f32 0.0, %v2473
          %v2475 = vpop.f32.mrf.mxu0
          %2476 = vmatprep.mubr.bf16.mxu0 %v2062
          %2477 = vmatmul.mubr.bf16.gmra.mxu0 %v1528
          %v2478 = vpop.f32.mrf.mxu0
          %v2479 = vadd.f32 0.0, %v2478
          %v2480 = vpop.f32.mrf.mxu0
          %v2481 = vpop.f32.mrf.mxu0
          %v2482 = vadd.f32 0.0, %v2481
          %v2483 = vpop.f32.mrf.mxu0
          %2484 = vmatprep.mubr.bf16.mxu0 %v2065
          %2485 = vmatmul.mubr.bf16.gmra.mxu0 %v1530
          %v2486 = vpop.f32.mrf.mxu0
          %v2487 = vadd.f32 0.0, %v2486
          %v2488 = vpop.f32.mrf.mxu0
          %v2489 = vpop.f32.mrf.mxu0
          %v2490 = vadd.f32 0.0, %v2489
          %v2491 = vpop.f32.mrf.mxu0
          %2492 = vmatprep.mubr.bf16.mxu0 %v2068
          %2493 = vmatmul.mubr.bf16.gmra.mxu0 %v1532
          %v2494 = vpop.f32.mrf.mxu0
          %v2495 = vadd.f32 0.0, %v2494
          %v2496 = vpop.f32.mrf.mxu0
          %v2497 = vpop.f32.mrf.mxu0
          %v2498 = vadd.f32 0.0, %v2497
          %v2499 = vpop.f32.mrf.mxu0
          %2500 = vmatprep.mubr.bf16.mxu0 %v2071
          %2501 = vmatmul.mubr.bf16.gmra.mxu0 %v1534
          %v2502 = vpop.f32.mrf.mxu0
          %v2503 = vadd.f32 0.0, %v2502
          %v2504 = vpop.f32.mrf.mxu0
          %v2505 = vpop.f32.mrf.mxu0
          %v2506 = vadd.f32 0.0, %v2505
          %v2507 = vpop.f32.mrf.mxu0
          %2508 = vdwg.mxu0
          %s2509 = smul.u32 %s321, 112
          %s2510 = smul.addr %s2509, 8
          %s2511 = scalar_lea.vmem %s139, %s2510 [#allocation3]
          %2512 = vst [vmem:[%s2511] sm:$0xff] %v2108
          %2513 = vst [vmem:[%s2511 + $0x8] sm:$0xff] %v2110
          %2514 = vst [vmem:[%s2511 + $0x10] sm:$0xff] %v2221
          %2515 = vst [vmem:[%s2511 + $0x18] sm:$0xff] %v2223
          %2516 = vst [vmem:[%s2511 + $0x20] sm:$0xff] %v2334
          %2517 = vst [vmem:[%s2511 + $0x28] sm:$0xff] %v2336
          %vm2518 = vcmask 130048
          %2519 = vst.msk [vmem:[%s2511 + $0x30] sm:$0xff] %vm2518, %v2447
          %2520 = vst [vmem:[%s2511 + $0x38] sm:$0xff] %v2112
          %2521 = vst [vmem:[%s2511 + $0x40] sm:$0xff] %v2114
          %2522 = vst [vmem:[%s2511 + $0x48] sm:$0xff] %v2225
          %2523 = vst [vmem:[%s2511 + $0x50] sm:$0xff] %v2227
          %2524 = vst [vmem:[%s2511 + $0x58] sm:$0xff] %v2338
          %2525 = vst [vmem:[%s2511 + $0x60] sm:$0xff] %v2340
          %2526 = vst.msk [vmem:[%s2511 + $0x68] sm:$0xff] %vm2518, %v2450
          %2527 = vst [vmem:[%s2511 + $0x70] sm:$0xff] %v2118
          %2528 = vst [vmem:[%s2511 + $0x78] sm:$0xff] %v2120
          %2529 = vst [vmem:[%s2511 + $0x80] sm:$0xff] %v2231
          %2530 = vst [vmem:[%s2511 + $0x88] sm:$0xff] %v2233
          %2531 = vst [vmem:[%s2511 + $0x90] sm:$0xff] %v2344
          %2532 = vst [vmem:[%s2511 + $0x98] sm:$0xff] %v2346
          %2533 = vst.msk [vmem:[%s2511 + $0xa0] sm:$0xff] %vm2518, %v2455
          %2534 = vst [vmem:[%s2511 + $0xa8] sm:$0xff] %v2122
          %2535 = vst [vmem:[%s2511 + $0xb0] sm:$0xff] %v2124
          %2536 = vst [vmem:[%s2511 + $0xb8] sm:$0xff] %v2235
          %2537 = vst [vmem:[%s2511 + $0xc0] sm:$0xff] %v2237
          %2538 = vst [vmem:[%s2511 + $0xc8] sm:$0xff] %v2348
          %2539 = vst [vmem:[%s2511 + $0xd0] sm:$0xff] %v2350
          %2540 = vst.msk [vmem:[%s2511 + $0xd8] sm:$0xff] %vm2518, %v2458
          %2541 = vst [vmem:[%s2511 + $0xe0] sm:$0xff] %v2128
          %2542 = vst [vmem:[%s2511 + $0xe8] sm:$0xff] %v2130
          %2543 = vst [vmem:[%s2511 + $0xf0] sm:$0xff] %v2241
          %2544 = vst [vmem:[%s2511 + $0xf8] sm:$0xff] %v2243
          %2545 = vst [vmem:[%s2511 + $0x100] sm:$0xff] %v2354
          %2546 = vst [vmem:[%s2511 + $0x108] sm:$0xff] %v2356
          %2547 = vst.msk [vmem:[%s2511 + $0x110] sm:$0xff] %vm2518, %v2463
          %2548 = vst [vmem:[%s2511 + $0x118] sm:$0xff] %v2132
          %2549 = vst [vmem:[%s2511 + $0x120] sm:$0xff] %v2134
          %2550 = vst [vmem:[%s2511 + $0x128] sm:$0xff] %v2245
          %2551 = vst [vmem:[%s2511 + $0x130] sm:$0xff] %v2247
          %2552 = vst [vmem:[%s2511 + $0x138] sm:$0xff] %v2358
          %2553 = vst [vmem:[%s2511 + $0x140] sm:$0xff] %v2360
          %2554 = vst.msk [vmem:[%s2511 + $0x148] sm:$0xff] %vm2518, %v2466
          %2555 = vst [vmem:[%s2511 + $0x150] sm:$0xff] %v2138
          %2556 = vst [vmem:[%s2511 + $0x158] sm:$0xff] %v2140
          %2557 = vst [vmem:[%s2511 + $0x160] sm:$0xff] %v2251
          %2558 = vst [vmem:[%s2511 + $0x168] sm:$0xff] %v2253
          %2559 = vst [vmem:[%s2511 + $0x170] sm:$0xff] %v2364
          %2560 = vst [vmem:[%s2511 + $0x178] sm:$0xff] %v2366
          %2561 = vst.msk [vmem:[%s2511 + $0x180] sm:$0xff] %vm2518, %v2471
          %2562 = vst [vmem:[%s2511 + $0x188] sm:$0xff] %v2142
          %2563 = vst [vmem:[%s2511 + $0x190] sm:$0xff] %v2144
          %2564 = vst [vmem:[%s2511 + $0x198] sm:$0xff] %v2255
          %2565 = vst [vmem:[%s2511 + $0x1a0] sm:$0xff] %v2257
          %2566 = vst [vmem:[%s2511 + $0x1a8] sm:$0xff] %v2368
          %2567 = vst [vmem:[%s2511 + $0x1b0] sm:$0xff] %v2370
          %2568 = vst.msk [vmem:[%s2511 + $0x1b8] sm:$0xff] %vm2518, %v2474
          %2569 = vst [vmem:[%s2511 + $0x1c0] sm:$0xff] %v2148
          %2570 = vst [vmem:[%s2511 + $0x1c8] sm:$0xff] %v2150
          %2571 = vst [vmem:[%s2511 + $0x1d0] sm:$0xff] %v2261
          %2572 = vst [vmem:[%s2511 + $0x1d8] sm:$0xff] %v2263
          %2573 = vst [vmem:[%s2511 + $0x1e0] sm:$0xff] %v2374
          %2574 = vst [vmem:[%s2511 + $0x1e8] sm:$0xff] %v2376
          %2575 = vst.msk [vmem:[%s2511 + $0x1f0] sm:$0xff] %vm2518, %v2479
          %2576 = vst [vmem:[%s2511 + $0x1f8] sm:$0xff] %v2152
          %2577 = vst [vmem:[%s2511 + $0x200] sm:$0xff] %v2154
          %2578 = vst [vmem:[%s2511 + $0x208] sm:$0xff] %v2265
          %2579 = vst [vmem:[%s2511 + $0x210] sm:$0xff] %v2267
          %2580 = vst [vmem:[%s2511 + $0x218] sm:$0xff] %v2378
          %2581 = vst [vmem:[%s2511 + $0x220] sm:$0xff] %v2380
          %2582 = vst.msk [vmem:[%s2511 + $0x228] sm:$0xff] %vm2518, %v2482
          %2583 = vst [vmem:[%s2511 + $0x230] sm:$0xff] %v2158
          %2584 = vst [vmem:[%s2511 + $0x238] sm:$0xff] %v2160
          %2585 = vst [vmem:[%s2511 + $0x240] sm:$0xff] %v2271
          %2586 = vst [vmem:[%s2511 + $0x248] sm:$0xff] %v2273
          %2587 = vst [vmem:[%s2511 + $0x250] sm:$0xff] %v2384
          %2588 = vst [vmem:[%s2511 + $0x258] sm:$0xff] %v2386
          %2589 = vst.msk [vmem:[%s2511 + $0x260] sm:$0xff] %vm2518, %v2487
          %2590 = vst [vmem:[%s2511 + $0x268] sm:$0xff] %v2162
          %2591 = vst [vmem:[%s2511 + $0x270] sm:$0xff] %v2164
          %2592 = vst [vmem:[%s2511 + $0x278] sm:$0xff] %v2275
          %2593 = vst [vmem:[%s2511 + $0x280] sm:$0xff] %v2277
          %2594 = vst [vmem:[%s2511 + $0x288] sm:$0xff] %v2388
          %2595 = vst [vmem:[%s2511 + $0x290] sm:$0xff] %v2390
          %2596 = vst.msk [vmem:[%s2511 + $0x298] sm:$0xff] %vm2518, %v2490
          %2597 = vst [vmem:[%s2511 + $0x2a0] sm:$0xff] %v2168
          %2598 = vst [vmem:[%s2511 + $0x2a8] sm:$0xff] %v2170
          %2599 = vst [vmem:[%s2511 + $0x2b0] sm:$0xff] %v2281
          %2600 = vst [vmem:[%s2511 + $0x2b8] sm:$0xff] %v2283
          %2601 = vst [vmem:[%s2511 + $0x2c0] sm:$0xff] %v2394
          %2602 = vst [vmem:[%s2511 + $0x2c8] sm:$0xff] %v2396
          %2603 = vst.msk [vmem:[%s2511 + $0x2d0] sm:$0xff] %vm2518, %v2495
          %2604 = vst [vmem:[%s2511 + $0x2d8] sm:$0xff] %v2172
          %2605 = vst [vmem:[%s2511 + $0x2e0] sm:$0xff] %v2174
          %2606 = vst [vmem:[%s2511 + $0x2e8] sm:$0xff] %v2285
          %2607 = vst [vmem:[%s2511 + $0x2f0] sm:$0xff] %v2287
          %2608 = vst [vmem:[%s2511 + $0x2f8] sm:$0xff] %v2398
          %2609 = vst [vmem:[%s2511 + $0x300] sm:$0xff] %v2400
          %2610 = vst.msk [vmem:[%s2511 + $0x308] sm:$0xff] %vm2518, %v2498
          %2611 = vst [vmem:[%s2511 + $0x310] sm:$0xff] %v2178
          %2612 = vst [vmem:[%s2511 + $0x318] sm:$0xff] %v2180
          %2613 = vst [vmem:[%s2511 + $0x320] sm:$0xff] %v2291
          %2614 = vst [vmem:[%s2511 + $0x328] sm:$0xff] %v2293
          %2615 = vst [vmem:[%s2511 + $0x330] sm:$0xff] %v2404
          %2616 = vst [vmem:[%s2511 + $0x338] sm:$0xff] %v2406
          %2617 = vst.msk [vmem:[%s2511 + $0x340] sm:$0xff] %vm2518, %v2503
          %2618 = vst [vmem:[%s2511 + $0x348] sm:$0xff] %v2182
          %2619 = vst [vmem:[%s2511 + $0x350] sm:$0xff] %v2184
          %2620 = vst [vmem:[%s2511 + $0x358] sm:$0xff] %v2295
          %2621 = vst [vmem:[%s2511 + $0x360] sm:$0xff] %v2297
          %2622 = vst [vmem:[%s2511 + $0x368] sm:$0xff] %v2408
          %2623 = vst [vmem:[%s2511 + $0x370] sm:$0xff] %v2410
          %2624 = vst.msk [vmem:[%s2511 + $0x378] sm:$0xff] %vm2518, %v2506
          %s2625 = sadd.s32 %s321, 1
          %s2626 = smul.u32 %s2625, 28
          %s2627 = smul.addr %s2626, 8
          %s2628 = scalar_lea.vmem %s145, %s2627
          %v2629 = vld [vmem:[%s2628] sm:$0xff]
          %v2630 = vld [vmem:[%s2628 + $0x8] sm:$0xff]
          %v2631 = vld [vmem:[%s2628 + $0x10] sm:$0xff]
          %v2632 = vld [vmem:[%s2628 + $0x18] sm:$0xff]
          %v2633 = vld [vmem:[%s2628 + $0x20] sm:$0xff]
          %v2634 = vld [vmem:[%s2628 + $0x28] sm:$0xff]
          %v2635 = vld [vmem:[%s2628 + $0x30] sm:$0xff]
          %v2636 = vld [vmem:[%s2628 + $0x38] sm:$0xff]
          %v2637 = vld [vmem:[%s2628 + $0x40] sm:$0xff]
          %v2638 = vld [vmem:[%s2628 + $0x48] sm:$0xff]
          %v2639 = vld [vmem:[%s2628 + $0x50] sm:$0xff]
          %v2640 = vld [vmem:[%s2628 + $0x58] sm:$0xff]
          %v2641 = vld [vmem:[%s2628 + $0x60] sm:$0xff]
          %v2642 = vld [vmem:[%s2628 + $0x68] sm:$0xff]
          %v2643 = vld [vmem:[%s2628 + $0x70] sm:$0xff]
          %v2644 = vld [vmem:[%s2628 + $0x78] sm:$0xff]
          %v2645 = vld [vmem:[%s2628 + $0x80] sm:$0xff]
          %v2646 = vld [vmem:[%s2628 + $0x88] sm:$0xff]
          %v2647 = vld [vmem:[%s2628 + $0x90] sm:$0xff]
          %v2648 = vld [vmem:[%s2628 + $0x98] sm:$0xff]
          %v2649 = vld [vmem:[%s2628 + $0xa0] sm:$0xff]
          %v2650 = vld [vmem:[%s2628 + $0xa8] sm:$0xff]
          %v2651 = vld [vmem:[%s2628 + $0xb0] sm:$0xff]
          %v2652 = vld [vmem:[%s2628 + $0xb8] sm:$0xff]
          %v2653 = vld [vmem:[%s2628 + $0xc0] sm:$0xff]
          %v2654 = vld [vmem:[%s2628 + $0xc8] sm:$0xff]
          %v2655 = vld [vmem:[%s2628 + $0xd0] sm:$0xff]
          %v2656 = vld [vmem:[%s2628 + $0xd8] sm:$0xff]
          %v2657 = vpack.c.bf16 %v2636, %v2629
          %v2658 = vpack.c.bf16 %v2637, %v2630
          %v2659 = vpack.c.bf16 %v2638, %v2631
          %v2660 = vpack.c.bf16 %v2639, %v2632
          %v2661 = vpack.c.bf16 %v2640, %v2633
          %v2662 = vpack.c.bf16 %v2641, %v2634
          %v2663 = vpack.c.bf16 %v2642, %v2635
          %v2664 = vpack.c.bf16 %v2650, %v2643
          %v2665 = vpack.c.bf16 %v2651, %v2644
          %v2666 = vpack.c.bf16 %v2652, %v2645
          %v2667 = vpack.c.bf16 %v2653, %v2646
          %v2668 = vpack.c.bf16 %v2654, %v2647
          %v2669 = vpack.c.bf16 %v2655, %v2648
          %v2670 = vpack.c.bf16 %v2656, %v2649
          %2673 = vrot.lane.b32.xlu0 %v2663, 113
          %v2674 = vpop.permute.xlu0 %2673
          %2675 = vrot.lane.b32.xlu0 %v2670, 113
          %v2676 = vpop.permute.xlu0 %2675
          %2689 = vrot.lane.b32.xlu0 %v2657, 1
          %v2690 = vpop.permute.xlu0 %2689
          %2691 = vrot.lane.b32.xlu0 %v2658, 1
          %v2692 = vpop.permute.xlu0 %2691
          %2693 = vrot.lane.b32.xlu0 %v2659, 1
          %v2694 = vpop.permute.xlu0 %2693
          %2695 = vrot.lane.b32.xlu0 %v2660, 1
          %v2696 = vpop.permute.xlu0 %2695
          %2697 = vrot.lane.b32.xlu0 %v2661, 1
          %v2698 = vpop.permute.xlu0 %2697
          %2699 = vrot.lane.b32.xlu0 %v2662, 1
          %v2700 = vpop.permute.xlu0 %2699
          %2701 = vrot.lane.b32.xlu0 %v2663, 1
          %v2702 = vpop.permute.xlu0 %2701
          %2703 = vrot.lane.b32.xlu0 %v2664, 1
          %v2704 = vpop.permute.xlu0 %2703
          %2705 = vrot.lane.b32.xlu0 %v2665, 1
          %v2706 = vpop.permute.xlu0 %2705
          %2707 = vrot.lane.b32.xlu0 %v2666, 1
          %v2708 = vpop.permute.xlu0 %2707
          %2709 = vrot.lane.b32.xlu0 %v2667, 1
          %v2710 = vpop.permute.xlu0 %2709
          %2711 = vrot.lane.b32.xlu0 %v2668, 1
          %v2712 = vpop.permute.xlu0 %2711
          %2713 = vrot.lane.b32.xlu0 %v2669, 1
          %v2714 = vpop.permute.xlu0 %2713
          %2715 = vrot.lane.b32.xlu0 %v2670, 1
          %v2716 = vpop.permute.xlu0 %2715
          %v2717 = vsel %vm413, %v2690, %v2692
          %v2718 = vsel %vm413, %v2692, %v2694
          %v2719 = vsel %vm413, %v2694, %v2696
          %v2720 = vsel %vm413, %v2696, %v2698
          %v2721 = vsel %vm413, %v2698, %v2700
          %v2722 = vsel %vm413, %v2700, %v2702
          %v2723 = vsel %vm413, %v2704, %v2706
          %v2724 = vsel %vm413, %v2706, %v2708
          %v2725 = vsel %vm413, %v2708, %v2710
          %v2726 = vsel %vm413, %v2710, %v2712
          %v2727 = vsel %vm413, %v2712, %v2714
          %v2728 = vsel %vm413, %v2714, %v2716
          %v2743 = vsel %vm438, %v2674, %v2690
          %v2747 = vsel %vm438, %v2676, %v2704
          %2749 = vrot.lane.b32.xlu0 %v2662, 13
          %v2750 = vpop.permute.xlu0 %2749
          %2751 = vrot.lane.b32.xlu0 %v2663, 13
          %v2752 = vpop.permute.xlu0 %2751
          %2753 = vrot.lane.b32.xlu0 %v2669, 13
          %v2754 = vpop.permute.xlu0 %2753
          %2755 = vrot.lane.b32.xlu0 %v2670, 13
          %v2756 = vpop.permute.xlu0 %2755
          %v2757 = vsel %vm455, %v2750, %v2752
          %v2758 = vsel %vm455, %v2754, %v2756
          %2759 = vrot.lane.b32.xlu0 %v2657, 29
          %v2760 = vpop.permute.xlu0 %2759
          %2761 = vrot.lane.b32.xlu0 %v2658, 29
          %v2762 = vpop.permute.xlu0 %2761
          %2763 = vrot.lane.b32.xlu0 %v2659, 29
          %v2764 = vpop.permute.xlu0 %2763
          %2765 = vrot.lane.b32.xlu0 %v2660, 29
          %v2766 = vpop.permute.xlu0 %2765
          %2767 = vrot.lane.b32.xlu0 %v2661, 29
          %v2768 = vpop.permute.xlu0 %2767
          %2769 = vrot.lane.b32.xlu0 %v2662, 29
          %v2770 = vpop.permute.xlu0 %2769
          %2771 = vrot.lane.b32.xlu0 %v2664, 29
          %v2772 = vpop.permute.xlu0 %2771
          %2773 = vrot.lane.b32.xlu0 %v2665, 29
          %v2774 = vpop.permute.xlu0 %2773
          %2775 = vrot.lane.b32.xlu0 %v2666, 29
          %v2776 = vpop.permute.xlu0 %2775
          %2777 = vrot.lane.b32.xlu0 %v2667, 29
          %v2778 = vpop.permute.xlu0 %2777
          %2779 = vrot.lane.b32.xlu0 %v2668, 29
          %v2780 = vpop.permute.xlu0 %2779
          %2781 = vrot.lane.b32.xlu0 %v2669, 29
          %v2782 = vpop.permute.xlu0 %2781
          %v2783 = vsel %vm482, %v2760, %v2762
          %v2784 = vsel %vm482, %v2762, %v2764
          %v2785 = vsel %vm482, %v2764, %v2766
          %v2786 = vsel %vm482, %v2766, %v2768
          %v2787 = vsel %vm482, %v2768, %v2770
          %v2788 = vsel %vm482, %v2772, %v2774
          %v2789 = vsel %vm482, %v2774, %v2776
          %v2790 = vsel %vm482, %v2776, %v2778
          %v2791 = vsel %vm482, %v2778, %v2780
          %v2792 = vsel %vm482, %v2780, %v2782
          %v2807 = vsel %vm505, %v2757, %v2760
          %v2811 = vsel %vm505, %v2758, %v2772
          %v2813 = vsel %vm550, %v2743, %v2807
          %v2814 = vsel %vm551, %v2717, %v2783
          %v2815 = vsel %vm552, %v2718, %v2784
          %v2816 = vsel %vm553, %v2719, %v2785
          %v2817 = vsel %vm554, %v2720, %v2786
          %v2818 = vsel %vm555, %v2721, %v2787
          %v2819 = vsel %vm556, %v2722, %v2770
          %v2820 = vsel %vm550, %v2747, %v2811
          %v2821 = vsel %vm551, %v2723, %v2788
          %v2822 = vsel %vm552, %v2724, %v2789
          %v2823 = vsel %vm553, %v2725, %v2790
          %v2824 = vsel %vm554, %v2726, %v2791
          %v2825 = vsel %vm555, %v2727, %v2792
          %v2826 = vsel %vm556, %v2728, %v2782
          %2839 = vrot.lane.b32.xlu0 %v2813, 84
          %v2840 = vpop.permute.xlu0 %2839
          %2841 = vrot.lane.b32.xlu0 %v2814, 84
          %v2842 = vpop.permute.xlu0 %2841
          %2843 = vrot.lane.b32.xlu0 %v2815, 84
          %v2844 = vpop.permute.xlu0 %2843
          %2845 = vrot.lane.b32.xlu0 %v2816, 84
          %v2846 = vpop.permute.xlu0 %2845
          %2847 = vrot.lane.b32.xlu0 %v2817, 84
          %v2848 = vpop.permute.xlu0 %2847
          %2849 = vrot.lane.b32.xlu0 %v2818, 84
          %v2850 = vpop.permute.xlu0 %2849
          %2851 = vrot.lane.b32.xlu0 %v2820, 84
          %v2852 = vpop.permute.xlu0 %2851
          %2853 = vrot.lane.b32.xlu0 %v2821, 84
          %v2854 = vpop.permute.xlu0 %2853
          %2855 = vrot.lane.b32.xlu0 %v2822, 84
          %v2856 = vpop.permute.xlu0 %2855
          %2857 = vrot.lane.b32.xlu0 %v2823, 84
          %v2858 = vpop.permute.xlu0 %2857
          %2859 = vrot.lane.b32.xlu0 %v2824, 84
          %v2860 = vpop.permute.xlu0 %2859
          %2861 = vrot.lane.b32.xlu0 %v2825, 84
          %v2862 = vpop.permute.xlu0 %2861
          %v2863 = vsel %vm607, %v2840, %v2842
          %v2864 = vsel %vm607, %v2842, %v2844
          %v2865 = vsel %vm607, %v2844, %v2846
          %v2866 = vsel %vm607, %v2846, %v2848
          %v2867 = vsel %vm607, %v2848, %v2850
          %v2868 = vsel %vm607, %v2852, %v2854
          %v2869 = vsel %vm607, %v2854, %v2856
          %v2870 = vsel %vm607, %v2856, %v2858
          %v2871 = vsel %vm607, %v2858, %v2860
          %v2872 = vsel %vm607, %v2860, %v2862
          %v2874 = vsel %vm618, 0, %v2840
          %v2876 = vsel %vm618, 0, %v2852
          %v2879 = vunpack.c.l.b16 %v2874
          %v2880 = vunpack.c.l.b16 %v2863
          %v2881 = vunpack.c.l.b16 %v2864
          %v2882 = vunpack.c.l.b16 %v2865
          %v2883 = vunpack.c.l.b16 %v2866
          %v2884 = vunpack.c.l.b16 %v2867
          %v2885 = vunpack.c.l.b16 %v2850
          %v2886 = vunpack.c.h.b16 %v2874
          %v2887 = vunpack.c.h.b16 %v2863
          %v2888 = vunpack.c.h.b16 %v2864
          %v2889 = vunpack.c.h.b16 %v2865
          %v2890 = vunpack.c.h.b16 %v2866
          %v2891 = vunpack.c.h.b16 %v2867
          %v2892 = vunpack.c.h.b16 %v2850
          %v2893 = vunpack.c.l.b16 %v2876
          %v2894 = vunpack.c.l.b16 %v2868
          %v2895 = vunpack.c.l.b16 %v2869
          %v2896 = vunpack.c.l.b16 %v2870
          %v2897 = vunpack.c.l.b16 %v2871
          %v2898 = vunpack.c.l.b16 %v2872
          %v2899 = vunpack.c.l.b16 %v2862
          %v2900 = vunpack.c.h.b16 %v2876
          %v2901 = vunpack.c.h.b16 %v2868
          %v2902 = vunpack.c.h.b16 %v2869
          %v2903 = vunpack.c.h.b16 %v2870
          %v2904 = vunpack.c.h.b16 %v2871
          %v2905 = vunpack.c.h.b16 %v2872
          %v2906 = vunpack.c.h.b16 %v2862
          %v2907 = vpack.c.b16 %v2880, %v2879
          %v2908 = vpack.c.b16 %v2882, %v2881
          %v2909 = vpack.c.b16 %v2884, %v2883
          %v2910 = vpack.c.b16 %v2885, %v2885
          %v2911 = vpack.c.b16 %v2887, %v2886
          %v2912 = vpack.c.b16 %v2889, %v2888
          %v2913 = vpack.c.b16 %v2891, %v2890
          %v2914 = vpack.c.b16 %v2892, %v2892
          %v2915 = vpack.c.b16 %v2894, %v2893
          %v2916 = vpack.c.b16 %v2896, %v2895
          %v2917 = vpack.c.b16 %v2898, %v2897
          %v2918 = vpack.c.b16 %v2899, %v2899
          %v2919 = vpack.c.b16 %v2901, %v2900
          %v2920 = vpack.c.b16 %v2903, %v2902
          %v2921 = vpack.c.b16 %v2905, %v2904
          %v2922 = vpack.c.b16 %v2906, %v2906
          %s2939 = scalar_lea.vmem [#allocation2], 784
          %2940 = vst [vmem:[%s2939] sm:$0xff] %v2907
          %2941 = vst [vmem:[%s2939 + $0x8] sm:$0xff] %v2908
          %2942 = vst [vmem:[%s2939 + $0x10] sm:$0xff] %v2909
          %2943 = vst.msk [vmem:[%s2939 + $0x18] sm:$0xf] %vm689, %v2910
          %2944 = vst [vmem:[%s2939 + $0x1c] sm:$0xff] %v2911
          %2945 = vst [vmem:[%s2939 + $0x24] sm:$0xff] %v2912
          %2946 = vst [vmem:[%s2939 + $0x2c] sm:$0xff] %v2913
          %2947 = vst.msk [vmem:[%s2939 + $0x34] sm:$0xf] %vm689, %v2914
          %2948 = vst [vmem:[%s2939 + $0x38] sm:$0xff] %v2915
          %2949 = vst [vmem:[%s2939 + $0x40] sm:$0xff] %v2916
          %2950 = vst [vmem:[%s2939 + $0x48] sm:$0xff] %v2917
          %2951 = vst.msk [vmem:[%s2939 + $0x50] sm:$0xf] %vm689, %v2918
          %2952 = vst [vmem:[%s2939 + $0x54] sm:$0xff] %v2919
          %2953 = vst [vmem:[%s2939 + $0x5c] sm:$0xff] %v2920
          %2954 = vst [vmem:[%s2939 + $0x64] sm:$0xff] %v2921
          %2955 = vst.msk [vmem:[%s2939 + $0x6c] sm:$0xf] %vm689, %v2922
          %2956 = vrot.lane.b32.xlu0 %v2813, 56
          %v2957 = vpop.permute.xlu0 %2956
          %2958 = vrot.lane.b32.xlu0 %v2814, 56
          %v2959 = vpop.permute.xlu0 %2958
          %2960 = vrot.lane.b32.xlu0 %v2815, 56
          %v2961 = vpop.permute.xlu0 %2960
          %2962 = vrot.lane.b32.xlu0 %v2816, 56
          %v2963 = vpop.permute.xlu0 %2962
          %2964 = vrot.lane.b32.xlu0 %v2817, 56
          %v2965 = vpop.permute.xlu0 %2964
          %2966 = vrot.lane.b32.xlu0 %v2818, 56
          %v2967 = vpop.permute.xlu0 %2966
          %2968 = vrot.lane.b32.xlu0 %v2820, 56
          %v2969 = vpop.permute.xlu0 %2968
          %2970 = vrot.lane.b32.xlu0 %v2821, 56
          %v2971 = vpop.permute.xlu0 %2970
          %2972 = vrot.lane.b32.xlu0 %v2822, 56
          %v2973 = vpop.permute.xlu0 %2972
          %2974 = vrot.lane.b32.xlu0 %v2823, 56
          %v2975 = vpop.permute.xlu0 %2974
          %2976 = vrot.lane.b32.xlu0 %v2824, 56
          %v2977 = vpop.permute.xlu0 %2976
          %2978 = vrot.lane.b32.xlu0 %v2825, 56
          %v2979 = vpop.permute.xlu0 %2978
          %v2980 = vsel %vm727, %v2957, %v2959
          %v2981 = vsel %vm727, %v2959, %v2961
          %v2982 = vsel %vm727, %v2961, %v2963
          %v2983 = vsel %vm727, %v2963, %v2965
          %v2984 = vsel %vm727, %v2965, %v2967
          %v2985 = vsel %vm727, %v2969, %v2971
          %v2986 = vsel %vm727, %v2971, %v2973
          %v2987 = vsel %vm727, %v2973, %v2975
          %v2988 = vsel %vm727, %v2975, %v2977
          %v2989 = vsel %vm727, %v2977, %v2979
          %v2991 = vsel %vm738, 0, %v2957
          %v2993 = vsel %vm738, 0, %v2969
          %v2996 = vunpack.c.l.b16 %v2991
          %v2997 = vunpack.c.l.b16 %v2980
          %v2998 = vunpack.c.l.b16 %v2981
          %v2999 = vunpack.c.l.b16 %v2982
          %v3000 = vunpack.c.l.b16 %v2983
          %v3001 = vunpack.c.l.b16 %v2984
          %v3002 = vunpack.c.l.b16 %v2967
          %v3003 = vunpack.c.h.b16 %v2991
          %v3004 = vunpack.c.h.b16 %v2980
          %v3005 = vunpack.c.h.b16 %v2981
          %v3006 = vunpack.c.h.b16 %v2982
          %v3007 = vunpack.c.h.b16 %v2983
          %v3008 = vunpack.c.h.b16 %v2984
          %v3009 = vunpack.c.h.b16 %v2967
          %v3010 = vunpack.c.l.b16 %v2993
          %v3011 = vunpack.c.l.b16 %v2985
          %v3012 = vunpack.c.l.b16 %v2986
          %v3013 = vunpack.c.l.b16 %v2987
          %v3014 = vunpack.c.l.b16 %v2988
          %v3015 = vunpack.c.l.b16 %v2989
          %v3016 = vunpack.c.l.b16 %v2979
          %v3017 = vunpack.c.h.b16 %v2993
          %v3018 = vunpack.c.h.b16 %v2985
          %v3019 = vunpack.c.h.b16 %v2986
          %v3020 = vunpack.c.h.b16 %v2987
          %v3021 = vunpack.c.h.b16 %v2988
          %v3022 = vunpack.c.h.b16 %v2989
          %v3023 = vunpack.c.h.b16 %v2979
          %v3024 = vpack.c.b16 %v2997, %v2996
          %v3025 = vpack.c.b16 %v2999, %v2998
          %v3026 = vpack.c.b16 %v3001, %v3000
          %v3027 = vpack.c.b16 %v3002, %v3002
          %v3028 = vpack.c.b16 %v3004, %v3003
          %v3029 = vpack.c.b16 %v3006, %v3005
          %v3030 = vpack.c.b16 %v3008, %v3007
          %v3031 = vpack.c.b16 %v3009, %v3009
          %v3032 = vpack.c.b16 %v3011, %v3010
          %v3033 = vpack.c.b16 %v3013, %v3012
          %v3034 = vpack.c.b16 %v3015, %v3014
          %v3035 = vpack.c.b16 %v3016, %v3016
          %v3036 = vpack.c.b16 %v3018, %v3017
          %v3037 = vpack.c.b16 %v3020, %v3019
          %v3038 = vpack.c.b16 %v3022, %v3021
          %v3039 = vpack.c.b16 %v3023, %v3023
          %3056 = vst [vmem:[%s2939 + $0x70] sm:$0xff] %v3024
          %3057 = vst [vmem:[%s2939 + $0x78] sm:$0xff] %v3025
          %3058 = vst [vmem:[%s2939 + $0x80] sm:$0xff] %v3026
          %3059 = vst.msk [vmem:[%s2939 + $0x88] sm:$0xf] %vm689, %v3027
          %3060 = vst [vmem:[%s2939 + $0x8c] sm:$0xff] %v3028
          %3061 = vst [vmem:[%s2939 + $0x94] sm:$0xff] %v3029
          %3062 = vst [vmem:[%s2939 + $0x9c] sm:$0xff] %v3030
          %3063 = vst.msk [vmem:[%s2939 + $0xa4] sm:$0xf] %vm689, %v3031
          %3064 = vst [vmem:[%s2939 + $0xa8] sm:$0xff] %v3032
          %3065 = vst [vmem:[%s2939 + $0xb0] sm:$0xff] %v3033
          %3066 = vst [vmem:[%s2939 + $0xb8] sm:$0xff] %v3034
          %3067 = vst.msk [vmem:[%s2939 + $0xc0] sm:$0xf] %vm689, %v3035
          %3068 = vst [vmem:[%s2939 + $0xc4] sm:$0xff] %v3036
          %3069 = vst [vmem:[%s2939 + $0xcc] sm:$0xff] %v3037
          %3070 = vst [vmem:[%s2939 + $0xd4] sm:$0xff] %v3038
          %3071 = vst.msk [vmem:[%s2939 + $0xdc] sm:$0xf] %vm689, %v3039
          %3072 = vrot.lane.b32.xlu0 %v2813, 28
          %v3073 = vpop.permute.xlu0 %3072
          %3074 = vrot.lane.b32.xlu0 %v2814, 28
          %v3075 = vpop.permute.xlu0 %3074
          %3076 = vrot.lane.b32.xlu0 %v2815, 28
          %v3077 = vpop.permute.xlu0 %3076
          %3078 = vrot.lane.b32.xlu0 %v2816, 28
          %v3079 = vpop.permute.xlu0 %3078
          %3080 = vrot.lane.b32.xlu0 %v2817, 28
          %v3081 = vpop.permute.xlu0 %3080
          %3082 = vrot.lane.b32.xlu0 %v2818, 28
          %v3083 = vpop.permute.xlu0 %3082
          %3084 = vrot.lane.b32.xlu0 %v2820, 28
          %v3085 = vpop.permute.xlu0 %3084
          %3086 = vrot.lane.b32.xlu0 %v2821, 28
          %v3087 = vpop.permute.xlu0 %3086
          %3088 = vrot.lane.b32.xlu0 %v2822, 28
          %v3089 = vpop.permute.xlu0 %3088
          %3090 = vrot.lane.b32.xlu0 %v2823, 28
          %v3091 = vpop.permute.xlu0 %3090
          %3092 = vrot.lane.b32.xlu0 %v2824, 28
          %v3093 = vpop.permute.xlu0 %3092
          %3094 = vrot.lane.b32.xlu0 %v2825, 28
          %v3095 = vpop.permute.xlu0 %3094
          %v3096 = vsel %vm845, %v3073, %v3075
          %v3097 = vsel %vm845, %v3075, %v3077
          %v3098 = vsel %vm845, %v3077, %v3079
          %v3099 = vsel %vm845, %v3079, %v3081
          %v3100 = vsel %vm845, %v3081, %v3083
          %v3101 = vsel %vm845, %v3085, %v3087
          %v3102 = vsel %vm845, %v3087, %v3089
          %v3103 = vsel %vm845, %v3089, %v3091
          %v3104 = vsel %vm845, %v3091, %v3093
          %v3105 = vsel %vm845, %v3093, %v3095
          %v3107 = vsel %vm856, 0, %v3073
          %v3109 = vsel %vm856, 0, %v3085
          %v3112 = vunpack.c.l.b16 %v3107
          %v3113 = vunpack.c.l.b16 %v3096
          %v3114 = vunpack.c.l.b16 %v3097
          %v3115 = vunpack.c.l.b16 %v3098
          %v3116 = vunpack.c.l.b16 %v3099
          %v3117 = vunpack.c.l.b16 %v3100
          %v3118 = vunpack.c.l.b16 %v3083
          %v3119 = vunpack.c.h.b16 %v3107
          %v3120 = vunpack.c.h.b16 %v3096
          %v3121 = vunpack.c.h.b16 %v3097
          %v3122 = vunpack.c.h.b16 %v3098
          %v3123 = vunpack.c.h.b16 %v3099
          %v3124 = vunpack.c.h.b16 %v3100
          %v3125 = vunpack.c.h.b16 %v3083
          %v3126 = vunpack.c.l.b16 %v3109
          %v3127 = vunpack.c.l.b16 %v3101
          %v3128 = vunpack.c.l.b16 %v3102
          %v3129 = vunpack.c.l.b16 %v3103
          %v3130 = vunpack.c.l.b16 %v3104
          %v3131 = vunpack.c.l.b16 %v3105
          %v3132 = vunpack.c.l.b16 %v3095
          %v3133 = vunpack.c.h.b16 %v3109
          %v3134 = vunpack.c.h.b16 %v3101
          %v3135 = vunpack.c.h.b16 %v3102
          %v3136 = vunpack.c.h.b16 %v3103
          %v3137 = vunpack.c.h.b16 %v3104
          %v3138 = vunpack.c.h.b16 %v3105
          %v3139 = vunpack.c.h.b16 %v3095
          %v3140 = vpack.c.b16 %v3113, %v3112
          %v3141 = vpack.c.b16 %v3115, %v3114
          %v3142 = vpack.c.b16 %v3117, %v3116
          %v3143 = vpack.c.b16 %v3118, %v3118
          %v3144 = vpack.c.b16 %v3120, %v3119
          %v3145 = vpack.c.b16 %v3122, %v3121
          %v3146 = vpack.c.b16 %v3124, %v3123
          %v3147 = vpack.c.b16 %v3125, %v3125
          %v3148 = vpack.c.b16 %v3127, %v3126
          %v3149 = vpack.c.b16 %v3129, %v3128
          %v3150 = vpack.c.b16 %v3131, %v3130
          %v3151 = vpack.c.b16 %v3132, %v3132
          %v3152 = vpack.c.b16 %v3134, %v3133
          %v3153 = vpack.c.b16 %v3136, %v3135
          %v3154 = vpack.c.b16 %v3138, %v3137
          %v3155 = vpack.c.b16 %v3139, %v3139
          %3172 = vst [vmem:[%s2939 + $0xe0] sm:$0xff] %v3140
          %3173 = vst [vmem:[%s2939 + $0xe8] sm:$0xff] %v3141
          %3174 = vst [vmem:[%s2939 + $0xf0] sm:$0xff] %v3142
          %3175 = vst.msk [vmem:[%s2939 + $0xf8] sm:$0xf] %vm689, %v3143
          %3176 = vst [vmem:[%s2939 + $0xfc] sm:$0xff] %v3144
          %3177 = vst [vmem:[%s2939 + $0x104] sm:$0xff] %v3145
          %3178 = vst [vmem:[%s2939 + $0x10c] sm:$0xff] %v3146
          %3179 = vst.msk [vmem:[%s2939 + $0x114] sm:$0xf] %vm689, %v3147
          %3180 = vst [vmem:[%s2939 + $0x118] sm:$0xff] %v3148
          %3181 = vst [vmem:[%s2939 + $0x120] sm:$0xff] %v3149
          %3182 = vst [vmem:[%s2939 + $0x128] sm:$0xff] %v3150
          %3183 = vst.msk [vmem:[%s2939 + $0x130] sm:$0xf] %vm689, %v3151
          %3184 = vst [vmem:[%s2939 + $0x134] sm:$0xff] %v3152
          %3185 = vst [vmem:[%s2939 + $0x13c] sm:$0xff] %v3153
          %3186 = vst [vmem:[%s2939 + $0x144] sm:$0xff] %v3154
          %3187 = vst.msk [vmem:[%s2939 + $0x14c] sm:$0xf] %vm689, %v3155
          %v3190 = vunpack.c.l.b16 %v2813
          %v3191 = vunpack.c.l.b16 %v2814
          %v3192 = vunpack.c.l.b16 %v2815
          %v3193 = vunpack.c.l.b16 %v2816
          %v3194 = vunpack.c.l.b16 %v2817
          %v3195 = vunpack.c.l.b16 %v2818
          %v3196 = vunpack.c.l.b16 %v2819
          %v3197 = vunpack.c.h.b16 %v2813
          %v3198 = vunpack.c.h.b16 %v2814
          %v3199 = vunpack.c.h.b16 %v2815
          %v3200 = vunpack.c.h.b16 %v2816
          %v3201 = vunpack.c.h.b16 %v2817
          %v3202 = vunpack.c.h.b16 %v2818
          %v3203 = vunpack.c.h.b16 %v2819
          %v3204 = vunpack.c.l.b16 %v2820
          %v3205 = vunpack.c.l.b16 %v2821
          %v3206 = vunpack.c.l.b16 %v2822
          %v3207 = vunpack.c.l.b16 %v2823
          %v3208 = vunpack.c.l.b16 %v2824
          %v3209 = vunpack.c.l.b16 %v2825
          %v3210 = vunpack.c.l.b16 %v2826
          %v3211 = vunpack.c.h.b16 %v2820
          %v3212 = vunpack.c.h.b16 %v2821
          %v3213 = vunpack.c.h.b16 %v2822
          %v3214 = vunpack.c.h.b16 %v2823
          %v3215 = vunpack.c.h.b16 %v2824
          %v3216 = vunpack.c.h.b16 %v2825
          %v3217 = vunpack.c.h.b16 %v2826
          %v3218 = vpack.c.b16 %v3191, %v3190
          %v3219 = vpack.c.b16 %v3193, %v3192
          %v3220 = vpack.c.b16 %v3195, %v3194
          %v3221 = vpack.c.b16 %v3196, %v3196
          %v3222 = vpack.c.b16 %v3198, %v3197
          %v3223 = vpack.c.b16 %v3200, %v3199
          %v3224 = vpack.c.b16 %v3202, %v3201
          %v3225 = vpack.c.b16 %v3203, %v3203
          %v3226 = vpack.c.b16 %v3205, %v3204
          %v3227 = vpack.c.b16 %v3207, %v3206
          %v3228 = vpack.c.b16 %v3209, %v3208
          %v3229 = vpack.c.b16 %v3210, %v3210
          %v3230 = vpack.c.b16 %v3212, %v3211
          %v3231 = vpack.c.b16 %v3214, %v3213
          %v3232 = vpack.c.b16 %v3216, %v3215
          %v3233 = vpack.c.b16 %v3217, %v3217
          %3250 = vst [vmem:[%s2939 + $0x150] sm:$0xff] %v3218
          %3251 = vst [vmem:[%s2939 + $0x158] sm:$0xff] %v3219
          %3252 = vst [vmem:[%s2939 + $0x160] sm:$0xff] %v3220
          %3253 = vst.msk [vmem:[%s2939 + $0x168] sm:$0xf] %vm689, %v3221
          %3254 = vst [vmem:[%s2939 + $0x16c] sm:$0xff] %v3222
          %3255 = vst [vmem:[%s2939 + $0x174] sm:$0xff] %v3223
          %3256 = vst [vmem:[%s2939 + $0x17c] sm:$0xff] %v3224
          %3257 = vst.msk [vmem:[%s2939 + $0x184] sm:$0xf] %vm689, %v3225
          %3258 = vst [vmem:[%s2939 + $0x188] sm:$0xff] %v3226
          %3259 = vst [vmem:[%s2939 + $0x190] sm:$0xff] %v3227
          %3260 = vst [vmem:[%s2939 + $0x198] sm:$0xff] %v3228
          %3261 = vst.msk [vmem:[%s2939 + $0x1a0] sm:$0xf] %vm689, %v3229
          %3262 = vst [vmem:[%s2939 + $0x1a4] sm:$0xff] %v3230
          %3263 = vst [vmem:[%s2939 + $0x1ac] sm:$0xff] %v3231
          %3264 = vst [vmem:[%s2939 + $0x1b4] sm:$0xff] %v3232
          %3265 = vst.msk [vmem:[%s2939 + $0x1bc] sm:$0xf] %vm689, %v3233
          %3266 = vrot.lane.b32.xlu0 %v2813, 100
          %v3267 = vpop.permute.xlu0 %3266
          %3268 = vrot.lane.b32.xlu0 %v2814, 100
          %v3269 = vpop.permute.xlu0 %3268
          %3270 = vrot.lane.b32.xlu0 %v2815, 100
          %v3271 = vpop.permute.xlu0 %3270
          %3272 = vrot.lane.b32.xlu0 %v2816, 100
          %v3273 = vpop.permute.xlu0 %3272
          %3274 = vrot.lane.b32.xlu0 %v2817, 100
          %v3275 = vpop.permute.xlu0 %3274
          %3276 = vrot.lane.b32.xlu0 %v2818, 100
          %v3277 = vpop.permute.xlu0 %3276
          %3278 = vrot.lane.b32.xlu0 %v2819, 100
          %v3279 = vpop.permute.xlu0 %3278
          %3280 = vrot.lane.b32.xlu0 %v2820, 100
          %v3281 = vpop.permute.xlu0 %3280
          %3282 = vrot.lane.b32.xlu0 %v2821, 100
          %v3283 = vpop.permute.xlu0 %3282
          %3284 = vrot.lane.b32.xlu0 %v2822, 100
          %v3285 = vpop.permute.xlu0 %3284
          %3286 = vrot.lane.b32.xlu0 %v2823, 100
          %v3287 = vpop.permute.xlu0 %3286
          %3288 = vrot.lane.b32.xlu0 %v2824, 100
          %v3289 = vpop.permute.xlu0 %3288
          %3290 = vrot.lane.b32.xlu0 %v2825, 100
          %v3291 = vpop.permute.xlu0 %3290
          %3292 = vrot.lane.b32.xlu0 %v2826, 100
          %v3293 = vpop.permute.xlu0 %3292
          %v3294 = vsel %vm1045, %v3267, %v3269
          %v3295 = vsel %vm1045, %v3269, %v3271
          %v3296 = vsel %vm1045, %v3271, %v3273
          %v3297 = vsel %vm1045, %v3273, %v3275
          %v3298 = vsel %vm1045, %v3275, %v3277
          %v3299 = vsel %vm1045, %v3277, %v3279
          %v3300 = vsel %vm1045, %v3281, %v3283
          %v3301 = vsel %vm1045, %v3283, %v3285
          %v3302 = vsel %vm1045, %v3285, %v3287
          %v3303 = vsel %vm1045, %v3287, %v3289
          %v3304 = vsel %vm1045, %v3289, %v3291
          %v3305 = vsel %vm1045, %v3291, %v3293
          %v3307 = vsel %vm1058, %v3299, 0
          %v3309 = vsel %vm1058, %v3305, 0
          %v3312 = vunpack.c.l.b16 %v3294
          %v3313 = vunpack.c.l.b16 %v3295
          %v3314 = vunpack.c.l.b16 %v3296
          %v3315 = vunpack.c.l.b16 %v3297
          %v3316 = vunpack.c.l.b16 %v3298
          %v3317 = vunpack.c.l.b16 %v3307
          %v3318 = vunpack.c.h.b16 %v3294
          %v3319 = vunpack.c.h.b16 %v3295
          %v3320 = vunpack.c.h.b16 %v3296
          %v3321 = vunpack.c.h.b16 %v3297
          %v3322 = vunpack.c.h.b16 %v3298
          %v3323 = vunpack.c.h.b16 %v3307
          %v3324 = vunpack.c.l.b16 %v3300
          %v3325 = vunpack.c.l.b16 %v3301
          %v3326 = vunpack.c.l.b16 %v3302
          %v3327 = vunpack.c.l.b16 %v3303
          %v3328 = vunpack.c.l.b16 %v3304
          %v3329 = vunpack.c.l.b16 %v3309
          %v3330 = vunpack.c.h.b16 %v3300
          %v3331 = vunpack.c.h.b16 %v3301
          %v3332 = vunpack.c.h.b16 %v3302
          %v3333 = vunpack.c.h.b16 %v3303
          %v3334 = vunpack.c.h.b16 %v3304
          %v3335 = vunpack.c.h.b16 %v3309
          %v3336 = vpack.c.b16 %v3313, %v3312
          %v3337 = vpack.c.b16 %v3315, %v3314
          %v3338 = vpack.c.b16 %v3317, %v3316
          %v3339 = vpack.c.b16 %v3319, %v3318
          %v3340 = vpack.c.b16 %v3321, %v3320
          %v3341 = vpack.c.b16 %v3323, %v3322
          %v3342 = vpack.c.b16 %v3325, %v3324
          %v3343 = vpack.c.b16 %v3327, %v3326
          %v3344 = vpack.c.b16 %v3329, %v3328
          %v3345 = vpack.c.b16 %v3331, %v3330
          %v3346 = vpack.c.b16 %v3333, %v3332
          %v3347 = vpack.c.b16 %v3335, %v3334
          %3360 = vst [vmem:[%s2939 + $0x1c0] sm:$0xff] %v3336
          %3361 = vst [vmem:[%s2939 + $0x1c8] sm:$0xff] %v3337
          %3362 = vst [vmem:[%s2939 + $0x1d0] sm:$0xff] %v3338
          %3363 = vst.msk [vmem:[%s2939 + $0x1d8] sm:$0xf] %vm689, %v1095
          %3364 = vst [vmem:[%s2939 + $0x1dc] sm:$0xff] %v3339
          %3365 = vst [vmem:[%s2939 + $0x1e4] sm:$0xff] %v3340
          %3366 = vst [vmem:[%s2939 + $0x1ec] sm:$0xff] %v3341
          %3367 = vst.msk [vmem:[%s2939 + $0x1f4] sm:$0xf] %vm689, %v1099
          %3368 = vst [vmem:[%s2939 + $0x1f8] sm:$0xff] %v3342
          %3369 = vst [vmem:[%s2939 + $0x200] sm:$0xff] %v3343
          %3370 = vst [vmem:[%s2939 + $0x208] sm:$0xff] %v3344
          %3371 = vst.msk [vmem:[%s2939 + $0x210] sm:$0xf] %vm689, %v1095
          %3372 = vst [vmem:[%s2939 + $0x214] sm:$0xff] %v3345
          %3373 = vst [vmem:[%s2939 + $0x21c] sm:$0xff] %v3346
          %3374 = vst [vmem:[%s2939 + $0x224] sm:$0xff] %v3347
          %3375 = vst.msk [vmem:[%s2939 + $0x22c] sm:$0xf] %vm689, %v1099
          %3376 = vrot.lane.b32.xlu0 %v2813, 72
          %v3377 = vpop.permute.xlu0 %3376
          %3378 = vrot.lane.b32.xlu0 %v2814, 72
          %v3379 = vpop.permute.xlu0 %3378
          %3380 = vrot.lane.b32.xlu0 %v2815, 72
          %v3381 = vpop.permute.xlu0 %3380
          %3382 = vrot.lane.b32.xlu0 %v2816, 72
          %v3383 = vpop.permute.xlu0 %3382
          %3384 = vrot.lane.b32.xlu0 %v2817, 72
          %v3385 = vpop.permute.xlu0 %3384
          %3386 = vrot.lane.b32.xlu0 %v2818, 72
          %v3387 = vpop.permute.xlu0 %3386
          %3388 = vrot.lane.b32.xlu0 %v2819, 72
          %v3389 = vpop.permute.xlu0 %3388
          %3390 = vrot.lane.b32.xlu0 %v2820, 72
          %v3391 = vpop.permute.xlu0 %3390
          %3392 = vrot.lane.b32.xlu0 %v2821, 72
          %v3393 = vpop.permute.xlu0 %3392
          %3394 = vrot.lane.b32.xlu0 %v2822, 72
          %v3395 = vpop.permute.xlu0 %3394
          %3396 = vrot.lane.b32.xlu0 %v2823, 72
          %v3397 = vpop.permute.xlu0 %3396
          %3398 = vrot.lane.b32.xlu0 %v2824, 72
          %v3399 = vpop.permute.xlu0 %3398
          %3400 = vrot.lane.b32.xlu0 %v2825, 72
          %v3401 = vpop.permute.xlu0 %3400
          %3402 = vrot.lane.b32.xlu0 %v2826, 72
          %v3403 = vpop.permute.xlu0 %3402
          %v3404 = vsel %vm1164, %v3377, %v3379
          %v3405 = vsel %vm1164, %v3379, %v3381
          %v3406 = vsel %vm1164, %v3381, %v3383
          %v3407 = vsel %vm1164, %v3383, %v3385
          %v3408 = vsel %vm1164, %v3385, %v3387
          %v3409 = vsel %vm1164, %v3387, %v3389
          %v3410 = vsel %vm1164, %v3391, %v3393
          %v3411 = vsel %vm1164, %v3393, %v3395
          %v3412 = vsel %vm1164, %v3395, %v3397
          %v3413 = vsel %vm1164, %v3397, %v3399
          %v3414 = vsel %vm1164, %v3399, %v3401
          %v3415 = vsel %vm1164, %v3401, %v3403
          %v3417 = vsel %vm1177, %v3409, 0
          %v3419 = vsel %vm1177, %v3415, 0
          %v3422 = vunpack.c.l.b16 %v3404
          %v3423 = vunpack.c.l.b16 %v3405
          %v3424 = vunpack.c.l.b16 %v3406
          %v3425 = vunpack.c.l.b16 %v3407
          %v3426 = vunpack.c.l.b16 %v3408
          %v3427 = vunpack.c.l.b16 %v3417
          %v3428 = vunpack.c.h.b16 %v3404
          %v3429 = vunpack.c.h.b16 %v3405
          %v3430 = vunpack.c.h.b16 %v3406
          %v3431 = vunpack.c.h.b16 %v3407
          %v3432 = vunpack.c.h.b16 %v3408
          %v3433 = vunpack.c.h.b16 %v3417
          %v3434 = vunpack.c.l.b16 %v3410
          %v3435 = vunpack.c.l.b16 %v3411
          %v3436 = vunpack.c.l.b16 %v3412
          %v3437 = vunpack.c.l.b16 %v3413
          %v3438 = vunpack.c.l.b16 %v3414
          %v3439 = vunpack.c.l.b16 %v3419
          %v3440 = vunpack.c.h.b16 %v3410
          %v3441 = vunpack.c.h.b16 %v3411
          %v3442 = vunpack.c.h.b16 %v3412
          %v3443 = vunpack.c.h.b16 %v3413
          %v3444 = vunpack.c.h.b16 %v3414
          %v3445 = vunpack.c.h.b16 %v3419
          %v3446 = vpack.c.b16 %v3423, %v3422
          %v3447 = vpack.c.b16 %v3425, %v3424
          %v3448 = vpack.c.b16 %v3427, %v3426
          %v3449 = vpack.c.b16 %v3429, %v3428
          %v3450 = vpack.c.b16 %v3431, %v3430
          %v3451 = vpack.c.b16 %v3433, %v3432
          %v3452 = vpack.c.b16 %v3435, %v3434
          %v3453 = vpack.c.b16 %v3437, %v3436
          %v3454 = vpack.c.b16 %v3439, %v3438
          %v3455 = vpack.c.b16 %v3441, %v3440
          %v3456 = vpack.c.b16 %v3443, %v3442
          %v3457 = vpack.c.b16 %v3445, %v3444
          %3470 = vst [vmem:[%s2939 + $0x230] sm:$0xff] %v3446
          %3471 = vst [vmem:[%s2939 + $0x238] sm:$0xff] %v3447
          %3472 = vst [vmem:[%s2939 + $0x240] sm:$0xff] %v3448
          %3473 = vst.msk [vmem:[%s2939 + $0x248] sm:$0xf] %vm689, %v1095
          %3474 = vst [vmem:[%s2939 + $0x24c] sm:$0xff] %v3449
          %3475 = vst [vmem:[%s2939 + $0x254] sm:$0xff] %v3450
          %3476 = vst [vmem:[%s2939 + $0x25c] sm:$0xff] %v3451
          %3477 = vst.msk [vmem:[%s2939 + $0x264] sm:$0xf] %vm689, %v1099
          %3478 = vst [vmem:[%s2939 + $0x268] sm:$0xff] %v3452
          %3479 = vst [vmem:[%s2939 + $0x270] sm:$0xff] %v3453
          %3480 = vst [vmem:[%s2939 + $0x278] sm:$0xff] %v3454
          %3481 = vst.msk [vmem:[%s2939 + $0x280] sm:$0xf] %vm689, %v1095
          %3482 = vst [vmem:[%s2939 + $0x284] sm:$0xff] %v3455
          %3483 = vst [vmem:[%s2939 + $0x28c] sm:$0xff] %v3456
          %3484 = vst [vmem:[%s2939 + $0x294] sm:$0xff] %v3457
          %3485 = vst.msk [vmem:[%s2939 + $0x29c] sm:$0xf] %vm689, %v1099
          %3486 = vrot.lane.b32.xlu0 %v2813, 44
          %v3487 = vpop.permute.xlu0 %3486
          %3488 = vrot.lane.b32.xlu0 %v2814, 44
          %v3489 = vpop.permute.xlu0 %3488
          %3490 = vrot.lane.b32.xlu0 %v2815, 44
          %v3491 = vpop.permute.xlu0 %3490
          %3492 = vrot.lane.b32.xlu0 %v2816, 44
          %v3493 = vpop.permute.xlu0 %3492
          %3494 = vrot.lane.b32.xlu0 %v2817, 44
          %v3495 = vpop.permute.xlu0 %3494
          %3496 = vrot.lane.b32.xlu0 %v2818, 44
          %v3497 = vpop.permute.xlu0 %3496
          %3498 = vrot.lane.b32.xlu0 %v2819, 44
          %v3499 = vpop.permute.xlu0 %3498
          %3500 = vrot.lane.b32.xlu0 %v2820, 44
          %v3501 = vpop.permute.xlu0 %3500
          %3502 = vrot.lane.b32.xlu0 %v2821, 44
          %v3503 = vpop.permute.xlu0 %3502
          %3504 = vrot.lane.b32.xlu0 %v2822, 44
          %v3505 = vpop.permute.xlu0 %3504
          %3506 = vrot.lane.b32.xlu0 %v2823, 44
          %v3507 = vpop.permute.xlu0 %3506
          %3508 = vrot.lane.b32.xlu0 %v2824, 44
          %v3509 = vpop.permute.xlu0 %3508
          %3510 = vrot.lane.b32.xlu0 %v2825, 44
          %v3511 = vpop.permute.xlu0 %3510
          %3512 = vrot.lane.b32.xlu0 %v2826, 44
          %v3513 = vpop.permute.xlu0 %3512
          %v3514 = vsel %vm1276, %v3487, %v3489
          %v3515 = vsel %vm1276, %v3489, %v3491
          %v3516 = vsel %vm1276, %v3491, %v3493
          %v3517 = vsel %vm1276, %v3493, %v3495
          %v3518 = vsel %vm1276, %v3495, %v3497
          %v3519 = vsel %vm1276, %v3497, %v3499
          %v3520 = vsel %vm1276, %v3501, %v3503
          %v3521 = vsel %vm1276, %v3503, %v3505
          %v3522 = vsel %vm1276, %v3505, %v3507
          %v3523 = vsel %vm1276, %v3507, %v3509
          %v3524 = vsel %vm1276, %v3509, %v3511
          %v3525 = vsel %vm1276, %v3511, %v3513
          %v3527 = vsel %vm1289, %v3519, 0
          %v3529 = vsel %vm1289, %v3525, 0
          %v3532 = vunpack.c.l.b16 %v3514
          %v3533 = vunpack.c.l.b16 %v3515
          %v3534 = vunpack.c.l.b16 %v3516
          %v3535 = vunpack.c.l.b16 %v3517
          %v3536 = vunpack.c.l.b16 %v3518
          %v3537 = vunpack.c.l.b16 %v3527
          %v3538 = vunpack.c.h.b16 %v3514
          %v3539 = vunpack.c.h.b16 %v3515
          %v3540 = vunpack.c.h.b16 %v3516
          %v3541 = vunpack.c.h.b16 %v3517
          %v3542 = vunpack.c.h.b16 %v3518
          %v3543 = vunpack.c.h.b16 %v3527
          %v3544 = vunpack.c.l.b16 %v3520
          %v3545 = vunpack.c.l.b16 %v3521
          %v3546 = vunpack.c.l.b16 %v3522
          %v3547 = vunpack.c.l.b16 %v3523
          %v3548 = vunpack.c.l.b16 %v3524
          %v3549 = vunpack.c.l.b16 %v3529
          %v3550 = vunpack.c.h.b16 %v3520
          %v3551 = vunpack.c.h.b16 %v3521
          %v3552 = vunpack.c.h.b16 %v3522
          %v3553 = vunpack.c.h.b16 %v3523
          %v3554 = vunpack.c.h.b16 %v3524
          %v3555 = vunpack.c.h.b16 %v3529
          %v3556 = vpack.c.b16 %v3533, %v3532
          %v3557 = vpack.c.b16 %v3535, %v3534
          %v3558 = vpack.c.b16 %v3537, %v3536
          %v3559 = vpack.c.b16 %v3539, %v3538
          %v3560 = vpack.c.b16 %v3541, %v3540
          %v3561 = vpack.c.b16 %v3543, %v3542
          %v3562 = vpack.c.b16 %v3545, %v3544
          %v3563 = vpack.c.b16 %v3547, %v3546
          %v3564 = vpack.c.b16 %v3549, %v3548
          %v3565 = vpack.c.b16 %v3551, %v3550
          %v3566 = vpack.c.b16 %v3553, %v3552
          %v3567 = vpack.c.b16 %v3555, %v3554
          %3580 = vst [vmem:[%s2939 + $0x2a0] sm:$0xff] %v3556
          %3581 = vst [vmem:[%s2939 + $0x2a8] sm:$0xff] %v3557
          %3582 = vst [vmem:[%s2939 + $0x2b0] sm:$0xff] %v3558
          %3583 = vst.msk [vmem:[%s2939 + $0x2b8] sm:$0xf] %vm689, %v1095
          %3584 = vst [vmem:[%s2939 + $0x2bc] sm:$0xff] %v3559
          %3585 = vst [vmem:[%s2939 + $0x2c4] sm:$0xff] %v3560
          %3586 = vst [vmem:[%s2939 + $0x2cc] sm:$0xff] %v3561
          %3587 = vst.msk [vmem:[%s2939 + $0x2d4] sm:$0xf] %vm689, %v1099
          %3588 = vst [vmem:[%s2939 + $0x2d8] sm:$0xff] %v3562
          %3589 = vst [vmem:[%s2939 + $0x2e0] sm:$0xff] %v3563
          %3590 = vst [vmem:[%s2939 + $0x2e8] sm:$0xff] %v3564
          %3591 = vst.msk [vmem:[%s2939 + $0x2f0] sm:$0xf] %vm689, %v1095
          %3592 = vst [vmem:[%s2939 + $0x2f4] sm:$0xff] %v3565
          %3593 = vst [vmem:[%s2939 + $0x2fc] sm:$0xff] %v3566
          %3594 = vst [vmem:[%s2939 + $0x304] sm:$0xff] %v3567
          %3595 = vst.msk [vmem:[%s2939 + $0x30c] sm:$0xf] %vm689, %v1099
          %v3596 = vld [vmem:[%s2939] sm:$0xff]
          %v3597 = vld [vmem:[%s2939 + $0x8] sm:$0xff]
          %v3598 = vld [vmem:[%s2939 + $0x10] sm:$0xff]
          %v3599 = vld [vmem:[%s2939 + $0x18] sm:$0xf]
          %v3600 = vld [vmem:[%s2939 + $0x1c] sm:$0xff]
          %v3601 = vld [vmem:[%s2939 + $0x24] sm:$0xff]
          %v3602 = vld [vmem:[%s2939 + $0x2c] sm:$0xff]
          %v3603 = vld [vmem:[%s2939 + $0x34] sm:$0xf]
          %v3604 = vld [vmem:[%s2939 + $0x38] sm:$0xff]
          %v3605 = vld [vmem:[%s2939 + $0x40] sm:$0xff]
          %v3606 = vld [vmem:[%s2939 + $0x48] sm:$0xff]
          %v3607 = vld [vmem:[%s2939 + $0x50] sm:$0xf]
          %v3608 = vld [vmem:[%s2939 + $0x54] sm:$0xff]
          %v3609 = vld [vmem:[%s2939 + $0x5c] sm:$0xff]
          %v3610 = vld [vmem:[%s2939 + $0x64] sm:$0xff]
          %v3611 = vld [vmem:[%s2939 + $0x6c] sm:$0xf]
          %v3612 = vld [vmem:[%s2939 + $0x70] sm:$0xff]
          %v3613 = vld [vmem:[%s2939 + $0x78] sm:$0xff]
          %v3614 = vld [vmem:[%s2939 + $0x80] sm:$0xff]
          %v3615 = vld [vmem:[%s2939 + $0x88] sm:$0xf]
          %v3616 = vld [vmem:[%s2939 + $0x8c] sm:$0xff]
          %v3617 = vld [vmem:[%s2939 + $0x94] sm:$0xff]
          %v3618 = vld [vmem:[%s2939 + $0x9c] sm:$0xff]
          %v3619 = vld [vmem:[%s2939 + $0xa4] sm:$0xf]
          %v3620 = vld [vmem:[%s2939 + $0xa8] sm:$0xff]
          %v3621 = vld [vmem:[%s2939 + $0xb0] sm:$0xff]
          %v3622 = vld [vmem:[%s2939 + $0xb8] sm:$0xff]
          %v3623 = vld [vmem:[%s2939 + $0xc0] sm:$0xf]
          %v3624 = vld [vmem:[%s2939 + $0xc4] sm:$0xff]
          %v3625 = vld [vmem:[%s2939 + $0xcc] sm:$0xff]
          %v3626 = vld [vmem:[%s2939 + $0xd4] sm:$0xff]
          %v3627 = vld [vmem:[%s2939 + $0xdc] sm:$0xf]
          %v3628 = vld [vmem:[%s2939 + $0xe0] sm:$0xff]
          %v3629 = vld [vmem:[%s2939 + $0xe8] sm:$0xff]
          %v3630 = vld [vmem:[%s2939 + $0xf0] sm:$0xff]
          %v3631 = vld [vmem:[%s2939 + $0xf8] sm:$0xf]
          %v3632 = vld [vmem:[%s2939 + $0xfc] sm:$0xff]
          %v3633 = vld [vmem:[%s2939 + $0x104] sm:$0xff]
          %v3634 = vld [vmem:[%s2939 + $0x10c] sm:$0xff]
          %v3635 = vld [vmem:[%s2939 + $0x114] sm:$0xf]
          %v3636 = vld [vmem:[%s2939 + $0x118] sm:$0xff]
          %v3637 = vld [vmem:[%s2939 + $0x120] sm:$0xff]
          %v3638 = vld [vmem:[%s2939 + $0x128] sm:$0xff]
          %v3639 = vld [vmem:[%s2939 + $0x130] sm:$0xf]
          %v3640 = vld [vmem:[%s2939 + $0x134] sm:$0xff]
          %v3641 = vld [vmem:[%s2939 + $0x13c] sm:$0xff]
          %v3642 = vld [vmem:[%s2939 + $0x144] sm:$0xff]
          %v3643 = vld [vmem:[%s2939 + $0x14c] sm:$0xf]
          %v3644 = vld [vmem:[%s2939 + $0x150] sm:$0xff]
          %v3645 = vld [vmem:[%s2939 + $0x158] sm:$0xff]
          %v3646 = vld [vmem:[%s2939 + $0x160] sm:$0xff]
          %v3647 = vld [vmem:[%s2939 + $0x168] sm:$0xf]
          %v3648 = vld [vmem:[%s2939 + $0x16c] sm:$0xff]
          %v3649 = vld [vmem:[%s2939 + $0x174] sm:$0xff]
          %v3650 = vld [vmem:[%s2939 + $0x17c] sm:$0xff]
          %v3651 = vld [vmem:[%s2939 + $0x184] sm:$0xf]
          %v3652 = vld [vmem:[%s2939 + $0x188] sm:$0xff]
          %v3653 = vld [vmem:[%s2939 + $0x190] sm:$0xff]
          %v3654 = vld [vmem:[%s2939 + $0x198] sm:$0xff]
          %v3655 = vld [vmem:[%s2939 + $0x1a0] sm:$0xf]
          %v3656 = vld [vmem:[%s2939 + $0x1a4] sm:$0xff]
          %v3657 = vld [vmem:[%s2939 + $0x1ac] sm:$0xff]
          %v3658 = vld [vmem:[%s2939 + $0x1b4] sm:$0xff]
          %v3659 = vld [vmem:[%s2939 + $0x1bc] sm:$0xf]
          %v3660 = vld [vmem:[%s2939 + $0x1c0] sm:$0xff]
          %v3661 = vld [vmem:[%s2939 + $0x1c8] sm:$0xff]
          %v3662 = vld [vmem:[%s2939 + $0x1d0] sm:$0xff]
          %v3663 = vld [vmem:[%s2939 + $0x1d8] sm:$0xf]
          %v3664 = vld [vmem:[%s2939 + $0x1dc] sm:$0xff]
          %v3665 = vld [vmem:[%s2939 + $0x1e4] sm:$0xff]
          %v3666 = vld [vmem:[%s2939 + $0x1ec] sm:$0xff]
          %v3667 = vld [vmem:[%s2939 + $0x1f4] sm:$0xf]
          %v3668 = vld [vmem:[%s2939 + $0x1f8] sm:$0xff]
          %v3669 = vld [vmem:[%s2939 + $0x200] sm:$0xff]
          %v3670 = vld [vmem:[%s2939 + $0x208] sm:$0xff]
          %v3671 = vld [vmem:[%s2939 + $0x210] sm:$0xf]
          %v3672 = vld [vmem:[%s2939 + $0x214] sm:$0xff]
          %v3673 = vld [vmem:[%s2939 + $0x21c] sm:$0xff]
          %v3674 = vld [vmem:[%s2939 + $0x224] sm:$0xff]
          %v3675 = vld [vmem:[%s2939 + $0x22c] sm:$0xf]
          %v3676 = vld [vmem:[%s2939 + $0x230] sm:$0xff]
          %v3677 = vld [vmem:[%s2939 + $0x238] sm:$0xff]
          %v3678 = vld [vmem:[%s2939 + $0x240] sm:$0xff]
          %v3679 = vld [vmem:[%s2939 + $0x248] sm:$0xf]
          %v3680 = vld [vmem:[%s2939 + $0x24c] sm:$0xff]
          %v3681 = vld [vmem:[%s2939 + $0x254] sm:$0xff]
          %v3682 = vld [vmem:[%s2939 + $0x25c] sm:$0xff]
          %v3683 = vld [vmem:[%s2939 + $0x264] sm:$0xf]
          %v3684 = vld [vmem:[%s2939 + $0x268] sm:$0xff]
          %v3685 = vld [vmem:[%s2939 + $0x270] sm:$0xff]
          %v3686 = vld [vmem:[%s2939 + $0x278] sm:$0xff]
          %v3687 = vld [vmem:[%s2939 + $0x280] sm:$0xf]
          %v3688 = vld [vmem:[%s2939 + $0x284] sm:$0xff]
          %v3689 = vld [vmem:[%s2939 + $0x28c] sm:$0xff]
          %v3690 = vld [vmem:[%s2939 + $0x294] sm:$0xff]
          %v3691 = vld [vmem:[%s2939 + $0x29c] sm:$0xf]
          %v3692 = vld [vmem:[%s2939 + $0x2a0] sm:$0xff]
          %v3693 = vld [vmem:[%s2939 + $0x2a8] sm:$0xff]
          %v3694 = vld [vmem:[%s2939 + $0x2b0] sm:$0xff]
          %v3695 = vld [vmem:[%s2939 + $0x2b8] sm:$0xf]
          %v3696 = vld [vmem:[%s2939 + $0x2bc] sm:$0xff]
          %v3697 = vld [vmem:[%s2939 + $0x2c4] sm:$0xff]
          %v3698 = vld [vmem:[%s2939 + $0x2cc] sm:$0xff]
          %v3699 = vld [vmem:[%s2939 + $0x2d4] sm:$0xf]
          %v3700 = vld [vmem:[%s2939 + $0x2d8] sm:$0xff]
          %v3701 = vld [vmem:[%s2939 + $0x2e0] sm:$0xff]
          %v3702 = vld [vmem:[%s2939 + $0x2e8] sm:$0xff]
          %v3703 = vld [vmem:[%s2939 + $0x2f0] sm:$0xf]
          %v3704 = vld [vmem:[%s2939 + $0x2f4] sm:$0xff]
          %v3705 = vld [vmem:[%s2939 + $0x2fc] sm:$0xff]
          %v3706 = vld [vmem:[%s2939 + $0x304] sm:$0xff]
          %v3707 = vld [vmem:[%s2939 + $0x30c] sm:$0xf]
          %v3820 = vunpack.c.l.b16 %v3596
          %v3821 = vunpack.c.h.b16 %v3596
          %v3822 = vunpack.c.l.b16 %v3597
          %v3823 = vunpack.c.h.b16 %v3597
          %v3824 = vunpack.c.l.b16 %v3598
          %v3825 = vunpack.c.h.b16 %v3598
          %v3826 = vunpack.c.l.b16 %v3599
          %v3827 = vunpack.c.l.b16 %v3600
          %v3828 = vunpack.c.h.b16 %v3600
          %v3829 = vunpack.c.l.b16 %v3601
          %v3830 = vunpack.c.h.b16 %v3601
          %v3831 = vunpack.c.l.b16 %v3602
          %v3832 = vunpack.c.h.b16 %v3602
          %v3833 = vunpack.c.l.b16 %v3603
          %v3834 = vunpack.c.l.b16 %v3604
          %v3835 = vunpack.c.h.b16 %v3604
          %v3836 = vunpack.c.l.b16 %v3605
          %v3837 = vunpack.c.h.b16 %v3605
          %v3838 = vunpack.c.l.b16 %v3606
          %v3839 = vunpack.c.h.b16 %v3606
          %v3840 = vunpack.c.l.b16 %v3607
          %v3841 = vunpack.c.l.b16 %v3608
          %v3842 = vunpack.c.h.b16 %v3608
          %v3843 = vunpack.c.l.b16 %v3609
          %v3844 = vunpack.c.h.b16 %v3609
          %v3845 = vunpack.c.l.b16 %v3610
          %v3846 = vunpack.c.h.b16 %v3610
          %v3847 = vunpack.c.l.b16 %v3611
          %v3848 = vunpack.c.l.b16 %v3612
          %v3849 = vunpack.c.h.b16 %v3612
          %v3850 = vunpack.c.l.b16 %v3613
          %v3851 = vunpack.c.h.b16 %v3613
          %v3852 = vunpack.c.l.b16 %v3614
          %v3853 = vunpack.c.h.b16 %v3614
          %v3854 = vunpack.c.l.b16 %v3615
          %v3855 = vunpack.c.l.b16 %v3616
          %v3856 = vunpack.c.h.b16 %v3616
          %v3857 = vunpack.c.l.b16 %v3617
          %v3858 = vunpack.c.h.b16 %v3617
          %v3859 = vunpack.c.l.b16 %v3618
          %v3860 = vunpack.c.h.b16 %v3618
          %v3861 = vunpack.c.l.b16 %v3619
          %v3862 = vunpack.c.l.b16 %v3620
          %v3863 = vunpack.c.h.b16 %v3620
          %v3864 = vunpack.c.l.b16 %v3621
          %v3865 = vunpack.c.h.b16 %v3621
          %v3866 = vunpack.c.l.b16 %v3622
          %v3867 = vunpack.c.h.b16 %v3622
          %v3868 = vunpack.c.l.b16 %v3623
          %v3869 = vunpack.c.l.b16 %v3624
          %v3870 = vunpack.c.h.b16 %v3624
          %v3871 = vunpack.c.l.b16 %v3625
          %v3872 = vunpack.c.h.b16 %v3625
          %v3873 = vunpack.c.l.b16 %v3626
          %v3874 = vunpack.c.h.b16 %v3626
          %v3875 = vunpack.c.l.b16 %v3627
          %v3876 = vunpack.c.l.b16 %v3628
          %v3877 = vunpack.c.h.b16 %v3628
          %v3878 = vunpack.c.l.b16 %v3629
          %v3879 = vunpack.c.h.b16 %v3629
          %v3880 = vunpack.c.l.b16 %v3630
          %v3881 = vunpack.c.h.b16 %v3630
          %v3882 = vunpack.c.l.b16 %v3631
          %v3883 = vunpack.c.l.b16 %v3632
          %v3884 = vunpack.c.h.b16 %v3632
          %v3885 = vunpack.c.l.b16 %v3633
          %v3886 = vunpack.c.h.b16 %v3633
          %v3887 = vunpack.c.l.b16 %v3634
          %v3888 = vunpack.c.h.b16 %v3634
          %v3889 = vunpack.c.l.b16 %v3635
          %v3890 = vunpack.c.l.b16 %v3636
          %v3891 = vunpack.c.h.b16 %v3636
          %v3892 = vunpack.c.l.b16 %v3637
          %v3893 = vunpack.c.h.b16 %v3637
          %v3894 = vunpack.c.l.b16 %v3638
          %v3895 = vunpack.c.h.b16 %v3638
          %v3896 = vunpack.c.l.b16 %v3639
          %v3897 = vunpack.c.l.b16 %v3640
          %v3898 = vunpack.c.h.b16 %v3640
          %v3899 = vunpack.c.l.b16 %v3641
          %v3900 = vunpack.c.h.b16 %v3641
          %v3901 = vunpack.c.l.b16 %v3642
          %v3902 = vunpack.c.h.b16 %v3642
          %v3903 = vunpack.c.l.b16 %v3643
          %v3904 = vunpack.c.l.b16 %v3644
          %v3905 = vunpack.c.h.b16 %v3644
          %v3906 = vunpack.c.l.b16 %v3645
          %v3907 = vunpack.c.h.b16 %v3645
          %v3908 = vunpack.c.l.b16 %v3646
          %v3909 = vunpack.c.h.b16 %v3646
          %v3910 = vunpack.c.l.b16 %v3647
          %v3911 = vunpack.c.l.b16 %v3648
          %v3912 = vunpack.c.h.b16 %v3648
          %v3913 = vunpack.c.l.b16 %v3649
          %v3914 = vunpack.c.h.b16 %v3649
          %v3915 = vunpack.c.l.b16 %v3650
          %v3916 = vunpack.c.h.b16 %v3650
          %v3917 = vunpack.c.l.b16 %v3651
          %v3918 = vunpack.c.l.b16 %v3652
          %v3919 = vunpack.c.h.b16 %v3652
          %v3920 = vunpack.c.l.b16 %v3653
          %v3921 = vunpack.c.h.b16 %v3653
          %v3922 = vunpack.c.l.b16 %v3654
          %v3923 = vunpack.c.h.b16 %v3654
          %v3924 = vunpack.c.l.b16 %v3655
          %v3925 = vunpack.c.l.b16 %v3656
          %v3926 = vunpack.c.h.b16 %v3656
          %v3927 = vunpack.c.l.b16 %v3657
          %v3928 = vunpack.c.h.b16 %v3657
          %v3929 = vunpack.c.l.b16 %v3658
          %v3930 = vunpack.c.h.b16 %v3658
          %v3931 = vunpack.c.l.b16 %v3659
          %v3932 = vunpack.c.l.b16 %v3660
          %v3933 = vunpack.c.h.b16 %v3660
          %v3934 = vunpack.c.l.b16 %v3661
          %v3935 = vunpack.c.h.b16 %v3661
          %v3936 = vunpack.c.l.b16 %v3662
          %v3937 = vunpack.c.h.b16 %v3662
          %v3938 = vunpack.c.l.b16 %v3663
          %v3939 = vunpack.c.l.b16 %v3664
          %v3940 = vunpack.c.h.b16 %v3664
          %v3941 = vunpack.c.l.b16 %v3665
          %v3942 = vunpack.c.h.b16 %v3665
          %v3943 = vunpack.c.l.b16 %v3666
          %v3944 = vunpack.c.h.b16 %v3666
          %v3945 = vunpack.c.l.b16 %v3667
          %v3946 = vunpack.c.l.b16 %v3668
          %v3947 = vunpack.c.h.b16 %v3668
          %v3948 = vunpack.c.l.b16 %v3669
          %v3949 = vunpack.c.h.b16 %v3669
          %v3950 = vunpack.c.l.b16 %v3670
          %v3951 = vunpack.c.h.b16 %v3670
          %v3952 = vunpack.c.l.b16 %v3671
          %v3953 = vunpack.c.l.b16 %v3672
          %v3954 = vunpack.c.h.b16 %v3672
          %v3955 = vunpack.c.l.b16 %v3673
          %v3956 = vunpack.c.h.b16 %v3673
          %v3957 = vunpack.c.l.b16 %v3674
          %v3958 = vunpack.c.h.b16 %v3674
          %v3959 = vunpack.c.l.b16 %v3675
          %v3960 = vunpack.c.l.b16 %v3676
          %v3961 = vunpack.c.h.b16 %v3676
          %v3962 = vunpack.c.l.b16 %v3677
          %v3963 = vunpack.c.h.b16 %v3677
          %v3964 = vunpack.c.l.b16 %v3678
          %v3965 = vunpack.c.h.b16 %v3678
          %v3966 = vunpack.c.l.b16 %v3679
          %v3967 = vunpack.c.l.b16 %v3680
          %v3968 = vunpack.c.h.b16 %v3680
          %v3969 = vunpack.c.l.b16 %v3681
          %v3970 = vunpack.c.h.b16 %v3681
          %v3971 = vunpack.c.l.b16 %v3682
          %v3972 = vunpack.c.h.b16 %v3682
          %v3973 = vunpack.c.l.b16 %v3683
          %v3974 = vunpack.c.l.b16 %v3684
          %v3975 = vunpack.c.h.b16 %v3684
          %v3976 = vunpack.c.l.b16 %v3685
          %v3977 = vunpack.c.h.b16 %v3685
          %v3978 = vunpack.c.l.b16 %v3686
          %v3979 = vunpack.c.h.b16 %v3686
          %v3980 = vunpack.c.l.b16 %v3687
          %v3981 = vunpack.c.l.b16 %v3688
          %v3982 = vunpack.c.h.b16 %v3688
          %v3983 = vunpack.c.l.b16 %v3689
          %v3984 = vunpack.c.h.b16 %v3689
          %v3985 = vunpack.c.l.b16 %v3690
          %v3986 = vunpack.c.h.b16 %v3690
          %v3987 = vunpack.c.l.b16 %v3691
          %v3988 = vunpack.c.l.b16 %v3692
          %v3989 = vunpack.c.h.b16 %v3692
          %v3990 = vunpack.c.l.b16 %v3693
          %v3991 = vunpack.c.h.b16 %v3693
          %v3992 = vunpack.c.l.b16 %v3694
          %v3993 = vunpack.c.h.b16 %v3694
          %v3994 = vunpack.c.l.b16 %v3695
          %v3995 = vunpack.c.l.b16 %v3696
          %v3996 = vunpack.c.h.b16 %v3696
          %v3997 = vunpack.c.l.b16 %v3697
          %v3998 = vunpack.c.h.b16 %v3697
          %v3999 = vunpack.c.l.b16 %v3698
          %v4000 = vunpack.c.h.b16 %v3698
          %v4001 = vunpack.c.l.b16 %v3699
          %v4002 = vunpack.c.l.b16 %v3700
          %v4003 = vunpack.c.h.b16 %v3700
          %v4004 = vunpack.c.l.b16 %v3701
          %v4005 = vunpack.c.h.b16 %v3701
          %v4006 = vunpack.c.l.b16 %v3702
          %v4007 = vunpack.c.h.b16 %v3702
          %v4008 = vunpack.c.l.b16 %v3703
          %v4009 = vunpack.c.l.b16 %v3704
          %v4010 = vunpack.c.h.b16 %v3704
          %v4011 = vunpack.c.l.b16 %v3705
          %v4012 = vunpack.c.h.b16 %v3705
          %v4013 = vunpack.c.l.b16 %v3706
          %v4014 = vunpack.c.h.b16 %v3706
          %v4015 = vunpack.c.l.b16 %v3707
          %v4016 = vpack.c.b16 %v3827, %v3820
          %v4017 = vpack.c.b16 %v3828, %v3821
          %v4018 = vpack.c.b16 %v3829, %v3822
          %v4019 = vpack.c.b16 %v3830, %v3823
          %v4020 = vpack.c.b16 %v3831, %v3824
          %v4021 = vpack.c.b16 %v3832, %v3825
          %v4022 = vpack.c.b16 %v3833, %v3826
          %v4023 = vpack.c.b16 %v3841, %v3834
          %v4024 = vpack.c.b16 %v3842, %v3835
          %v4025 = vpack.c.b16 %v3843, %v3836
          %v4026 = vpack.c.b16 %v3844, %v3837
          %v4027 = vpack.c.b16 %v3845, %v3838
          %v4028 = vpack.c.b16 %v3846, %v3839
          %v4029 = vpack.c.b16 %v3847, %v3840
          %v4030 = vpack.c.b16 %v3855, %v3848
          %v4031 = vpack.c.b16 %v3856, %v3849
          %v4032 = vpack.c.b16 %v3857, %v3850
          %v4033 = vpack.c.b16 %v3858, %v3851
          %v4034 = vpack.c.b16 %v3859, %v3852
          %v4035 = vpack.c.b16 %v3860, %v3853
          %v4036 = vpack.c.b16 %v3861, %v3854
          %v4037 = vpack.c.b16 %v3869, %v3862
          %v4038 = vpack.c.b16 %v3870, %v3863
          %v4039 = vpack.c.b16 %v3871, %v3864
          %v4040 = vpack.c.b16 %v3872, %v3865
          %v4041 = vpack.c.b16 %v3873, %v3866
          %v4042 = vpack.c.b16 %v3874, %v3867
          %v4043 = vpack.c.b16 %v3875, %v3868
          %v4044 = vpack.c.b16 %v3883, %v3876
          %v4045 = vpack.c.b16 %v3884, %v3877
          %v4046 = vpack.c.b16 %v3885, %v3878
          %v4047 = vpack.c.b16 %v3886, %v3879
          %v4048 = vpack.c.b16 %v3887, %v3880
          %v4049 = vpack.c.b16 %v3888, %v3881
          %v4050 = vpack.c.b16 %v3889, %v3882
          %v4051 = vpack.c.b16 %v3897, %v3890
          %v4052 = vpack.c.b16 %v3898, %v3891
          %v4053 = vpack.c.b16 %v3899, %v3892
          %v4054 = vpack.c.b16 %v3900, %v3893
          %v4055 = vpack.c.b16 %v3901, %v3894
          %v4056 = vpack.c.b16 %v3902, %v3895
          %v4057 = vpack.c.b16 %v3903, %v3896
          %v4058 = vpack.c.b16 %v3911, %v3904
          %v4059 = vpack.c.b16 %v3912, %v3905
          %v4060 = vpack.c.b16 %v3913, %v3906
          %v4061 = vpack.c.b16 %v3914, %v3907
          %v4062 = vpack.c.b16 %v3915, %v3908
          %v4063 = vpack.c.b16 %v3916, %v3909
          %v4064 = vpack.c.b16 %v3917, %v3910
          %v4065 = vpack.c.b16 %v3925, %v3918
          %v4066 = vpack.c.b16 %v3926, %v3919
          %v4067 = vpack.c.b16 %v3927, %v3920
          %v4068 = vpack.c.b16 %v3928, %v3921
          %v4069 = vpack.c.b16 %v3929, %v3922
          %v4070 = vpack.c.b16 %v3930, %v3923
          %v4071 = vpack.c.b16 %v3931, %v3924
          %v4072 = vpack.c.b16 %v3939, %v3932
          %v4073 = vpack.c.b16 %v3940, %v3933
          %v4074 = vpack.c.b16 %v3941, %v3934
          %v4075 = vpack.c.b16 %v3942, %v3935
          %v4076 = vpack.c.b16 %v3943, %v3936
          %v4077 = vpack.c.b16 %v3944, %v3937
          %v4078 = vpack.c.b16 %v3945, %v3938
          %v4079 = vpack.c.b16 %v3953, %v3946
          %v4080 = vpack.c.b16 %v3954, %v3947
          %v4081 = vpack.c.b16 %v3955, %v3948
          %v4082 = vpack.c.b16 %v3956, %v3949
          %v4083 = vpack.c.b16 %v3957, %v3950
          %v4084 = vpack.c.b16 %v3958, %v3951
          %v4085 = vpack.c.b16 %v3959, %v3952
          %v4086 = vpack.c.b16 %v3967, %v3960
          %v4087 = vpack.c.b16 %v3968, %v3961
          %v4088 = vpack.c.b16 %v3969, %v3962
          %v4089 = vpack.c.b16 %v3970, %v3963
          %v4090 = vpack.c.b16 %v3971, %v3964
          %v4091 = vpack.c.b16 %v3972, %v3965
          %v4092 = vpack.c.b16 %v3973, %v3966
          %v4093 = vpack.c.b16 %v3981, %v3974
          %v4094 = vpack.c.b16 %v3982, %v3975
          %v4095 = vpack.c.b16 %v3983, %v3976
          %v4096 = vpack.c.b16 %v3984, %v3977
          %v4097 = vpack.c.b16 %v3985, %v3978
          %v4098 = vpack.c.b16 %v3986, %v3979
          %v4099 = vpack.c.b16 %v3987, %v3980
          %v4100 = vpack.c.b16 %v3995, %v3988
          %v4101 = vpack.c.b16 %v3996, %v3989
          %v4102 = vpack.c.b16 %v3997, %v3990
          %v4103 = vpack.c.b16 %v3998, %v3991
          %v4104 = vpack.c.b16 %v3999, %v3992
          %v4105 = vpack.c.b16 %v4000, %v3993
          %v4106 = vpack.c.b16 %v4001, %v3994
          %v4107 = vpack.c.b16 %v4009, %v4002
          %v4108 = vpack.c.b16 %v4010, %v4003
          %v4109 = vpack.c.b16 %v4011, %v4004
          %v4110 = vpack.c.b16 %v4012, %v4005
          %v4111 = vpack.c.b16 %v4013, %v4006
          %v4112 = vpack.c.b16 %v4014, %v4007
          %v4113 = vpack.c.b16 %v4015, %v4008
          %4212 = vmatprep.subr.bf16.mxu0 %v4066
          %4213 = vmatpush1.bf16.msra.mxu0 %v4065
          %4214 = vmatprep.subr.bf16.mxu0 %v4059
          %4215 = vmatpush1.bf16.msra.mxu0 %v4058
          %4216 = vmatprep.subr.bf16.mxu0 %v4052
          %4217 = vmatpush1.bf16.msra.mxu0 %v4051
          %4218 = vmatprep.subr.bf16.mxu0 %v4045
          %4219 = vmatpush1.bf16.msra.mxu0 %v4044
          %4220 = vmatprep.subr.bf16.mxu0 %v4038
          %4221 = vmatpush1.bf16.msra.mxu0 %v4037
          %4222 = vmatprep.subr.bf16.mxu0 %v4031
          %4223 = vmatpush1.bf16.msra.mxu0 %v4030
          %4224 = vmatprep.subr.bf16.mxu0 %v4024
          %4225 = vmatpush1.bf16.msra.mxu0 %v4023
          %4226 = vmatprep.subr.bf16.mxu0 %v4017
          %4227 = vmatpush1.bf16.msra.mxu0 %v4016
          %4228 = vmatprep.subr.bf16.mxu0 0
          %4229 = vmatpush2.bf16.msra.mxu0 0
          %4230 = vmatprep.subr.bf16.mxu0 0
          %4231 = vmatpush2.bf16.msra.mxu0 0
          %4232 = vmatprep.subr.bf16.mxu0 %v4108
          %4233 = vmatpush2.bf16.msra.mxu0 %v4107
          %4234 = vmatprep.subr.bf16.mxu0 %v4101
          %4235 = vmatpush2.bf16.msra.mxu0 %v4100
          %4236 = vmatprep.subr.bf16.mxu0 %v4094
          %4237 = vmatpush2.bf16.msra.mxu0 %v4093
          %4238 = vmatprep.subr.bf16.mxu0 %v4087
          %4239 = vmatpush2.bf16.msra.mxu0 %v4086
          %4240 = vmatprep.subr.bf16.mxu0 %v4080
          %4241 = vmatpush2.bf16.msra.mxu0 %v4079
          %4242 = vmatprep.subr.bf16.mxu0 %v4073
          %4243 = vmatpush2.bf16.msra.mxu0 %v4072
          %4244 = vmatprep.mubr.bf16.mxu0 %v2050
          %4245 = vmatmul.mubr.bf16.gmra.mxu0 %v1520
          %v4246 = vpop.f32.mrf.mxu0
          %v4247 = vadd.f32 0.0, %v4246
          %v4248 = vpop.f32.mrf.mxu0
          %v4249 = vadd.f32 0.0, %v4248
          %v4250 = vpop.f32.mrf.mxu0
          %v4251 = vadd.f32 0.0, %v4250
          %v4252 = vpop.f32.mrf.mxu0
          %v4253 = vadd.f32 0.0, %v4252
          %4254 = vmatprep.mubr.bf16.mxu0 %v2053
          %4255 = vmatmul.mubr.bf16.gmra.mxu0 %v1522
          %v4256 = vpop.f32.mrf.mxu0
          %v4257 = vadd.f32 0.0, %v4256
          %v4258 = vpop.f32.mrf.mxu0
          %v4259 = vadd.f32 0.0, %v4258
          %v4260 = vpop.f32.mrf.mxu0
          %v4261 = vadd.f32 0.0, %v4260
          %v4262 = vpop.f32.mrf.mxu0
          %v4263 = vadd.f32 0.0, %v4262
          %4264 = vmatprep.mubr.bf16.mxu0 %v2056
          %4265 = vmatmul.mubr.bf16.gmra.mxu0 %v1524
          %v4266 = vpop.f32.mrf.mxu0
          %v4267 = vadd.f32 0.0, %v4266
          %v4268 = vpop.f32.mrf.mxu0
          %v4269 = vadd.f32 0.0, %v4268
          %v4270 = vpop.f32.mrf.mxu0
          %v4271 = vadd.f32 0.0, %v4270
          %v4272 = vpop.f32.mrf.mxu0
          %v4273 = vadd.f32 0.0, %v4272
          %4274 = vmatprep.mubr.bf16.mxu0 %v2059
          %4275 = vmatmul.mubr.bf16.gmra.mxu0 %v1526
          %v4276 = vpop.f32.mrf.mxu0
          %v4277 = vadd.f32 0.0, %v4276
          %v4278 = vpop.f32.mrf.mxu0
          %v4279 = vadd.f32 0.0, %v4278
          %v4280 = vpop.f32.mrf.mxu0
          %v4281 = vadd.f32 0.0, %v4280
          %v4282 = vpop.f32.mrf.mxu0
          %v4283 = vadd.f32 0.0, %v4282
          %4284 = vmatprep.mubr.bf16.mxu0 %v2062
          %4285 = vmatmul.mubr.bf16.gmra.mxu0 %v1528
          %v4286 = vpop.f32.mrf.mxu0
          %v4287 = vadd.f32 0.0, %v4286
          %v4288 = vpop.f32.mrf.mxu0
          %v4289 = vadd.f32 0.0, %v4288
          %v4290 = vpop.f32.mrf.mxu0
          %v4291 = vadd.f32 0.0, %v4290
          %v4292 = vpop.f32.mrf.mxu0
          %v4293 = vadd.f32 0.0, %v4292
          %4294 = vmatprep.mubr.bf16.mxu0 %v2065
          %4295 = vmatmul.mubr.bf16.gmra.mxu0 %v1530
          %v4296 = vpop.f32.mrf.mxu0
          %v4297 = vadd.f32 0.0, %v4296
          %v4298 = vpop.f32.mrf.mxu0
          %v4299 = vadd.f32 0.0, %v4298
          %v4300 = vpop.f32.mrf.mxu0
          %v4301 = vadd.f32 0.0, %v4300
          %v4302 = vpop.f32.mrf.mxu0
          %v4303 = vadd.f32 0.0, %v4302
          %4304 = vmatprep.mubr.bf16.mxu0 %v2068
          %4305 = vmatmul.mubr.bf16.gmra.mxu0 %v1532
          %v4306 = vpop.f32.mrf.mxu0
          %v4307 = vadd.f32 0.0, %v4306
          %v4308 = vpop.f32.mrf.mxu0
          %v4309 = vadd.f32 0.0, %v4308
          %v4310 = vpop.f32.mrf.mxu0
          %v4311 = vadd.f32 0.0, %v4310
          %v4312 = vpop.f32.mrf.mxu0
          %v4313 = vadd.f32 0.0, %v4312
          %4314 = vmatprep.mubr.bf16.mxu0 %v2071
          %4315 = vmatmul.mubr.bf16.gmra.mxu0 %v1534
          %v4316 = vpop.f32.mrf.mxu0
          %v4317 = vadd.f32 0.0, %v4316
          %v4318 = vpop.f32.mrf.mxu0
          %v4319 = vadd.f32 0.0, %v4318
          %v4320 = vpop.f32.mrf.mxu0
          %v4321 = vadd.f32 0.0, %v4320
          %v4322 = vpop.f32.mrf.mxu0
          %v4323 = vadd.f32 0.0, %v4322
          %4324 = vdwg.mxu0
          %4325 = vmatprep.subr.bf16.mxu0 %v4068
          %4326 = vmatpush1.bf16.msra.mxu0 %v4067
          %4327 = vmatprep.subr.bf16.mxu0 %v4061
          %4328 = vmatpush1.bf16.msra.mxu0 %v4060
          %4329 = vmatprep.subr.bf16.mxu0 %v4054
          %4330 = vmatpush1.bf16.msra.mxu0 %v4053
          %4331 = vmatprep.subr.bf16.mxu0 %v4047
          %4332 = vmatpush1.bf16.msra.mxu0 %v4046
          %4333 = vmatprep.subr.bf16.mxu0 %v4040
          %4334 = vmatpush1.bf16.msra.mxu0 %v4039
          %4335 = vmatprep.subr.bf16.mxu0 %v4033
          %4336 = vmatpush1.bf16.msra.mxu0 %v4032
          %4337 = vmatprep.subr.bf16.mxu0 %v4026
          %4338 = vmatpush1.bf16.msra.mxu0 %v4025
          %4339 = vmatprep.subr.bf16.mxu0 %v4019
          %4340 = vmatpush1.bf16.msra.mxu0 %v4018
          %4341 = vmatprep.subr.bf16.mxu0 0
          %4342 = vmatpush2.bf16.msra.mxu0 0
          %4343 = vmatprep.subr.bf16.mxu0 0
          %4344 = vmatpush2.bf16.msra.mxu0 0
          %4345 = vmatprep.subr.bf16.mxu0 %v4110
          %4346 = vmatpush2.bf16.msra.mxu0 %v4109
          %4347 = vmatprep.subr.bf16.mxu0 %v4103
          %4348 = vmatpush2.bf16.msra.mxu0 %v4102
          %4349 = vmatprep.subr.bf16.mxu0 %v4096
          %4350 = vmatpush2.bf16.msra.mxu0 %v4095
          %4351 = vmatprep.subr.bf16.mxu0 %v4089
          %4352 = vmatpush2.bf16.msra.mxu0 %v4088
          %4353 = vmatprep.subr.bf16.mxu0 %v4082
          %4354 = vmatpush2.bf16.msra.mxu0 %v4081
          %4355 = vmatprep.subr.bf16.mxu0 %v4075
          %4356 = vmatpush2.bf16.msra.mxu0 %v4074
          %4357 = vmatprep.mubr.bf16.mxu0 %v2050
          %4358 = vmatmul.mubr.bf16.gmra.mxu0 %v1520
          %v4359 = vpop.f32.mrf.mxu0
          %v4360 = vadd.f32 0.0, %v4359
          %v4361 = vpop.f32.mrf.mxu0
          %v4362 = vadd.f32 0.0, %v4361
          %v4363 = vpop.f32.mrf.mxu0
          %v4364 = vadd.f32 0.0, %v4363
          %v4365 = vpop.f32.mrf.mxu0
          %v4366 = vadd.f32 0.0, %v4365
          %4367 = vmatprep.mubr.bf16.mxu0 %v2053
          %4368 = vmatmul.mubr.bf16.gmra.mxu0 %v1522
          %v4369 = vpop.f32.mrf.mxu0
          %v4370 = vadd.f32 0.0, %v4369
          %v4371 = vpop.f32.mrf.mxu0
          %v4372 = vadd.f32 0.0, %v4371
          %v4373 = vpop.f32.mrf.mxu0
          %v4374 = vadd.f32 0.0, %v4373
          %v4375 = vpop.f32.mrf.mxu0
          %v4376 = vadd.f32 0.0, %v4375
          %4377 = vmatprep.mubr.bf16.mxu0 %v2056
          %4378 = vmatmul.mubr.bf16.gmra.mxu0 %v1524
          %v4379 = vpop.f32.mrf.mxu0
          %v4380 = vadd.f32 0.0, %v4379
          %v4381 = vpop.f32.mrf.mxu0
          %v4382 = vadd.f32 0.0, %v4381
          %v4383 = vpop.f32.mrf.mxu0
          %v4384 = vadd.f32 0.0, %v4383
          %v4385 = vpop.f32.mrf.mxu0
          %v4386 = vadd.f32 0.0, %v4385
          %4387 = vmatprep.mubr.bf16.mxu0 %v2059
          %4388 = vmatmul.mubr.bf16.gmra.mxu0 %v1526
          %v4389 = vpop.f32.mrf.mxu0
          %v4390 = vadd.f32 0.0, %v4389
          %v4391 = vpop.f32.mrf.mxu0
          %v4392 = vadd.f32 0.0, %v4391
          %v4393 = vpop.f32.mrf.mxu0
          %v4394 = vadd.f32 0.0, %v4393
          %v4395 = vpop.f32.mrf.mxu0
          %v4396 = vadd.f32 0.0, %v4395
          %4397 = vmatprep.mubr.bf16.mxu0 %v2062
          %4398 = vmatmul.mubr.bf16.gmra.mxu0 %v1528
          %v4399 = vpop.f32.mrf.mxu0
          %v4400 = vadd.f32 0.0, %v4399
          %v4401 = vpop.f32.mrf.mxu0
          %v4402 = vadd.f32 0.0, %v4401
          %v4403 = vpop.f32.mrf.mxu0
          %v4404 = vadd.f32 0.0, %v4403
          %v4405 = vpop.f32.mrf.mxu0
          %v4406 = vadd.f32 0.0, %v4405
          %4407 = vmatprep.mubr.bf16.mxu0 %v2065
          %4408 = vmatmul.mubr.bf16.gmra.mxu0 %v1530
          %v4409 = vpop.f32.mrf.mxu0
          %v4410 = vadd.f32 0.0, %v4409
          %v4411 = vpop.f32.mrf.mxu0
          %v4412 = vadd.f32 0.0, %v4411
          %v4413 = vpop.f32.mrf.mxu0
          %v4414 = vadd.f32 0.0, %v4413
          %v4415 = vpop.f32.mrf.mxu0
          %v4416 = vadd.f32 0.0, %v4415
          %4417 = vmatprep.mubr.bf16.mxu0 %v2068
          %4418 = vmatmul.mubr.bf16.gmra.mxu0 %v1532
          %v4419 = vpop.f32.mrf.mxu0
          %v4420 = vadd.f32 0.0, %v4419
          %v4421 = vpop.f32.mrf.mxu0
          %v4422 = vadd.f32 0.0, %v4421
          %v4423 = vpop.f32.mrf.mxu0
          %v4424 = vadd.f32 0.0, %v4423
          %v4425 = vpop.f32.mrf.mxu0
          %v4426 = vadd.f32 0.0, %v4425
          %4427 = vmatprep.mubr.bf16.mxu0 %v2071
          %4428 = vmatmul.mubr.bf16.gmra.mxu0 %v1534
          %v4429 = vpop.f32.mrf.mxu0
          %v4430 = vadd.f32 0.0, %v4429
          %v4431 = vpop.f32.mrf.mxu0
          %v4432 = vadd.f32 0.0, %v4431
          %v4433 = vpop.f32.mrf.mxu0
          %v4434 = vadd.f32 0.0, %v4433
          %v4435 = vpop.f32.mrf.mxu0
          %v4436 = vadd.f32 0.0, %v4435
          %4437 = vdwg.mxu0
          %4438 = vmatprep.subr.bf16.mxu0 %v4070
          %4439 = vmatpush1.bf16.msra.mxu0 %v4069
          %4440 = vmatprep.subr.bf16.mxu0 %v4063
          %4441 = vmatpush1.bf16.msra.mxu0 %v4062
          %4442 = vmatprep.subr.bf16.mxu0 %v4056
          %4443 = vmatpush1.bf16.msra.mxu0 %v4055
          %4444 = vmatprep.subr.bf16.mxu0 %v4049
          %4445 = vmatpush1.bf16.msra.mxu0 %v4048
          %4446 = vmatprep.subr.bf16.mxu0 %v4042
          %4447 = vmatpush1.bf16.msra.mxu0 %v4041
          %4448 = vmatprep.subr.bf16.mxu0 %v4035
          %4449 = vmatpush1.bf16.msra.mxu0 %v4034
          %4450 = vmatprep.subr.bf16.mxu0 %v4028
          %4451 = vmatpush1.bf16.msra.mxu0 %v4027
          %4452 = vmatprep.subr.bf16.mxu0 %v4021
          %4453 = vmatpush1.bf16.msra.mxu0 %v4020
          %4454 = vmatprep.subr.bf16.mxu0 0
          %4455 = vmatpush2.bf16.msra.mxu0 0
          %4456 = vmatprep.subr.bf16.mxu0 0
          %4457 = vmatpush2.bf16.msra.mxu0 0
          %4458 = vmatprep.subr.bf16.mxu0 %v4112
          %4459 = vmatpush2.bf16.msra.mxu0 %v4111
          %4460 = vmatprep.subr.bf16.mxu0 %v4105
          %4461 = vmatpush2.bf16.msra.mxu0 %v4104
          %4462 = vmatprep.subr.bf16.mxu0 %v4098
          %4463 = vmatpush2.bf16.msra.mxu0 %v4097
          %4464 = vmatprep.subr.bf16.mxu0 %v4091
          %4465 = vmatpush2.bf16.msra.mxu0 %v4090
          %4466 = vmatprep.subr.bf16.mxu0 %v4084
          %4467 = vmatpush2.bf16.msra.mxu0 %v4083
          %4468 = vmatprep.subr.bf16.mxu0 %v4077
          %4469 = vmatpush2.bf16.msra.mxu0 %v4076
          %4470 = vmatprep.mubr.bf16.mxu0 %v2050
          %4471 = vmatmul.mubr.bf16.gmra.mxu0 %v1520
          %v4472 = vpop.f32.mrf.mxu0
          %v4473 = vadd.f32 0.0, %v4472
          %v4474 = vpop.f32.mrf.mxu0
          %v4475 = vadd.f32 0.0, %v4474
          %v4476 = vpop.f32.mrf.mxu0
          %v4477 = vadd.f32 0.0, %v4476
          %v4478 = vpop.f32.mrf.mxu0
          %v4479 = vadd.f32 0.0, %v4478
          %4480 = vmatprep.mubr.bf16.mxu0 %v2053
          %4481 = vmatmul.mubr.bf16.gmra.mxu0 %v1522
          %v4482 = vpop.f32.mrf.mxu0
          %v4483 = vadd.f32 0.0, %v4482
          %v4484 = vpop.f32.mrf.mxu0
          %v4485 = vadd.f32 0.0, %v4484
          %v4486 = vpop.f32.mrf.mxu0
          %v4487 = vadd.f32 0.0, %v4486
          %v4488 = vpop.f32.mrf.mxu0
          %v4489 = vadd.f32 0.0, %v4488
          %4490 = vmatprep.mubr.bf16.mxu0 %v2056
          %4491 = vmatmul.mubr.bf16.gmra.mxu0 %v1524
          %v4492 = vpop.f32.mrf.mxu0
          %v4493 = vadd.f32 0.0, %v4492
          %v4494 = vpop.f32.mrf.mxu0
          %v4495 = vadd.f32 0.0, %v4494
          %v4496 = vpop.f32.mrf.mxu0
          %v4497 = vadd.f32 0.0, %v4496
          %v4498 = vpop.f32.mrf.mxu0
          %v4499 = vadd.f32 0.0, %v4498
          %4500 = vmatprep.mubr.bf16.mxu0 %v2059
          %4501 = vmatmul.mubr.bf16.gmra.mxu0 %v1526
          %v4502 = vpop.f32.mrf.mxu0
          %v4503 = vadd.f32 0.0, %v4502
          %v4504 = vpop.f32.mrf.mxu0
          %v4505 = vadd.f32 0.0, %v4504
          %v4506 = vpop.f32.mrf.mxu0
          %v4507 = vadd.f32 0.0, %v4506
          %v4508 = vpop.f32.mrf.mxu0
          %v4509 = vadd.f32 0.0, %v4508
          %4510 = vmatprep.mubr.bf16.mxu0 %v2062
          %4511 = vmatmul.mubr.bf16.gmra.mxu0 %v1528
          %v4512 = vpop.f32.mrf.mxu0
          %v4513 = vadd.f32 0.0, %v4512
          %v4514 = vpop.f32.mrf.mxu0
          %v4515 = vadd.f32 0.0, %v4514
          %v4516 = vpop.f32.mrf.mxu0
          %v4517 = vadd.f32 0.0, %v4516
          %v4518 = vpop.f32.mrf.mxu0
          %v4519 = vadd.f32 0.0, %v4518
          %4520 = vmatprep.mubr.bf16.mxu0 %v2065
          %4521 = vmatmul.mubr.bf16.gmra.mxu0 %v1530
          %v4522 = vpop.f32.mrf.mxu0
          %v4523 = vadd.f32 0.0, %v4522
          %v4524 = vpop.f32.mrf.mxu0
          %v4525 = vadd.f32 0.0, %v4524
          %v4526 = vpop.f32.mrf.mxu0
          %v4527 = vadd.f32 0.0, %v4526
          %v4528 = vpop.f32.mrf.mxu0
          %v4529 = vadd.f32 0.0, %v4528
          %4530 = vmatprep.mubr.bf16.mxu0 %v2068
          %4531 = vmatmul.mubr.bf16.gmra.mxu0 %v1532
          %v4532 = vpop.f32.mrf.mxu0
          %v4533 = vadd.f32 0.0, %v4532
          %v4534 = vpop.f32.mrf.mxu0
          %v4535 = vadd.f32 0.0, %v4534
          %v4536 = vpop.f32.mrf.mxu0
          %v4537 = vadd.f32 0.0, %v4536
          %v4538 = vpop.f32.mrf.mxu0
          %v4539 = vadd.f32 0.0, %v4538
          %4540 = vmatprep.mubr.bf16.mxu0 %v2071
          %4541 = vmatmul.mubr.bf16.gmra.mxu0 %v1534
          %v4542 = vpop.f32.mrf.mxu0
          %v4543 = vadd.f32 0.0, %v4542
          %v4544 = vpop.f32.mrf.mxu0
          %v4545 = vadd.f32 0.0, %v4544
          %v4546 = vpop.f32.mrf.mxu0
          %v4547 = vadd.f32 0.0, %v4546
          %v4548 = vpop.f32.mrf.mxu0
          %v4549 = vadd.f32 0.0, %v4548
          %4550 = vdwg.mxu0
          %4551 = vmatprep.subr.bf16.mxu0 0
          %4552 = vmatpush1.bf16.msra.mxu0 %v4071
          %4553 = vmatprep.subr.bf16.mxu0 0
          %4554 = vmatpush1.bf16.msra.mxu0 %v4064
          %4555 = vmatprep.subr.bf16.mxu0 0
          %4556 = vmatpush1.bf16.msra.mxu0 %v4057
          %4557 = vmatprep.subr.bf16.mxu0 0
          %4558 = vmatpush1.bf16.msra.mxu0 %v4050
          %4559 = vmatprep.subr.bf16.mxu0 0
          %4560 = vmatpush1.bf16.msra.mxu0 %v4043
          %4561 = vmatprep.subr.bf16.mxu0 0
          %4562 = vmatpush1.bf16.msra.mxu0 %v4036
          %4563 = vmatprep.subr.bf16.mxu0 0
          %4564 = vmatpush1.bf16.msra.mxu0 %v4029
          %4565 = vmatprep.subr.bf16.mxu0 0
          %4566 = vmatpush1.bf16.msra.mxu0 %v4022
          %4567 = vmatprep.subr.bf16.mxu0 0
          %4568 = vmatpush2.bf16.msra.mxu0 0
          %4569 = vmatprep.subr.bf16.mxu0 0
          %4570 = vmatpush2.bf16.msra.mxu0 0
          %4571 = vmatprep.subr.bf16.mxu0 0
          %4572 = vmatpush2.bf16.msra.mxu0 %v4113
          %4573 = vmatprep.subr.bf16.mxu0 0
          %4574 = vmatpush2.bf16.msra.mxu0 %v4106
          %4575 = vmatprep.subr.bf16.mxu0 0
          %4576 = vmatpush2.bf16.msra.mxu0 %v4099
          %4577 = vmatprep.subr.bf16.mxu0 0
          %4578 = vmatpush2.bf16.msra.mxu0 %v4092
          %4579 = vmatprep.subr.bf16.mxu0 0
          %4580 = vmatpush2.bf16.msra.mxu0 %v4085
          %4581 = vmatprep.subr.bf16.mxu0 0
          %4582 = vmatpush2.bf16.msra.mxu0 %v4078
          %4583 = vmatprep.mubr.bf16.mxu0 %v2050
          %4584 = vmatmul.mubr.bf16.gmra.mxu0 %v1520
          %v4585 = vpop.f32.mrf.mxu0
          %v4586 = vadd.f32 0.0, %v4585
          %v4587 = vpop.f32.mrf.mxu0
          %v4588 = vpop.f32.mrf.mxu0
          %v4589 = vadd.f32 0.0, %v4588
          %v4590 = vpop.f32.mrf.mxu0
          %4591 = vmatprep.mubr.bf16.mxu0 %v2053
          %4592 = vmatmul.mubr.bf16.gmra.mxu0 %v1522
          %v4593 = vpop.f32.mrf.mxu0
          %v4594 = vadd.f32 0.0, %v4593
          %v4595 = vpop.f32.mrf.mxu0
          %v4596 = vpop.f32.mrf.mxu0
          %v4597 = vadd.f32 0.0, %v4596
          %v4598 = vpop.f32.mrf.mxu0
          %4599 = vmatprep.mubr.bf16.mxu0 %v2056
          %4600 = vmatmul.mubr.bf16.gmra.mxu0 %v1524
          %v4601 = vpop.f32.mrf.mxu0
          %v4602 = vadd.f32 0.0, %v4601
          %v4603 = vpop.f32.mrf.mxu0
          %v4604 = vpop.f32.mrf.mxu0
          %v4605 = vadd.f32 0.0, %v4604
          %v4606 = vpop.f32.mrf.mxu0
          %4607 = vmatprep.mubr.bf16.mxu0 %v2059
          %4608 = vmatmul.mubr.bf16.gmra.mxu0 %v1526
          %v4609 = vpop.f32.mrf.mxu0
          %v4610 = vadd.f32 0.0, %v4609
          %v4611 = vpop.f32.mrf.mxu0
          %v4612 = vpop.f32.mrf.mxu0
          %v4613 = vadd.f32 0.0, %v4612
          %v4614 = vpop.f32.mrf.mxu0
          %4615 = vmatprep.mubr.bf16.mxu0 %v2062
          %4616 = vmatmul.mubr.bf16.gmra.mxu0 %v1528
          %v4617 = vpop.f32.mrf.mxu0
          %v4618 = vadd.f32 0.0, %v4617
          %v4619 = vpop.f32.mrf.mxu0
          %v4620 = vpop.f32.mrf.mxu0
          %v4621 = vadd.f32 0.0, %v4620
          %v4622 = vpop.f32.mrf.mxu0
          %4623 = vmatprep.mubr.bf16.mxu0 %v2065
          %4624 = vmatmul.mubr.bf16.gmra.mxu0 %v1530
          %v4625 = vpop.f32.mrf.mxu0
          %v4626 = vadd.f32 0.0, %v4625
          %v4627 = vpop.f32.mrf.mxu0
          %v4628 = vpop.f32.mrf.mxu0
          %v4629 = vadd.f32 0.0, %v4628
          %v4630 = vpop.f32.mrf.mxu0
          %4631 = vmatprep.mubr.bf16.mxu0 %v2068
          %4632 = vmatmul.mubr.bf16.gmra.mxu0 %v1532
          %v4633 = vpop.f32.mrf.mxu0
          %v4634 = vadd.f32 0.0, %v4633
          %v4635 = vpop.f32.mrf.mxu0
          %v4636 = vpop.f32.mrf.mxu0
          %v4637 = vadd.f32 0.0, %v4636
          %v4638 = vpop.f32.mrf.mxu0
          %4639 = vmatprep.mubr.bf16.mxu0 %v2071
          %4640 = vmatmul.mubr.bf16.gmra.mxu0 %v1534
          %v4641 = vpop.f32.mrf.mxu0
          %v4642 = vadd.f32 0.0, %v4641
          %v4643 = vpop.f32.mrf.mxu0
          %v4644 = vpop.f32.mrf.mxu0
          %v4645 = vadd.f32 0.0, %v4644
          %v4646 = vpop.f32.mrf.mxu0
          %4647 = vdwg.mxu0
          %s4648 = smul.u32 %s2625, 112
          %s4649 = smul.addr %s4648, 8
          %s4650 = scalar_lea.vmem %s139, %s4649 [#allocation3]
          %4651 = vst [vmem:[%s4650] sm:$0xff] %v4247
          %4652 = vst [vmem:[%s4650 + $0x8] sm:$0xff] %v4249
          %4653 = vst [vmem:[%s4650 + $0x10] sm:$0xff] %v4360
          %4654 = vst [vmem:[%s4650 + $0x18] sm:$0xff] %v4362
          %4655 = vst [vmem:[%s4650 + $0x20] sm:$0xff] %v4473
          %4656 = vst [vmem:[%s4650 + $0x28] sm:$0xff] %v4475
          %4657 = vst.msk [vmem:[%s4650 + $0x30] sm:$0xff] %vm2518, %v4586
          %4658 = vst [vmem:[%s4650 + $0x38] sm:$0xff] %v4251
          %4659 = vst [vmem:[%s4650 + $0x40] sm:$0xff] %v4253
          %4660 = vst [vmem:[%s4650 + $0x48] sm:$0xff] %v4364
          %4661 = vst [vmem:[%s4650 + $0x50] sm:$0xff] %v4366
          %4662 = vst [vmem:[%s4650 + $0x58] sm:$0xff] %v4477
          %4663 = vst [vmem:[%s4650 + $0x60] sm:$0xff] %v4479
          %4664 = vst.msk [vmem:[%s4650 + $0x68] sm:$0xff] %vm2518, %v4589
          %4665 = vst [vmem:[%s4650 + $0x70] sm:$0xff] %v4257
          %4666 = vst [vmem:[%s4650 + $0x78] sm:$0xff] %v4259
          %4667 = vst [vmem:[%s4650 + $0x80] sm:$0xff] %v4370
          %4668 = vst [vmem:[%s4650 + $0x88] sm:$0xff] %v4372
          %4669 = vst [vmem:[%s4650 + $0x90] sm:$0xff] %v4483
          %4670 = vst [vmem:[%s4650 + $0x98] sm:$0xff] %v4485
          %4671 = vst.msk [vmem:[%s4650 + $0xa0] sm:$0xff] %vm2518, %v4594
          %4672 = vst [vmem:[%s4650 + $0xa8] sm:$0xff] %v4261
          %4673 = vst [vmem:[%s4650 + $0xb0] sm:$0xff] %v4263
          %4674 = vst [vmem:[%s4650 + $0xb8] sm:$0xff] %v4374
          %4675 = vst [vmem:[%s4650 + $0xc0] sm:$0xff] %v4376
          %4676 = vst [vmem:[%s4650 + $0xc8] sm:$0xff] %v4487
          %4677 = vst [vmem:[%s4650 + $0xd0] sm:$0xff] %v4489
          %4678 = vst.msk [vmem:[%s4650 + $0xd8] sm:$0xff] %vm2518, %v4597
          %4679 = vst [vmem:[%s4650 + $0xe0] sm:$0xff] %v4267
          %4680 = vst [vmem:[%s4650 + $0xe8] sm:$0xff] %v4269
          %4681 = vst [vmem:[%s4650 + $0xf0] sm:$0xff] %v4380
          %4682 = vst [vmem:[%s4650 + $0xf8] sm:$0xff] %v4382
          %4683 = vst [vmem:[%s4650 + $0x100] sm:$0xff] %v4493
          %4684 = vst [vmem:[%s4650 + $0x108] sm:$0xff] %v4495
          %4685 = vst.msk [vmem:[%s4650 + $0x110] sm:$0xff] %vm2518, %v4602
          %4686 = vst [vmem:[%s4650 + $0x118] sm:$0xff] %v4271
          %4687 = vst [vmem:[%s4650 + $0x120] sm:$0xff] %v4273
          %4688 = vst [vmem:[%s4650 + $0x128] sm:$0xff] %v4384
          %4689 = vst [vmem:[%s4650 + $0x130] sm:$0xff] %v4386
          %4690 = vst [vmem:[%s4650 + $0x138] sm:$0xff] %v4497
          %4691 = vst [vmem:[%s4650 + $0x140] sm:$0xff] %v4499
          %4692 = vst.msk [vmem:[%s4650 + $0x148] sm:$0xff] %vm2518, %v4605
          %4693 = vst [vmem:[%s4650 + $0x150] sm:$0xff] %v4277
          %4694 = vst [vmem:[%s4650 + $0x158] sm:$0xff] %v4279
          %4695 = vst [vmem:[%s4650 + $0x160] sm:$0xff] %v4390
          %4696 = vst [vmem:[%s4650 + $0x168] sm:$0xff] %v4392
          %4697 = vst [vmem:[%s4650 + $0x170] sm:$0xff] %v4503
          %4698 = vst [vmem:[%s4650 + $0x178] sm:$0xff] %v4505
          %4699 = vst.msk [vmem:[%s4650 + $0x180] sm:$0xff] %vm2518, %v4610
          %4700 = vst [vmem:[%s4650 + $0x188] sm:$0xff] %v4281
          %4701 = vst [vmem:[%s4650 + $0x190] sm:$0xff] %v4283
          %4702 = vst [vmem:[%s4650 + $0x198] sm:$0xff] %v4394
          %4703 = vst [vmem:[%s4650 + $0x1a0] sm:$0xff] %v4396
          %4704 = vst [vmem:[%s4650 + $0x1a8] sm:$0xff] %v4507
          %4705 = vst [vmem:[%s4650 + $0x1b0] sm:$0xff] %v4509
          %4706 = vst.msk [vmem:[%s4650 + $0x1b8] sm:$0xff] %vm2518, %v4613
          %4707 = vst [vmem:[%s4650 + $0x1c0] sm:$0xff] %v4287
          %4708 = vst [vmem:[%s4650 + $0x1c8] sm:$0xff] %v4289
          %4709 = vst [vmem:[%s4650 + $0x1d0] sm:$0xff] %v4400
          %4710 = vst [vmem:[%s4650 + $0x1d8] sm:$0xff] %v4402
          %4711 = vst [vmem:[%s4650 + $0x1e0] sm:$0xff] %v4513
          %4712 = vst [vmem:[%s4650 + $0x1e8] sm:$0xff] %v4515
          %4713 = vst.msk [vmem:[%s4650 + $0x1f0] sm:$0xff] %vm2518, %v4618
          %4714 = vst [vmem:[%s4650 + $0x1f8] sm:$0xff] %v4291
          %4715 = vst [vmem:[%s4650 + $0x200] sm:$0xff] %v4293
          %4716 = vst [vmem:[%s4650 + $0x208] sm:$0xff] %v4404
          %4717 = vst [vmem:[%s4650 + $0x210] sm:$0xff] %v4406
          %4718 = vst [vmem:[%s4650 + $0x218] sm:$0xff] %v4517
          %4719 = vst [vmem:[%s4650 + $0x220] sm:$0xff] %v4519
          %4720 = vst.msk [vmem:[%s4650 + $0x228] sm:$0xff] %vm2518, %v4621
          %4721 = vst [vmem:[%s4650 + $0x230] sm:$0xff] %v4297
          %4722 = vst [vmem:[%s4650 + $0x238] sm:$0xff] %v4299
          %4723 = vst [vmem:[%s4650 + $0x240] sm:$0xff] %v4410
          %4724 = vst [vmem:[%s4650 + $0x248] sm:$0xff] %v4412
          %4725 = vst [vmem:[%s4650 + $0x250] sm:$0xff] %v4523
          %4726 = vst [vmem:[%s4650 + $0x258] sm:$0xff] %v4525
          %4727 = vst.msk [vmem:[%s4650 + $0x260] sm:$0xff] %vm2518, %v4626
          %4728 = vst [vmem:[%s4650 + $0x268] sm:$0xff] %v4301
          %4729 = vst [vmem:[%s4650 + $0x270] sm:$0xff] %v4303
          %4730 = vst [vmem:[%s4650 + $0x278] sm:$0xff] %v4414
          %4731 = vst [vmem:[%s4650 + $0x280] sm:$0xff] %v4416
          %4732 = vst [vmem:[%s4650 + $0x288] sm:$0xff] %v4527
          %4733 = vst [vmem:[%s4650 + $0x290] sm:$0xff] %v4529
          %4734 = vst.msk [vmem:[%s4650 + $0x298] sm:$0xff] %vm2518, %v4629
          %4735 = vst [vmem:[%s4650 + $0x2a0] sm:$0xff] %v4307
          %4736 = vst [vmem:[%s4650 + $0x2a8] sm:$0xff] %v4309
          %4737 = vst [vmem:[%s4650 + $0x2b0] sm:$0xff] %v4420
          %4738 = vst [vmem:[%s4650 + $0x2b8] sm:$0xff] %v4422
          %4739 = vst [vmem:[%s4650 + $0x2c0] sm:$0xff] %v4533
          %4740 = vst [vmem:[%s4650 + $0x2c8] sm:$0xff] %v4535
          %4741 = vst.msk [vmem:[%s4650 + $0x2d0] sm:$0xff] %vm2518, %v4634
          %4742 = vst [vmem:[%s4650 + $0x2d8] sm:$0xff] %v4311
          %4743 = vst [vmem:[%s4650 + $0x2e0] sm:$0xff] %v4313
          %4744 = vst [vmem:[%s4650 + $0x2e8] sm:$0xff] %v4424
          %4745 = vst [vmem:[%s4650 + $0x2f0] sm:$0xff] %v4426
          %4746 = vst [vmem:[%s4650 + $0x2f8] sm:$0xff] %v4537
          %4747 = vst [vmem:[%s4650 + $0x300] sm:$0xff] %v4539
          %4748 = vst.msk [vmem:[%s4650 + $0x308] sm:$0xff] %vm2518, %v4637
          %4749 = vst [vmem:[%s4650 + $0x310] sm:$0xff] %v4317
          %4750 = vst [vmem:[%s4650 + $0x318] sm:$0xff] %v4319
          %4751 = vst [vmem:[%s4650 + $0x320] sm:$0xff] %v4430
          %4752 = vst [vmem:[%s4650 + $0x328] sm:$0xff] %v4432
          %4753 = vst [vmem:[%s4650 + $0x330] sm:$0xff] %v4543
          %4754 = vst [vmem:[%s4650 + $0x338] sm:$0xff] %v4545
          %4755 = vst.msk [vmem:[%s4650 + $0x340] sm:$0xff] %vm2518, %v4642
          %4756 = vst [vmem:[%s4650 + $0x348] sm:$0xff] %v4321
          %4757 = vst [vmem:[%s4650 + $0x350] sm:$0xff] %v4323
          %4758 = vst [vmem:[%s4650 + $0x358] sm:$0xff] %v4434
          %4759 = vst [vmem:[%s4650 + $0x360] sm:$0xff] %v4436
          %4760 = vst [vmem:[%s4650 + $0x368] sm:$0xff] %v4547
          %4761 = vst [vmem:[%s4650 + $0x370] sm:$0xff] %v4549
          %4762 = vst.msk [vmem:[%s4650 + $0x378] sm:$0xff] %vm2518, %v4645
        $region33: #{kernel_generated_4_forward.1} parent=27 // loop_footer
          %s320 = sadd.s32 1, %s316
        $region34: #{kernel_generated_4_forward.1} parent=27 // loop_footer_branch
          %315 = sbr.rel target = $region30
        $region35: #{kernel_generated_4_forward.1} parent=27 // loop_exit
          _
        %s4763 = sand.u32 %s71, 1
        %s4764 = scalar_lea.sflag [#allocation4], %s4763
        %s4765 = sand.u32 %s71, 1
        %s4766 = smul.addr %s4765, 14336
        %s4767 = scalar_lea.vmem [#allocation3], %s4766
        // Predicated region
        $region36: #{kernel_generated_4_forward.1} parent=27 // pred_check
          %p4768 = pneg %p81
        $region37: #{kernel_generated_4_forward.1} parent=27 // pred_check_branch
          %4770 = sbr.rel (%p4768) target = $region39
        $region38: #{kernel_generated_4_forward.1} parent=27 // pred_region
          %s4771 = smul.u32 16, %s16
          %s4773 = ssub.s32 229376, 229376
          %4774 = vsyncadd %s4764, %s4773
          %s4775 = smul.addr %s4771, 112
          %s4776 = smul.addr %s4775, 128
          %s4777 = scalar_lea.hbm %s2, %s4776
          %s4778 = sshll.u32 %s4767, 4
          %s4779 = int_to_ptr.vmem [resolvable:$true] %s4778
          %4784 = dma.vmem_to_hbm [thread:$0]  %s4779, 229376, %s4777, %s4764, 896, 896, 56
        $region39: #{kernel_generated_4_forward.1} parent=27 // pred_fallthru
          _
      $region28: #{kernel_generated_4_forward.1} parent=5 // pred_fallthru
        _
      %p4785 = scmp.le.s32.totalorder 2, %s11
      // Predicated region
      $region40: #{kernel_generated_4_forward.1} parent=5 // pred_check
        %p4786 = pneg %p4785
      $region41: #{kernel_generated_4_forward.1} parent=5 // pred_check_branch
        %4788 = sbr.rel (%p4786) target = $region43
      $region42: #{kernel_generated_4_forward.1} parent=5 // pred_region
        %s4789 = ssub.s32 %s11, 2
        // Predicated region
        $region44: #{kernel_generated_4_forward.1} parent=42 // pred_check
          %p4790 = pneg %p87
        $region45: #{kernel_generated_4_forward.1} parent=42 // pred_check_branch
          %4792 = sbr.rel (%p4790) target = $region47
        $region46: #{kernel_generated_4_forward.1} parent=42 // pred_region
          %s4793 = sand.u32 %s72, 1
          %s4794 = scalar_lea.sflag [#allocation4], %s4793
          %s4795 = sand.u32 %s72, 1
          %s4796 = smul.addr %s4795, 14336
          %s4797 = scalar_lea.vmem [#allocation3], %s4796
          %4798 = dma.done %s4794, 229376
        $region47: #{kernel_generated_4_forward.1} parent=42 // pred_fallthru
          _
      $region43: #{kernel_generated_4_forward.1} parent=5 // pred_fallthru
        _
    $region6: #{kernel_generated_4_forward.1} parent=1 // loop_footer
      %s15 = sadd.s32 1, %s11
    $region7: #{kernel_generated_4_forward.1} parent=1 // loop_footer_branch
      %10 = sbr.rel target = $region3
    $region8: #{kernel_generated_4_forward.1} parent=1 // loop_exit
      _
    %4799 = vsyncpa [#allocation4], 1
    %s4800 = scalar_lea.sflag [#allocation4], 1
    %4801 = vsyncpa %s4800, 1

</llo_original>
